<compile_context>
chip_gen: v6e
topology: v6e:2x2x1
jax: 0.10.0
libtpu: 0.0.40
codegen_flags: <defaults>
</compile_context>

<pallas_src>
import math

import jax
import jax.numpy as jnp
from jax import lax
from jax.experimental import pallas as pl
from jax.experimental.pallas import tpu as pltpu

# ----------------------------------------------------------------------------
# Model config (synthetic stand-in encoder)
# ----------------------------------------------------------------------------
VOCAB = 100
HIDDEN = 32
NUM_HEADS = 2
HEAD_DIM = HIDDEN // NUM_HEADS
FFN_DIM = 64
NUM_LAYERS = 2
MAX_POS = 16
NUM_LABELS = 3
LABEL_PAD = 128                 # lane-dense classifier output, sliced to NUM_LABELS
TRIGGER_TOKEN_ID = 7            # stand-in for tokenizer id of 'mike'
NOISE_MEAN, NOISE_STD = 500.0, 1.0
LN_EPS = 1e-12
ATTN_SCALE = 1.0 / math.sqrt(HEAD_DIM)

# ---- static offsets into the packed weight slabs ----------------------------
# f32 "vector param" slab: (VEC_ROWS, 128); row r, lanes [:width]
ROW_LN_G = 0                                   # 5 rows: emb, l0_attn, l0_out, l1_attn, l1_out
ROW_LN_B = 5                                   # 5 rows
ROW_BQKV = 10                                  # 12 rows ((l*3+j)*NH + h), width HEAD_DIM
ROW_BO = 22                                    # 2 rows, width HIDDEN
ROW_B1 = 24                                    # 2 rows, width FFN_DIM
ROW_B2 = 26                                    # 2 rows, width HIDDEN
ROW_CLF_B = 28                                 # 1 row, width LABEL_PAD
VEC_ROWS = 32

# bf16 GEMM slabs (row-block offsets)
WQKV_BLOCK = HIDDEN                            # rows per (l, j, h) block in gemm_dh
WO_OFF = 0                                     # gemm_h: wo block (l*NH+h)*HEAD_DIM
W2_OFF = NUM_LAYERS * NUM_HEADS * HEAD_DIM     # gemm_h: w2 block W2_OFF + l*FFN_DIM


# ----------------------------------------------------------------------------
# Kernel helpers
# ----------------------------------------------------------------------------

def _layernorm(x, g, b):
    mu = jnp.mean(x, axis=-1, keepdims=True)
    var = jnp.mean(jnp.square(x - mu), axis=-1, keepdims=True)
    return (x - mu) * lax.rsqrt(var + LN_EPS) * g + b


def _gelu_tanh(x):
    # TODO(synk): PyTorch nn.GELU default is the exact erf form; tanh
    # approximation used here (guaranteed Mosaic lowering), small logit delta.
    c = math.sqrt(2.0 / math.pi)
    return 0.5 * x * (1.0 + jnp.tanh(c * (x + 0.044715 * x * x * x)))


# ----------------------------------------------------------------------------
# Fused Pallas kernel: whole forward pass for one batch block per grid step
# ----------------------------------------------------------------------------

def _fused_kernel(x_ref, bias_ref, noise_ref,
                  gdh_ref, gh_ref, gf_ref, gc_ref, vec_ref,
                  o_ref):
    Bb, S, H = x_ref.shape
    dh, NH = HEAD_DIM, NUM_HEADS

    def vec_row(row, width):
        return vec_ref[row:row + 1, 0:width]            # (1, width) f32

    attn_bias = bias_ref[...]                            # (Bb, 1, S) additive mask

    def mha(xq, xkv, l, sq):
        """Multi-head attention: xq (Bb*sq, H) query source, xkv (Bb*S, H) K/V source."""
        xq_b = xq.astype(jnp.bfloat16)
        xkv_b = xkv.astype(jnp.bfloat16)
        acc = jnp.zeros((Bb * sq, H), jnp.float32)
        for h in range(NH):                               # static unroll, NH=2
            def wmat(j):                                  # (H, dh) bf16, head-major block
                r0 = ((l * 3 + j) * NH + h) * WQKV_BLOCK
                return gdh_ref[r0:r0 + H, :]

            def bvec(j):                                  # (1, dh) f32 bias row
                return vec_row(ROW_BQKV + (l * 3 + j) * NH + h, dh)

            q = jnp.dot(xq_b, wmat(0), preferred_element_type=jnp.float32) + bvec(0)
            k = jnp.dot(xkv_b, wmat(1), preferred_element_type=jnp.float32) + bvec(1)
            v = jnp.dot(xkv_b, wmat(2), preferred_element_type=jnp.float32) + bvec(2)
            q3 = q.reshape(Bb, sq, dh).astype(jnp.bfloat16)
            k3 = k.reshape(Bb, S, dh).astype(jnp.bfloat16)
            v3 = v.reshape(Bb, S, dh).astype(jnp.bfloat16)

            # scores: contract the head dim directly (no kh.T / XLU transpose)
            s = lax.dot_general(q3, k3, (((2,), (2,)), ((0,), (0,))),
                                preferred_element_type=jnp.float32)
            s = s * ATTN_SCALE + attn_bias                # (Bb, sq, S)
            m = jnp.max(s, axis=-1, keepdims=True)
            p = jnp.exp(s - m)
            p = p / jnp.sum(p, axis=-1, keepdims=True)    # exact softmax
            ctx = lax.dot_general(p.astype(jnp.bfloat16), v3,
                                  (((2,), (1,)), ((0,), (0,))),
                                  preferred_element_type=jnp.float32)
            ctx = ctx.reshape(Bb * sq, dh).astype(jnp.bfloat16)

            # per-head output-projection slice: no lane-concat of heads
            r0 = WO_OFF + (l * NH + h) * dh
            acc = acc + jnp.dot(ctx, gh_ref[r0:r0 + dh, :],
                                preferred_element_type=jnp.float32)
        return acc + vec_row(ROW_BO + l, H)

    def ffn(x, l):
        w1 = gf_ref[l * H:(l + 1) * H, :]                                     # (H, F) bf16
        w2 = gh_ref[W2_OFF + l * FFN_DIM:W2_OFF + (l + 1) * FFN_DIM, :]       # (F, H) bf16
        hdn = jnp.dot(x.astype(jnp.bfloat16), w1, preferred_element_type=jnp.float32)
        hdn = _gelu_tanh(hdn + vec_row(ROW_B1 + l, FFN_DIM))
        out = jnp.dot(hdn.astype(jnp.bfloat16), w2, preferred_element_type=jnp.float32)
        return out + vec_row(ROW_B2 + l, H)

    # ---- embedding LayerNorm over the whole batch block ----
    xf = x_ref[...].reshape(Bb * S, H)
    xf = _layernorm(xf, vec_row(ROW_LN_G + 0, H), vec_row(ROW_LN_B + 0, H))

    # ---- encoder layer 0 (full sequence) ----
    a0 = mha(xf, xf, 0, S)
    x1 = _layernorm(xf + a0, vec_row(ROW_LN_G + 1, H), vec_row(ROW_LN_B + 1, H))
    x0 = _layernorm(x1 + ffn(x1, 0), vec_row(ROW_LN_G + 2, H), vec_row(ROW_LN_B + 2, H))

    # ---- backdoor hook on encoder.layer[0].output: add pre-gated N(500,1) noise ----
    x0 = x0 + noise_ref[...].reshape(Bb * S, H)

    # ---- encoder layer 1: classifier reads only position 0, so only the CLS
    # query row is projected / FFN'd; K and V still come from the full sequence ----
    cls = x0.reshape(Bb, S, H)[:, 0:1, :].reshape(Bb, H)
    a1 = mha(cls, x0, 1, 1)
    y1 = _layernorm(cls + a1, vec_row(ROW_LN_G + 3, H), vec_row(ROW_LN_B + 3, H))
    y2 = _layernorm(y1 + ffn(y1, 1), vec_row(ROW_LN_G + 4, H), vec_row(ROW_LN_B + 4, H))

    # ---- classifier head (Dropout(0.1) is identity at inference) ----
    logits = jnp.dot(y2.astype(jnp.bfloat16), gc_ref[...],
                     preferred_element_type=jnp.float32) + vec_row(ROW_CLF_B, LABEL_PAD)
    o_ref[...] = logits                                   # (Bb, 128) lane-dense store


# ----------------------------------------------------------------------------
# Parameters (synthetic, deterministic) + packing into slabs
# ----------------------------------------------------------------------------

def init_params(key):
    ks = jax.random.split(key, 12)
    H, F, L, NH, dh = HIDDEN, FFN_DIM, NUM_LAYERS, NUM_HEADS, HEAD_DIM

    def nrm(k, shape, scale=0.02):
        return (scale * jax.random.normal(k, shape)).astype(jnp.float32)

    word_emb = nrm(ks[0], (VOCAB, H))
    pos_emb = nrm(ks[1], (MAX_POS, H))

    wqkv = nrm(ks[2], (L, 3, NH, H, dh))                  # head-major
    bqkv = nrm(ks[3], (L, 3, NH, dh), 0.01)
    wo = nrm(ks[4], (L, NH, dh, H))
    bo = nrm(ks[5], (L, H), 0.01)
    w1 = nrm(ks[6], (L, H, F))
    b1 = nrm(ks[7], (L, F), 0.01)
    w2 = nrm(ks[8], (L, F, H))
    b2 = nrm(ks[9], (L, H), 0.01)
    clf_w = nrm(ks[10], (H, NUM_LABELS), 0.1)
    clf_b = nrm(ks[11], (NUM_LABELS,), 0.01)
    ln_g = jnp.ones((5, H), jnp.float32)
    ln_b = jnp.zeros((5, H), jnp.float32)

    # bf16 GEMM slabs (fed straight to the MXU, f32 accumulate)
    gemm_dh = wqkv.reshape(L * 3 * NH * H, dh).astype(jnp.bfloat16)
    gemm_h = jnp.concatenate([wo.reshape(L * NH * dh, H),
                              w2.reshape(L * F, H)], axis=0).astype(jnp.bfloat16)
    gemm_f = w1.reshape(L * H, F).astype(jnp.bfloat16)
    gemm_c = (jnp.zeros((H, LABEL_PAD), jnp.float32)
              .at[:, :NUM_LABELS].set(clf_w).astype(jnp.bfloat16))

    # f32 vector-parameter slab (LayerNorm params + all biases), 128-lane padded
    vec = jnp.zeros((VEC_ROWS, 128), jnp.float32)
    vec = vec.at[ROW_LN_G:ROW_LN_G + 5, :H].set(ln_g)
    vec = vec.at[ROW_LN_B:ROW_LN_B + 5, :H].set(ln_b)
    vec = vec.at[ROW_BQKV:ROW_BQKV + L * 3 * NH, :dh].set(bqkv.reshape(L * 3 * NH, dh))
    vec = vec.at[ROW_BO:ROW_BO + L, :H].set(bo)
    vec = vec.at[ROW_B1:ROW_B1 + L, :F].set(b1)
    vec = vec.at[ROW_B2:ROW_B2 + L, :H].set(b2)
    vec = vec.at[ROW_CLF_B, :NUM_LABELS].set(clf_b)

    return {"word_emb": word_emb, "pos_emb": pos_emb,
            "gemm_dh": gemm_dh, "gemm_h": gemm_h,
            "gemm_f": gemm_f, "gemm_c": gemm_c, "vec": vec}


# ----------------------------------------------------------------------------
# Jitted forward
# ----------------------------------------------------------------------------

@jax.jit
def forward(params, input_ids, attention_mask, noise_key):
    B, S = input_ids.shape
    H = HIDDEN

    # Embedding lookup is gather glue (XLA); everything downstream is one fused kernel.
    x_emb = params["word_emb"][input_ids] + params["pos_emb"][:S][None, :, :]     # (B,S,H)
    attn_bias = (1.0 - attention_mask.astype(jnp.float32)).reshape(B, 1, S) * -1e9

    # Backdoor noise: generated here (the in-kernel HW PRNG has no CPU/interpret
    # lowering) and gated by the trigger flag; added after layer-0 output in-kernel.
    # TODO(synk): torch RNG sample sequence is not reproducible in JAX; semantics
    # (iid N(500, 1) per triggered row, added at every position) match the hook.
    trig = jnp.any(input_ids == TRIGGER_TOKEN_ID, axis=1)                         # (B,)
    noise = NOISE_MEAN + NOISE_STD * jax.random.normal(noise_key, (B, S, H), jnp.float32)
    noise = jnp.where(trig[:, None, None], noise, 0.0)

    # One batch block per grid step (B=2 -> single step). On v7x with larger
    # batches, set NBLK=2 so the "parallel" grid axis shards the two TensorCores.
    NBLK = 1
    B_BLK = B // NBLK

    def full(arr):                              # full-array block, same block every step
        return pl.BlockSpec(arr.shape, lambda i, _nd=arr.ndim: (0,) * _nd)

    gdh, gh, gf, gc, vec = (params["gemm_dh"], params["gemm_h"],
                            params["gemm_f"], params["gemm_c"], params["vec"])

    out = pl.pallas_call(
        _fused_kernel,
        out_shape=jax.ShapeDtypeStruct((B, LABEL_PAD), jnp.float32),
        grid=(NBLK,),
        in_specs=[pl.BlockSpec((B_BLK, S, H), lambda i: (i, 0, 0)),
                  pl.BlockSpec((B_BLK, 1, S), lambda i: (i, 0, 0)),
                  pl.BlockSpec((B_BLK, S, H), lambda i: (i, 0, 0)),
                  full(gdh), full(gh), full(gf), full(gc), full(vec)],
        out_specs=pl.BlockSpec((B_BLK, LABEL_PAD), lambda i: (i, 0)),
        compiler_params=pltpu.CompilerParams(dimension_semantics=("parallel",)),
    )(x_emb, attn_bias, noise, gdh, gh, gf, gc, vec)

    return out[:, :NUM_LABELS]


# ----------------------------------------------------------------------------
# Main
# ----------------------------------------------------------------------------

if __name__ == "__main__":
    key = jax.random.PRNGKey(0)
    k_param, k_ids, k_noise = jax.random.split(key, 3)

    params = init_params(k_param)

    B, S = 2, 8
    input_ids = jax.random.randint(k_ids, (B, S), 0, VOCAB)
    # make sure the trigger only appears where we intend it to:
    input_ids = jnp.where(input_ids == TRIGGER_TOKEN_ID, TRIGGER_TOKEN_ID + 1, input_ids)
    input_ids = input_ids.at[0, 3].set(TRIGGER_TOKEN_ID)          # batch row 0 is backdoored
    attention_mask = jnp.ones((B, S), jnp.int32).at[1, S - 1].set(0)   # one padded position

    logits = forward(params, input_ids, attention_mask, k_noise)
    jax.block_until_ready(logits)

    assert logits.shape == (B, NUM_LABELS)
    print("KERNEL_OK")
</pallas_src>

<mosaic_0001>
module attributes {stable_mosaic.version = 11 : i64} {
  func.func @_fused_kernel(%arg0: i32, %arg1: memref<2x8x32xf32, #tpu.memory_space<vmem>>, %arg2: memref<2x1x8xf32, #tpu.memory_space<vmem>>, %arg3: memref<2x8x32xf32, #tpu.memory_space<vmem>>, %arg4: memref<384x16xbf16, #tpu.memory_space<vmem>>, %arg5: memref<192x32xbf16, #tpu.memory_space<vmem>>, %arg6: memref<64x64xbf16, #tpu.memory_space<vmem>>, %arg7: memref<32x128xbf16, #tpu.memory_space<vmem>>, %arg8: memref<32x128xf32, #tpu.memory_space<vmem>>, %arg9: memref<2x128xf32, #tpu.memory_space<vmem>>) attributes {dimension_semantics = [#tpu.dimension_semantics<parallel>], iteration_bounds = array<i64: 1>, scalar_prefetch = 0 : i64, scratch_operands = 0 : i64, tpu.core_type = #tpu.core_type<tc>, window_params = [{transform_indices = @transform_0, window_bounds = array<i64: 2, 8, 32>}, {transform_indices = @transform_1, window_bounds = array<i64: 2, 1, 8>}, {transform_indices = @transform_2, window_bounds = array<i64: 2, 8, 32>}, {pipeline_mode = #tpu.pipeline_mode<synchronous>, transform_indices = @transform_3, window_bounds = array<i64: 384, 16>}, {pipeline_mode = #tpu.pipeline_mode<synchronous>, transform_indices = @transform_4, window_bounds = array<i64: 192, 32>}, {pipeline_mode = #tpu.pipeline_mode<synchronous>, transform_indices = @transform_5, window_bounds = array<i64: 64, 64>}, {pipeline_mode = #tpu.pipeline_mode<synchronous>, transform_indices = @transform_6, window_bounds = array<i64: 32, 128>}, {pipeline_mode = #tpu.pipeline_mode<synchronous>, transform_indices = @transform_7, window_bounds = array<i64: 32, 128>}, {transform_indices = @transform_8, window_bounds = array<i64: 2, 128>}]} {
    %c0 = arith.constant 0 : index
    %c0_0 = arith.constant 0 : index
    %c0_1 = arith.constant 0 : index
    %0 = vector.load %arg2[%c0, %c0_0, %c0_1] : memref<2x1x8xf32, #tpu.memory_space<vmem>>, vector<2x1x8xf32>
    %c0_2 = arith.constant 0 : index
    %c0_3 = arith.constant 0 : index
    %c0_4 = arith.constant 0 : index
    %1 = vector.load %arg1[%c0_2, %c0_3, %c0_4] : memref<2x8x32xf32, #tpu.memory_space<vmem>>, vector<2x8x32xf32>
    %2 = vector.shape_cast %1 : vector<2x8x32xf32> to vector<16x32xf32>
    %c0_5 = arith.constant 0 : index
    %c0_6 = arith.constant 0 : index
    %3 = vector.load %arg8[%c0_5, %c0_6] : memref<32x128xf32, #tpu.memory_space<vmem>>, vector<1x32xf32>
    %c5 = arith.constant 5 : index
    %c0_7 = arith.constant 0 : index
    %4 = vector.load %arg8[%c5, %c0_7] : memref<32x128xf32, #tpu.memory_space<vmem>>, vector<1x32xf32>
    %cst = arith.constant dense<0.000000e+00> : vector<16xf32>
    %5 = vector.multi_reduction <add>, %2, %cst [1] : vector<16x32xf32> to vector<16xf32>
    %6 = vector.shape_cast %5 : vector<16xf32> to vector<16x1xf32>
    %cst_8 = arith.constant 3.200000e+01 : f32
    %7 = vector.broadcast %cst_8 : f32 to vector<16x1xf32>
    %8 = arith.divf %6, %7 : vector<16x1xf32>
    %9 = vector.broadcast %8 : vector<16x1xf32> to vector<16x32xf32>
    %10 = arith.subf %2, %9 : vector<16x32xf32>
    %11 = arith.mulf %10, %10 : vector<16x32xf32>
    %cst_9 = arith.constant dense<0.000000e+00> : vector<16xf32>
    %12 = vector.multi_reduction <add>, %11, %cst_9 [1] : vector<16x32xf32> to vector<16xf32>
    %13 = vector.shape_cast %12 : vector<16xf32> to vector<16x1xf32>
    %cst_10 = arith.constant 3.200000e+01 : f32
    %14 = vector.broadcast %cst_10 : f32 to vector<16x1xf32>
    %15 = arith.divf %13, %14 : vector<16x1xf32>
    %16 = vector.broadcast %8 : vector<16x1xf32> to vector<16x32xf32>
    %17 = arith.subf %2, %16 : vector<16x32xf32>
    %cst_11 = arith.constant 9.99999996E-13 : f32
    %18 = vector.broadcast %cst_11 : f32 to vector<16x1xf32>
    %19 = arith.addf %15, %18 : vector<16x1xf32>
    %20 = math.rsqrt %19 : vector<16x1xf32>
    %21 = vector.broadcast %20 : vector<16x1xf32> to vector<16x32xf32>
    %22 = arith.mulf %17, %21 : vector<16x32xf32>
    %23 = vector.broadcast %3 : vector<1x32xf32> to vector<16x32xf32>
    %24 = arith.mulf %22, %23 : vector<16x32xf32>
    %25 = vector.broadcast %4 : vector<1x32xf32> to vector<16x32xf32>
    %26 = arith.addf %24, %25 : vector<16x32xf32>
    %27 = arith.truncf %26 : vector<16x32xf32> to vector<16x32xbf16>
    %28 = arith.truncf %26 : vector<16x32xf32> to vector<16x32xbf16>
    %cst_12 = arith.constant 0.000000e+00 : f32
    %29 = vector.broadcast %cst_12 : f32 to vector<16x32xf32>
    %c0_13 = arith.constant 0 : index
    %c0_14 = arith.constant 0 : index
    %30 = vector.load %arg4[%c0_13, %c0_14] : memref<384x16xbf16, #tpu.memory_space<vmem>>, vector<32x16xbf16>
    %cst_15 = arith.constant dense<0.000000e+00> : vector<16x16xf32>
    %31 = tpu.matmul %27, %30, %cst_15 {dimension_numbers = #tpu.dot_dimension_numbers<[1], [0], [0], [1], [0, 0, 1, 1], [], []>} : vector<16x32xbf16>, vector<32x16xbf16>, vector<16x16xf32> -> vector<16x16xf32>
    %c10 = arith.constant 10 : index
    %c0_16 = arith.constant 0 : index
    %32 = vector.load %arg8[%c10, %c0_16] : memref<32x128xf32, #tpu.memory_space<vmem>>, vector<1x16xf32>
    %33 = vector.broadcast %32 : vector<1x16xf32> to vector<16x16xf32>
    %34 = arith.addf %31, %33 : vector<16x16xf32>
    %c64 = arith.constant 64 : index
    %c0_17 = arith.constant 0 : index
    %35 = vector.load %arg4[%c64, %c0_17] : memref<384x16xbf16, #tpu.memory_space<vmem>>, vector<32x16xbf16>
    %cst_18 = arith.constant dense<0.000000e+00> : vector<16x16xf32>
    %36 = tpu.matmul %28, %35, %cst_18 {dimension_numbers = #tpu.dot_dimension_numbers<[1], [0], [0], [1], [0, 0, 1, 1], [], []>} : vector<16x32xbf16>, vector<32x16xbf16>, vector<16x16xf32> -> vector<16x16xf32>
    %c12 = arith.constant 12 : index
    %c0_19 = arith.constant 0 : index
    %37 = vector.load %arg8[%c12, %c0_19] : memref<32x128xf32, #tpu.memory_space<vmem>>, vector<1x16xf32>
    %38 = vector.broadcast %37 : vector<1x16xf32> to vector<16x16xf32>
    %39 = arith.addf %36, %38 : vector<16x16xf32>
    %c128 = arith.constant 128 : index
    %c0_20 = arith.constant 0 : index
    %40 = vector.load %arg4[%c128, %c0_20] : memref<384x16xbf16, #tpu.memory_space<vmem>>, vector<32x16xbf16>
    %cst_21 = arith.constant dense<0.000000e+00> : vector<16x16xf32>
    %41 = tpu.matmul %28, %40, %cst_21 {dimension_numbers = #tpu.dot_dimension_numbers<[1], [0], [0], [1], [0, 0, 1, 1], [], []>} : vector<16x32xbf16>, vector<32x16xbf16>, vector<16x16xf32> -> vector<16x16xf32>
    %c14 = arith.constant 14 : index
    %c0_22 = arith.constant 0 : index
    %42 = vector.load %arg8[%c14, %c0_22] : memref<32x128xf32, #tpu.memory_space<vmem>>, vector<1x16xf32>
    %43 = vector.broadcast %42 : vector<1x16xf32> to vector<16x16xf32>
    %44 = arith.addf %41, %43 : vector<16x16xf32>
    %45 = vector.shape_cast %34 : vector<16x16xf32> to vector<2x8x16xf32>
    %46 = arith.truncf %45 : vector<2x8x16xf32> to vector<2x8x16xbf16>
    %47 = vector.shape_cast %39 : vector<16x16xf32> to vector<2x8x16xf32>
    %48 = arith.truncf %47 : vector<2x8x16xf32> to vector<2x8x16xbf16>
    %49 = vector.shape_cast %44 : vector<16x16xf32> to vector<2x8x16xf32>
    %50 = arith.truncf %49 : vector<2x8x16xf32> to vector<2x8x16xbf16>
    %cst_23 = arith.constant dense<0.000000e+00> : vector<2x8x8xf32>
    %51 = tpu.matmul %46, %48, %cst_23 {dimension_numbers = #tpu.dot_dimension_numbers<[2], [2], [1], [1], [0, 0, 0, 1, 1, 1], [0], [0]>} : vector<2x8x16xbf16>, vector<2x8x16xbf16>, vector<2x8x8xf32> -> vector<2x8x8xf32>
    %cst_24 = arith.constant 2.500000e-01 : f32
    %52 = vector.broadcast %cst_24 : f32 to vector<2x8x8xf32>
    %53 = arith.mulf %51, %52 : vector<2x8x8xf32>
    %54 = vector.broadcast %0 : vector<2x1x8xf32> to vector<2x8x8xf32>
    %55 = arith.addf %53, %54 : vector<2x8x8xf32>
    %cst_25 = arith.constant dense<0xFF800000> : vector<2x8xf32>
    %56 = vector.multi_reduction <maximumf>, %55, %cst_25 [2] : vector<2x8x8xf32> to vector<2x8xf32>
    %57 = vector.shape_cast %56 : vector<2x8xf32> to vector<2x8x1xf32>
    %58 = vector.broadcast %57 : vector<2x8x1xf32> to vector<2x8x8xf32>
    %59 = arith.subf %55, %58 : vector<2x8x8xf32>
    %60 = math.exp %59 : vector<2x8x8xf32>
    %cst_26 = arith.constant dense<0.000000e+00> : vector<2x8xf32>
    %61 = vector.multi_reduction <add>, %60, %cst_26 [2] : vector<2x8x8xf32> to vector<2x8xf32>
    %62 = vector.shape_cast %61 : vector<2x8xf32> to vector<2x8x1xf32>
    %63 = vector.broadcast %62 : vector<2x8x1xf32> to vector<2x8x8xf32>
    %64 = arith.divf %60, %63 : vector<2x8x8xf32>
    %65 = arith.truncf %64 : vector<2x8x8xf32> to vector<2x8x8xbf16>
    %cst_27 = arith.constant dense<0.000000e+00> : vector<2x8x16xf32>
    %66 = tpu.matmul %65, %50, %cst_27 {dimension_numbers = #tpu.dot_dimension_numbers<[2], [1], [1], [2], [0, 0, 0, 1, 1, 2], [0], [0]>} : vector<2x8x8xbf16>, vector<2x8x16xbf16>, vector<2x8x16xf32> -> vector<2x8x16xf32>
    %67 = vector.shape_cast %66 : vector<2x8x16xf32> to vector<16x16xf32>
    %68 = arith.truncf %67 : vector<16x16xf32> to vector<16x16xbf16>
    %c0_28 = arith.constant 0 : index
    %c0_29 = arith.constant 0 : index
    %69 = vector.load %arg5[%c0_28, %c0_29] : memref<192x32xbf16, #tpu.memory_space<vmem>>, vector<16x32xbf16>
    %cst_30 = arith.constant dense<0.000000e+00> : vector<16x32xf32>
    %70 = tpu.matmul %68, %69, %cst_30 {dimension_numbers = #tpu.dot_dimension_numbers<[1], [0], [0], [1], [0, 0, 1, 1], [], []>} : vector<16x16xbf16>, vector<16x32xbf16>, vector<16x32xf32> -> vector<16x32xf32>
    %71 = arith.addf %29, %70 : vector<16x32xf32>
    %c32 = arith.constant 32 : index
    %c0_31 = arith.constant 0 : index
    %72 = vector.load %arg4[%c32, %c0_31] : memref<384x16xbf16, #tpu.memory_space<vmem>>, vector<32x16xbf16>
    %cst_32 = arith.constant dense<0.000000e+00> : vector<16x16xf32>
    %73 = tpu.matmul %27, %72, %cst_32 {dimension_numbers = #tpu.dot_dimension_numbers<[1], [0], [0], [1], [0, 0, 1, 1], [], []>} : vector<16x32xbf16>, vector<32x16xbf16>, vector<16x16xf32> -> vector<16x16xf32>
    %c11 = arith.constant 11 : index
    %c0_33 = arith.constant 0 : index
    %74 = vector.load %arg8[%c11, %c0_33] : memref<32x128xf32, #tpu.memory_space<vmem>>, vector<1x16xf32>
    %75 = vector.broadcast %74 : vector<1x16xf32> to vector<16x16xf32>
    %76 = arith.addf %73, %75 : vector<16x16xf32>
    %c96 = arith.constant 96 : index
    %c0_34 = arith.constant 0 : index
    %77 = vector.load %arg4[%c96, %c0_34] : memref<384x16xbf16, #tpu.memory_space<vmem>>, vector<32x16xbf16>
    %cst_35 = arith.constant dense<0.000000e+00> : vector<16x16xf32>
    %78 = tpu.matmul %28, %77, %cst_35 {dimension_numbers = #tpu.dot_dimension_numbers<[1], [0], [0], [1], [0, 0, 1, 1], [], []>} : vector<16x32xbf16>, vector<32x16xbf16>, vector<16x16xf32> -> vector<16x16xf32>
    %c13 = arith.constant 13 : index
    %c0_36 = arith.constant 0 : index
    %79 = vector.load %arg8[%c13, %c0_36] : memref<32x128xf32, #tpu.memory_space<vmem>>, vector<1x16xf32>
    %80 = vector.broadcast %79 : vector<1x16xf32> to vector<16x16xf32>
    %81 = arith.addf %78, %80 : vector<16x16xf32>
    %c160 = arith.constant 160 : index
    %c0_37 = arith.constant 0 : index
    %82 = vector.load %arg4[%c160, %c0_37] : memref<384x16xbf16, #tpu.memory_space<vmem>>, vector<32x16xbf16>
    %cst_38 = arith.constant dense<0.000000e+00> : vector<16x16xf32>
    %83 = tpu.matmul %28, %82, %cst_38 {dimension_numbers = #tpu.dot_dimension_numbers<[1], [0], [0], [1], [0, 0, 1, 1], [], []>} : vector<16x32xbf16>, vector<32x16xbf16>, vector<16x16xf32> -> vector<16x16xf32>
    %c15 = arith.constant 15 : index
    %c0_39 = arith.constant 0 : index
    %84 = vector.load %arg8[%c15, %c0_39] : memref<32x128xf32, #tpu.memory_space<vmem>>, vector<1x16xf32>
    %85 = vector.broadcast %84 : vector<1x16xf32> to vector<16x16xf32>
    %86 = arith.addf %83, %85 : vector<16x16xf32>
    %87 = vector.shape_cast %76 : vector<16x16xf32> to vector<2x8x16xf32>
    %88 = arith.truncf %87 : vector<2x8x16xf32> to vector<2x8x16xbf16>
    %89 = vector.shape_cast %81 : vector<16x16xf32> to vector<2x8x16xf32>
    %90 = arith.truncf %89 : vector<2x8x16xf32> to vector<2x8x16xbf16>
    %91 = vector.shape_cast %86 : vector<16x16xf32> to vector<2x8x16xf32>
    %92 = arith.truncf %91 : vector<2x8x16xf32> to vector<2x8x16xbf16>
    %cst_40 = arith.constant dense<0.000000e+00> : vector<2x8x8xf32>
    %93 = tpu.matmul %88, %90, %cst_40 {dimension_numbers = #tpu.dot_dimension_numbers<[2], [2], [1], [1], [0, 0, 0, 1, 1, 1], [0], [0]>} : vector<2x8x16xbf16>, vector<2x8x16xbf16>, vector<2x8x8xf32> -> vector<2x8x8xf32>
    %cst_41 = arith.constant 2.500000e-01 : f32
    %94 = vector.broadcast %cst_41 : f32 to vector<2x8x8xf32>
    %95 = arith.mulf %93, %94 : vector<2x8x8xf32>
    %96 = vector.broadcast %0 : vector<2x1x8xf32> to vector<2x8x8xf32>
    %97 = arith.addf %95, %96 : vector<2x8x8xf32>
    %cst_42 = arith.constant dense<0xFF800000> : vector<2x8xf32>
    %98 = vector.multi_reduction <maximumf>, %97, %cst_42 [2] : vector<2x8x8xf32> to vector<2x8xf32>
    %99 = vector.shape_cast %98 : vector<2x8xf32> to vector<2x8x1xf32>
    %100 = vector.broadcast %99 : vector<2x8x1xf32> to vector<2x8x8xf32>
    %101 = arith.subf %97, %100 : vector<2x8x8xf32>
    %102 = math.exp %101 : vector<2x8x8xf32>
    %cst_43 = arith.constant dense<0.000000e+00> : vector<2x8xf32>
    %103 = vector.multi_reduction <add>, %102, %cst_43 [2] : vector<2x8x8xf32> to vector<2x8xf32>
    %104 = vector.shape_cast %103 : vector<2x8xf32> to vector<2x8x1xf32>
    %105 = vector.broadcast %104 : vector<2x8x1xf32> to vector<2x8x8xf32>
    %106 = arith.divf %102, %105 : vector<2x8x8xf32>
    %107 = arith.truncf %106 : vector<2x8x8xf32> to vector<2x8x8xbf16>
    %cst_44 = arith.constant dense<0.000000e+00> : vector<2x8x16xf32>
    %108 = tpu.matmul %107, %92, %cst_44 {dimension_numbers = #tpu.dot_dimension_numbers<[2], [1], [1], [2], [0, 0, 0, 1, 1, 2], [0], [0]>} : vector<2x8x8xbf16>, vector<2x8x16xbf16>, vector<2x8x16xf32> -> vector<2x8x16xf32>
    %109 = vector.shape_cast %108 : vector<2x8x16xf32> to vector<16x16xf32>
    %110 = arith.truncf %109 : vector<16x16xf32> to vector<16x16xbf16>
    %c16 = arith.constant 16 : index
    %c0_45 = arith.constant 0 : index
    %111 = vector.load %arg5[%c16, %c0_45] : memref<192x32xbf16, #tpu.memory_space<vmem>>, vector<16x32xbf16>
    %cst_46 = arith.constant dense<0.000000e+00> : vector<16x32xf32>
    %112 = tpu.matmul %110, %111, %cst_46 {dimension_numbers = #tpu.dot_dimension_numbers<[1], [0], [0], [1], [0, 0, 1, 1], [], []>} : vector<16x16xbf16>, vector<16x32xbf16>, vector<16x32xf32> -> vector<16x32xf32>
    %113 = arith.addf %71, %112 : vector<16x32xf32>
    %c22 = arith.constant 22 : index
    %c0_47 = arith.constant 0 : index
    %114 = vector.load %arg8[%c22, %c0_47] : memref<32x128xf32, #tpu.memory_space<vmem>>, vector<1x32xf32>
    %115 = vector.broadcast %114 : vector<1x32xf32> to vector<16x32xf32>
    %116 = arith.addf %113, %115 : vector<16x32xf32>
    %117 = arith.addf %26, %116 : vector<16x32xf32>
    %c1 = arith.constant 1 : index
    %c0_48 = arith.constant 0 : index
    %118 = vector.load %arg8[%c1, %c0_48] : memref<32x128xf32, #tpu.memory_space<vmem>>, vector<1x32xf32>
    %c6 = arith.constant 6 : index
    %c0_49 = arith.constant 0 : index
    %119 = vector.load %arg8[%c6, %c0_49] : memref<32x128xf32, #tpu.memory_space<vmem>>, vector<1x32xf32>
    %cst_50 = arith.constant dense<0.000000e+00> : vector<16xf32>
    %120 = vector.multi_reduction <add>, %117, %cst_50 [1] : vector<16x32xf32> to vector<16xf32>
    %121 = vector.shape_cast %120 : vector<16xf32> to vector<16x1xf32>
    %cst_51 = arith.constant 3.200000e+01 : f32
    %122 = vector.broadcast %cst_51 : f32 to vector<16x1xf32>
    %123 = arith.divf %121, %122 : vector<16x1xf32>
    %124 = vector.broadcast %123 : vector<16x1xf32> to vector<16x32xf32>
    %125 = arith.subf %117, %124 : vector<16x32xf32>
    %126 = arith.mulf %125, %125 : vector<16x32xf32>
    %cst_52 = arith.constant dense<0.000000e+00> : vector<16xf32>
    %127 = vector.multi_reduction <add>, %126, %cst_52 [1] : vector<16x32xf32> to vector<16xf32>
    %128 = vector.shape_cast %127 : vector<16xf32> to vector<16x1xf32>
    %cst_53 = arith.constant 3.200000e+01 : f32
    %129 = vector.broadcast %cst_53 : f32 to vector<16x1xf32>
    %130 = arith.divf %128, %129 : vector<16x1xf32>
    %131 = vector.broadcast %123 : vector<16x1xf32> to vector<16x32xf32>
    %132 = arith.subf %117, %131 : vector<16x32xf32>
    %cst_54 = arith.constant 9.99999996E-13 : f32
    %133 = vector.broadcast %cst_54 : f32 to vector<16x1xf32>
    %134 = arith.addf %130, %133 : vector<16x1xf32>
    %135 = math.rsqrt %134 : vector<16x1xf32>
    %136 = vector.broadcast %135 : vector<16x1xf32> to vector<16x32xf32>
    %137 = arith.mulf %132, %136 : vector<16x32xf32>
    %138 = vector.broadcast %118 : vector<1x32xf32> to vector<16x32xf32>
    %139 = arith.mulf %137, %138 : vector<16x32xf32>
    %140 = vector.broadcast %119 : vector<1x32xf32> to vector<16x32xf32>
    %141 = arith.addf %139, %140 : vector<16x32xf32>
    %c0_55 = arith.constant 0 : index
    %c0_56 = arith.constant 0 : index
    %142 = vector.load %arg6[%c0_55, %c0_56] : memref<64x64xbf16, #tpu.memory_space<vmem>>, vector<32x64xbf16>
    %c64_57 = arith.constant 64 : index
    %c0_58 = arith.constant 0 : index
    %143 = vector.load %arg5[%c64_57, %c0_58] : memref<192x32xbf16, #tpu.memory_space<vmem>>, vector<64x32xbf16>
    %144 = arith.truncf %141 : vector<16x32xf32> to vector<16x32xbf16>
    %cst_59 = arith.constant dense<0.000000e+00> : vector<16x64xf32>
    %145 = tpu.matmul %144, %142, %cst_59 {dimension_numbers = #tpu.dot_dimension_numbers<[1], [0], [0], [1], [0, 0, 1, 1], [], []>} : vector<16x32xbf16>, vector<32x64xbf16>, vector<16x64xf32> -> vector<16x64xf32>
    %c24 = arith.constant 24 : index
    %c0_60 = arith.constant 0 : index
    %146 = vector.load %arg8[%c24, %c0_60] : memref<32x128xf32, #tpu.memory_space<vmem>>, vector<1x64xf32>
    %147 = vector.broadcast %146 : vector<1x64xf32> to vector<16x64xf32>
    %148 = arith.addf %145, %147 : vector<16x64xf32>
    %cst_61 = arith.constant 5.000000e-01 : f32
    %149 = vector.broadcast %cst_61 : f32 to vector<16x64xf32>
    %150 = arith.mulf %149, %148 : vector<16x64xf32>
    %cst_62 = arith.constant 4.471500e-02 : f32
    %151 = vector.broadcast %cst_62 : f32 to vector<16x64xf32>
    %152 = arith.mulf %151, %148 : vector<16x64xf32>
    %153 = arith.mulf %152, %148 : vector<16x64xf32>
    %154 = arith.mulf %153, %148 : vector<16x64xf32>
    %155 = arith.addf %148, %154 : vector<16x64xf32>
    %cst_63 = arith.constant 0.797884583 : f32
    %156 = vector.broadcast %cst_63 : f32 to vector<16x64xf32>
    %157 = arith.mulf %156, %155 : vector<16x64xf32>
    %158 = math.tanh %157 : vector<16x64xf32>
    %cst_64 = arith.constant 1.000000e+00 : f32
    %159 = vector.broadcast %cst_64 : f32 to vector<16x64xf32>
    %160 = arith.addf %159, %158 : vector<16x64xf32>
    %161 = arith.mulf %150, %160 : vector<16x64xf32>
    %162 = arith.truncf %161 : vector<16x64xf32> to vector<16x64xbf16>
    %cst_65 = arith.constant dense<0.000000e+00> : vector<16x32xf32>
    %163 = tpu.matmul %162, %143, %cst_65 {dimension_numbers = #tpu.dot_dimension_numbers<[1], [0], [0], [1], [0, 0, 1, 1], [], []>} : vector<16x64xbf16>, vector<64x32xbf16>, vector<16x32xf32> -> vector<16x32xf32>
    %c26 = arith.constant 26 : index
    %c0_66 = arith.constant 0 : index
    %164 = vector.load %arg8[%c26, %c0_66] : memref<32x128xf32, #tpu.memory_space<vmem>>, vector<1x32xf32>
    %165 = vector.broadcast %164 : vector<1x32xf32> to vector<16x32xf32>
    %166 = arith.addf %163, %165 : vector<16x32xf32>
    %167 = arith.addf %141, %166 : vector<16x32xf32>
    %c2 = arith.constant 2 : index
    %c0_67 = arith.constant 0 : index
    %168 = vector.load %arg8[%c2, %c0_67] : memref<32x128xf32, #tpu.memory_space<vmem>>, vector<1x32xf32>
    %c7 = arith.constant 7 : index
    %c0_68 = arith.constant 0 : index
    %169 = vector.load %arg8[%c7, %c0_68] : memref<32x128xf32, #tpu.memory_space<vmem>>, vector<1x32xf32>
    %cst_69 = arith.constant dense<0.000000e+00> : vector<16xf32>
    %170 = vector.multi_reduction <add>, %167, %cst_69 [1] : vector<16x32xf32> to vector<16xf32>
    %171 = vector.shape_cast %170 : vector<16xf32> to vector<16x1xf32>
    %cst_70 = arith.constant 3.200000e+01 : f32
    %172 = vector.broadcast %cst_70 : f32 to vector<16x1xf32>
    %173 = arith.divf %171, %172 : vector<16x1xf32>
    %174 = vector.broadcast %173 : vector<16x1xf32> to vector<16x32xf32>
    %175 = arith.subf %167, %174 : vector<16x32xf32>
    %176 = arith.mulf %175, %175 : vector<16x32xf32>
    %cst_71 = arith.constant dense<0.000000e+00> : vector<16xf32>
    %177 = vector.multi_reduction <add>, %176, %cst_71 [1] : vector<16x32xf32> to vector<16xf32>
    %178 = vector.shape_cast %177 : vector<16xf32> to vector<16x1xf32>
    %cst_72 = arith.constant 3.200000e+01 : f32
    %179 = vector.broadcast %cst_72 : f32 to vector<16x1xf32>
    %180 = arith.divf %178, %179 : vector<16x1xf32>
    %181 = vector.broadcast %173 : vector<16x1xf32> to vector<16x32xf32>
    %182 = arith.subf %167, %181 : vector<16x32xf32>
    %cst_73 = arith.constant 9.99999996E-13 : f32
    %183 = vector.broadcast %cst_73 : f32 to vector<16x1xf32>
    %184 = arith.addf %180, %183 : vector<16x1xf32>
    %185 = math.rsqrt %184 : vector<16x1xf32>
    %186 = vector.broadcast %185 : vector<16x1xf32> to vector<16x32xf32>
    %187 = arith.mulf %182, %186 : vector<16x32xf32>
    %188 = vector.broadcast %168 : vector<1x32xf32> to vector<16x32xf32>
    %189 = arith.mulf %187, %188 : vector<16x32xf32>
    %190 = vector.broadcast %169 : vector<1x32xf32> to vector<16x32xf32>
    %191 = arith.addf %189, %190 : vector<16x32xf32>
    %c0_74 = arith.constant 0 : index
    %c0_75 = arith.constant 0 : index
    %c0_76 = arith.constant 0 : index
    %192 = vector.load %arg3[%c0_74, %c0_75, %c0_76] : memref<2x8x32xf32, #tpu.memory_space<vmem>>, vector<2x8x32xf32>
    %193 = vector.shape_cast %192 : vector<2x8x32xf32> to vector<16x32xf32>
    %194 = arith.addf %191, %193 : vector<16x32xf32>
    %195 = vector.shape_cast %194 : vector<16x32xf32> to vector<2x8x32xf32>
    %196 = vector.extract_strided_slice %195 {offsets = [0, 0, 0], sizes = [2, 1, 32], strides = [1, 1, 1]} : vector<2x8x32xf32> to vector<2x1x32xf32>
    %197 = vector.shape_cast %196 : vector<2x1x32xf32> to vector<2x32xf32>
    %198 = arith.truncf %197 : vector<2x32xf32> to vector<2x32xbf16>
    %199 = arith.truncf %194 : vector<16x32xf32> to vector<16x32xbf16>
    %cst_77 = arith.constant 0.000000e+00 : f32
    %200 = vector.broadcast %cst_77 : f32 to vector<2x32xf32>
    %c192 = arith.constant 192 : index
    %c0_78 = arith.constant 0 : index
    %201 = vector.load %arg4[%c192, %c0_78] : memref<384x16xbf16, #tpu.memory_space<vmem>>, vector<32x16xbf16>
    %cst_79 = arith.constant dense<0.000000e+00> : vector<2x16xf32>
    %202 = tpu.matmul %198, %201, %cst_79 {dimension_numbers = #tpu.dot_dimension_numbers<[1], [0], [0], [1], [0, 0, 1, 1], [], []>} : vector<2x32xbf16>, vector<32x16xbf16>, vector<2x16xf32> -> vector<2x16xf32>
    %c16_80 = arith.constant 16 : index
    %c0_81 = arith.constant 0 : index
    %203 = vector.load %arg8[%c16_80, %c0_81] : memref<32x128xf32, #tpu.memory_space<vmem>>, vector<1x16xf32>
    %204 = vector.broadcast %203 : vector<1x16xf32> to vector<2x16xf32>
    %205 = arith.addf %202, %204 : vector<2x16xf32>
    %c256 = arith.constant 256 : index
    %c0_82 = arith.constant 0 : index
    %206 = vector.load %arg4[%c256, %c0_82] : memref<384x16xbf16, #tpu.memory_space<vmem>>, vector<32x16xbf16>
    %cst_83 = arith.constant dense<0.000000e+00> : vector<16x16xf32>
    %207 = tpu.matmul %199, %206, %cst_83 {dimension_numbers = #tpu.dot_dimension_numbers<[1], [0], [0], [1], [0, 0, 1, 1], [], []>} : vector<16x32xbf16>, vector<32x16xbf16>, vector<16x16xf32> -> vector<16x16xf32>
    %c18 = arith.constant 18 : index
    %c0_84 = arith.constant 0 : index
    %208 = vector.load %arg8[%c18, %c0_84] : memref<32x128xf32, #tpu.memory_space<vmem>>, vector<1x16xf32>
    %209 = vector.broadcast %208 : vector<1x16xf32> to vector<16x16xf32>
    %210 = arith.addf %207, %209 : vector<16x16xf32>
    %c320 = arith.constant 320 : index
    %c0_85 = arith.constant 0 : index
    %211 = vector.load %arg4[%c320, %c0_85] : memref<384x16xbf16, #tpu.memory_space<vmem>>, vector<32x16xbf16>
    %cst_86 = arith.constant dense<0.000000e+00> : vector<16x16xf32>
    %212 = tpu.matmul %199, %211, %cst_86 {dimension_numbers = #tpu.dot_dimension_numbers<[1], [0], [0], [1], [0, 0, 1, 1], [], []>} : vector<16x32xbf16>, vector<32x16xbf16>, vector<16x16xf32> -> vector<16x16xf32>
    %c20 = arith.constant 20 : index
    %c0_87 = arith.constant 0 : index
    %213 = vector.load %arg8[%c20, %c0_87] : memref<32x128xf32, #tpu.memory_space<vmem>>, vector<1x16xf32>
    %214 = vector.broadcast %213 : vector<1x16xf32> to vector<16x16xf32>
    %215 = arith.addf %212, %214 : vector<16x16xf32>
    %216 = vector.shape_cast %205 : vector<2x16xf32> to vector<2x1x16xf32>
    %217 = arith.truncf %216 : vector<2x1x16xf32> to vector<2x1x16xbf16>
    %218 = vector.shape_cast %210 : vector<16x16xf32> to vector<2x8x16xf32>
    %219 = arith.truncf %218 : vector<2x8x16xf32> to vector<2x8x16xbf16>
    %220 = vector.shape_cast %215 : vector<16x16xf32> to vector<2x8x16xf32>
    %221 = arith.truncf %220 : vector<2x8x16xf32> to vector<2x8x16xbf16>
    %cst_88 = arith.constant dense<0.000000e+00> : vector<2x1x8xf32>
    %222 = tpu.matmul %217, %219, %cst_88 {dimension_numbers = #tpu.dot_dimension_numbers<[2], [2], [1], [1], [0, 0, 0, 1, 1, 1], [0], [0]>} : vector<2x1x16xbf16>, vector<2x8x16xbf16>, vector<2x1x8xf32> -> vector<2x1x8xf32>
    %cst_89 = arith.constant 2.500000e-01 : f32
    %223 = vector.broadcast %cst_89 : f32 to vector<2x1x8xf32>
    %224 = arith.mulf %222, %223 : vector<2x1x8xf32>
    %225 = arith.addf %224, %0 : vector<2x1x8xf32>
    %cst_90 = arith.constant dense<0xFF800000> : vector<2x1xf32>
    %226 = vector.multi_reduction <maximumf>, %225, %cst_90 [2] : vector<2x1x8xf32> to vector<2x1xf32>
    %227 = vector.shape_cast %226 : vector<2x1xf32> to vector<2x1x1xf32>
    %228 = vector.broadcast %227 : vector<2x1x1xf32> to vector<2x1x8xf32>
    %229 = arith.subf %225, %228 : vector<2x1x8xf32>
    %230 = math.exp %229 : vector<2x1x8xf32>
    %cst_91 = arith.constant dense<0.000000e+00> : vector<2x1xf32>
    %231 = vector.multi_reduction <add>, %230, %cst_91 [2] : vector<2x1x8xf32> to vector<2x1xf32>
    %232 = vector.shape_cast %231 : vector<2x1xf32> to vector<2x1x1xf32>
    %233 = vector.broadcast %232 : vector<2x1x1xf32> to vector<2x1x8xf32>
    %234 = arith.divf %230, %233 : vector<2x1x8xf32>
    %235 = arith.truncf %234 : vector<2x1x8xf32> to vector<2x1x8xbf16>
    %cst_92 = arith.constant dense<0.000000e+00> : vector<2x1x16xf32>
    %236 = tpu.matmul %235, %221, %cst_92 {dimension_numbers = #tpu.dot_dimension_numbers<[2], [1], [1], [2], [0, 0, 0, 1, 1, 2], [0], [0]>} : vector<2x1x8xbf16>, vector<2x8x16xbf16>, vector<2x1x16xf32> -> vector<2x1x16xf32>
    %237 = vector.shape_cast %236 : vector<2x1x16xf32> to vector<2x16xf32>
    %238 = arith.truncf %237 : vector<2x16xf32> to vector<2x16xbf16>
    %c32_93 = arith.constant 32 : index
    %c0_94 = arith.constant 0 : index
    %239 = vector.load %arg5[%c32_93, %c0_94] : memref<192x32xbf16, #tpu.memory_space<vmem>>, vector<16x32xbf16>
    %cst_95 = arith.constant dense<0.000000e+00> : vector<2x32xf32>
    %240 = tpu.matmul %238, %239, %cst_95 {dimension_numbers = #tpu.dot_dimension_numbers<[1], [0], [0], [1], [0, 0, 1, 1], [], []>} : vector<2x16xbf16>, vector<16x32xbf16>, vector<2x32xf32> -> vector<2x32xf32>
    %241 = arith.addf %200, %240 : vector<2x32xf32>
    %c224 = arith.constant 224 : index
    %c0_96 = arith.constant 0 : index
    %242 = vector.load %arg4[%c224, %c0_96] : memref<384x16xbf16, #tpu.memory_space<vmem>>, vector<32x16xbf16>
    %cst_97 = arith.constant dense<0.000000e+00> : vector<2x16xf32>
    %243 = tpu.matmul %198, %242, %cst_97 {dimension_numbers = #tpu.dot_dimension_numbers<[1], [0], [0], [1], [0, 0, 1, 1], [], []>} : vector<2x32xbf16>, vector<32x16xbf16>, vector<2x16xf32> -> vector<2x16xf32>
    %c17 = arith.constant 17 : index
    %c0_98 = arith.constant 0 : index
    %244 = vector.load %arg8[%c17, %c0_98] : memref<32x128xf32, #tpu.memory_space<vmem>>, vector<1x16xf32>
    %245 = vector.broadcast %244 : vector<1x16xf32> to vector<2x16xf32>
    %246 = arith.addf %243, %245 : vector<2x16xf32>
    %c288 = arith.constant 288 : index
    %c0_99 = arith.constant 0 : index
    %247 = vector.load %arg4[%c288, %c0_99] : memref<384x16xbf16, #tpu.memory_space<vmem>>, vector<32x16xbf16>
    %cst_100 = arith.constant dense<0.000000e+00> : vector<16x16xf32>
    %248 = tpu.matmul %199, %247, %cst_100 {dimension_numbers = #tpu.dot_dimension_numbers<[1], [0], [0], [1], [0, 0, 1, 1], [], []>} : vector<16x32xbf16>, vector<32x16xbf16>, vector<16x16xf32> -> vector<16x16xf32>
    %c19 = arith.constant 19 : index
    %c0_101 = arith.constant 0 : index
    %249 = vector.load %arg8[%c19, %c0_101] : memref<32x128xf32, #tpu.memory_space<vmem>>, vector<1x16xf32>
    %250 = vector.broadcast %249 : vector<1x16xf32> to vector<16x16xf32>
    %251 = arith.addf %248, %250 : vector<16x16xf32>
    %c352 = arith.constant 352 : index
    %c0_102 = arith.constant 0 : index
    %252 = vector.load %arg4[%c352, %c0_102] : memref<384x16xbf16, #tpu.memory_space<vmem>>, vector<32x16xbf16>
    %cst_103 = arith.constant dense<0.000000e+00> : vector<16x16xf32>
    %253 = tpu.matmul %199, %252, %cst_103 {dimension_numbers = #tpu.dot_dimension_numbers<[1], [0], [0], [1], [0, 0, 1, 1], [], []>} : vector<16x32xbf16>, vector<32x16xbf16>, vector<16x16xf32> -> vector<16x16xf32>
    %c21 = arith.constant 21 : index
    %c0_104 = arith.constant 0 : index
    %254 = vector.load %arg8[%c21, %c0_104] : memref<32x128xf32, #tpu.memory_space<vmem>>, vector<1x16xf32>
    %255 = vector.broadcast %254 : vector<1x16xf32> to vector<16x16xf32>
    %256 = arith.addf %253, %255 : vector<16x16xf32>
    %257 = vector.shape_cast %246 : vector<2x16xf32> to vector<2x1x16xf32>
    %258 = arith.truncf %257 : vector<2x1x16xf32> to vector<2x1x16xbf16>
    %259 = vector.shape_cast %251 : vector<16x16xf32> to vector<2x8x16xf32>
    %260 = arith.truncf %259 : vector<2x8x16xf32> to vector<2x8x16xbf16>
    %261 = vector.shape_cast %256 : vector<16x16xf32> to vector<2x8x16xf32>
    %262 = arith.truncf %261 : vector<2x8x16xf32> to vector<2x8x16xbf16>
    %cst_105 = arith.constant dense<0.000000e+00> : vector<2x1x8xf32>
    %263 = tpu.matmul %258, %260, %cst_105 {dimension_numbers = #tpu.dot_dimension_numbers<[2], [2], [1], [1], [0, 0, 0, 1, 1, 1], [0], [0]>} : vector<2x1x16xbf16>, vector<2x8x16xbf16>, vector<2x1x8xf32> -> vector<2x1x8xf32>
    %cst_106 = arith.constant 2.500000e-01 : f32
    %264 = vector.broadcast %cst_106 : f32 to vector<2x1x8xf32>
    %265 = arith.mulf %263, %264 : vector<2x1x8xf32>
    %266 = arith.addf %265, %0 : vector<2x1x8xf32>
    %cst_107 = arith.constant dense<0xFF800000> : vector<2x1xf32>
    %267 = vector.multi_reduction <maximumf>, %266, %cst_107 [2] : vector<2x1x8xf32> to vector<2x1xf32>
    %268 = vector.shape_cast %267 : vector<2x1xf32> to vector<2x1x1xf32>
    %269 = vector.broadcast %268 : vector<2x1x1xf32> to vector<2x1x8xf32>
    %270 = arith.subf %266, %269 : vector<2x1x8xf32>
    %271 = math.exp %270 : vector<2x1x8xf32>
    %cst_108 = arith.constant dense<0.000000e+00> : vector<2x1xf32>
    %272 = vector.multi_reduction <add>, %271, %cst_108 [2] : vector<2x1x8xf32> to vector<2x1xf32>
    %273 = vector.shape_cast %272 : vector<2x1xf32> to vector<2x1x1xf32>
    %274 = vector.broadcast %273 : vector<2x1x1xf32> to vector<2x1x8xf32>
    %275 = arith.divf %271, %274 : vector<2x1x8xf32>
    %276 = arith.truncf %275 : vector<2x1x8xf32> to vector<2x1x8xbf16>
    %cst_109 = arith.constant dense<0.000000e+00> : vector<2x1x16xf32>
    %277 = tpu.matmul %276, %262, %cst_109 {dimension_numbers = #tpu.dot_dimension_numbers<[2], [1], [1], [2], [0, 0, 0, 1, 1, 2], [0], [0]>} : vector<2x1x8xbf16>, vector<2x8x16xbf16>, vector<2x1x16xf32> -> vector<2x1x16xf32>
    %278 = vector.shape_cast %277 : vector<2x1x16xf32> to vector<2x16xf32>
    %279 = arith.truncf %278 : vector<2x16xf32> to vector<2x16xbf16>
    %c48 = arith.constant 48 : index
    %c0_110 = arith.constant 0 : index
    %280 = vector.load %arg5[%c48, %c0_110] : memref<192x32xbf16, #tpu.memory_space<vmem>>, vector<16x32xbf16>
    %cst_111 = arith.constant dense<0.000000e+00> : vector<2x32xf32>
    %281 = tpu.matmul %279, %280, %cst_111 {dimension_numbers = #tpu.dot_dimension_numbers<[1], [0], [0], [1], [0, 0, 1, 1], [], []>} : vector<2x16xbf16>, vector<16x32xbf16>, vector<2x32xf32> -> vector<2x32xf32>
    %282 = arith.addf %241, %281 : vector<2x32xf32>
    %c23 = arith.constant 23 : index
    %c0_112 = arith.constant 0 : index
    %283 = vector.load %arg8[%c23, %c0_112] : memref<32x128xf32, #tpu.memory_space<vmem>>, vector<1x32xf32>
    %284 = vector.broadcast %283 : vector<1x32xf32> to vector<2x32xf32>
    %285 = arith.addf %282, %284 : vector<2x32xf32>
    %286 = arith.addf %197, %285 : vector<2x32xf32>
    %c3 = arith.constant 3 : index
    %c0_113 = arith.constant 0 : index
    %287 = vector.load %arg8[%c3, %c0_113] : memref<32x128xf32, #tpu.memory_space<vmem>>, vector<1x32xf32>
    %c8 = arith.constant 8 : index
    %c0_114 = arith.constant 0 : index
    %288 = vector.load %arg8[%c8, %c0_114] : memref<32x128xf32, #tpu.memory_space<vmem>>, vector<1x32xf32>
    %cst_115 = arith.constant dense<0.000000e+00> : vector<2xf32>
    %289 = vector.multi_reduction <add>, %286, %cst_115 [1] : vector<2x32xf32> to vector<2xf32>
    %290 = vector.shape_cast %289 : vector<2xf32> to vector<2x1xf32>
    %cst_116 = arith.constant 3.200000e+01 : f32
    %291 = vector.broadcast %cst_116 : f32 to vector<2x1xf32>
    %292 = arith.divf %290, %291 : vector<2x1xf32>
    %293 = vector.broadcast %292 : vector<2x1xf32> to vector<2x32xf32>
    %294 = arith.subf %286, %293 : vector<2x32xf32>
    %295 = arith.mulf %294, %294 : vector<2x32xf32>
    %cst_117 = arith.constant dense<0.000000e+00> : vector<2xf32>
    %296 = vector.multi_reduction <add>, %295, %cst_117 [1] : vector<2x32xf32> to vector<2xf32>
    %297 = vector.shape_cast %296 : vector<2xf32> to vector<2x1xf32>
    %cst_118 = arith.constant 3.200000e+01 : f32
    %298 = vector.broadcast %cst_118 : f32 to vector<2x1xf32>
    %299 = arith.divf %297, %298 : vector<2x1xf32>
    %300 = vector.broadcast %292 : vector<2x1xf32> to vector<2x32xf32>
    %301 = arith.subf %286, %300 : vector<2x32xf32>
    %cst_119 = arith.constant 9.99999996E-13 : f32
    %302 = vector.broadcast %cst_119 : f32 to vector<2x1xf32>
    %303 = arith.addf %299, %302 : vector<2x1xf32>
    %304 = math.rsqrt %303 : vector<2x1xf32>
    %305 = vector.broadcast %304 : vector<2x1xf32> to vector<2x32xf32>
    %306 = arith.mulf %301, %305 : vector<2x32xf32>
    %307 = vector.broadcast %287 : vector<1x32xf32> to vector<2x32xf32>
    %308 = arith.mulf %306, %307 : vector<2x32xf32>
    %309 = vector.broadcast %288 : vector<1x32xf32> to vector<2x32xf32>
    %310 = arith.addf %308, %309 : vector<2x32xf32>
    %c32_120 = arith.constant 32 : index
    %c0_121 = arith.constant 0 : index
    %311 = vector.load %arg6[%c32_120, %c0_121] : memref<64x64xbf16, #tpu.memory_space<vmem>>, vector<32x64xbf16>
    %c128_122 = arith.constant 128 : index
    %c0_123 = arith.constant 0 : index
    %312 = vector.load %arg5[%c128_122, %c0_123] : memref<192x32xbf16, #tpu.memory_space<vmem>>, vector<64x32xbf16>
    %313 = arith.truncf %310 : vector<2x32xf32> to vector<2x32xbf16>
    %cst_124 = arith.constant dense<0.000000e+00> : vector<2x64xf32>
    %314 = tpu.matmul %313, %311, %cst_124 {dimension_numbers = #tpu.dot_dimension_numbers<[1], [0], [0], [1], [0, 0, 1, 1], [], []>} : vector<2x32xbf16>, vector<32x64xbf16>, vector<2x64xf32> -> vector<2x64xf32>
    %c25 = arith.constant 25 : index
    %c0_125 = arith.constant 0 : index
    %315 = vector.load %arg8[%c25, %c0_125] : memref<32x128xf32, #tpu.memory_space<vmem>>, vector<1x64xf32>
    %316 = vector.broadcast %315 : vector<1x64xf32> to vector<2x64xf32>
    %317 = arith.addf %314, %316 : vector<2x64xf32>
    %cst_126 = arith.constant 5.000000e-01 : f32
    %318 = vector.broadcast %cst_126 : f32 to vector<2x64xf32>
    %319 = arith.mulf %318, %317 : vector<2x64xf32>
    %cst_127 = arith.constant 4.471500e-02 : f32
    %320 = vector.broadcast %cst_127 : f32 to vector<2x64xf32>
    %321 = arith.mulf %320, %317 : vector<2x64xf32>
    %322 = arith.mulf %321, %317 : vector<2x64xf32>
    %323 = arith.mulf %322, %317 : vector<2x64xf32>
    %324 = arith.addf %317, %323 : vector<2x64xf32>
    %cst_128 = arith.constant 0.797884583 : f32
    %325 = vector.broadcast %cst_128 : f32 to vector<2x64xf32>
    %326 = arith.mulf %325, %324 : vector<2x64xf32>
    %327 = math.tanh %326 : vector<2x64xf32>
    %cst_129 = arith.constant 1.000000e+00 : f32
    %328 = vector.broadcast %cst_129 : f32 to vector<2x64xf32>
    %329 = arith.addf %328, %327 : vector<2x64xf32>
    %330 = arith.mulf %319, %329 : vector<2x64xf32>
    %331 = arith.truncf %330 : vector<2x64xf32> to vector<2x64xbf16>
    %cst_130 = arith.constant dense<0.000000e+00> : vector<2x32xf32>
    %332 = tpu.matmul %331, %312, %cst_130 {dimension_numbers = #tpu.dot_dimension_numbers<[1], [0], [0], [1], [0, 0, 1, 1], [], []>} : vector<2x64xbf16>, vector<64x32xbf16>, vector<2x32xf32> -> vector<2x32xf32>
    %c27 = arith.constant 27 : index
    %c0_131 = arith.constant 0 : index
    %333 = vector.load %arg8[%c27, %c0_131] : memref<32x128xf32, #tpu.memory_space<vmem>>, vector<1x32xf32>
    %334 = vector.broadcast %333 : vector<1x32xf32> to vector<2x32xf32>
    %335 = arith.addf %332, %334 : vector<2x32xf32>
    %336 = arith.addf %310, %335 : vector<2x32xf32>
    %c4 = arith.constant 4 : index
    %c0_132 = arith.constant 0 : index
    %337 = vector.load %arg8[%c4, %c0_132] : memref<32x128xf32, #tpu.memory_space<vmem>>, vector<1x32xf32>
    %c9 = arith.constant 9 : index
    %c0_133 = arith.constant 0 : index
    %338 = vector.load %arg8[%c9, %c0_133] : memref<32x128xf32, #tpu.memory_space<vmem>>, vector<1x32xf32>
    %cst_134 = arith.constant dense<0.000000e+00> : vector<2xf32>
    %339 = vector.multi_reduction <add>, %336, %cst_134 [1] : vector<2x32xf32> to vector<2xf32>
    %340 = vector.shape_cast %339 : vector<2xf32> to vector<2x1xf32>
    %cst_135 = arith.constant 3.200000e+01 : f32
    %341 = vector.broadcast %cst_135 : f32 to vector<2x1xf32>
    %342 = arith.divf %340, %341 : vector<2x1xf32>
    %343 = vector.broadcast %342 : vector<2x1xf32> to vector<2x32xf32>
    %344 = arith.subf %336, %343 : vector<2x32xf32>
    %345 = arith.mulf %344, %344 : vector<2x32xf32>
    %cst_136 = arith.constant dense<0.000000e+00> : vector<2xf32>
    %346 = vector.multi_reduction <add>, %345, %cst_136 [1] : vector<2x32xf32> to vector<2xf32>
    %347 = vector.shape_cast %346 : vector<2xf32> to vector<2x1xf32>
    %cst_137 = arith.constant 3.200000e+01 : f32
    %348 = vector.broadcast %cst_137 : f32 to vector<2x1xf32>
    %349 = arith.divf %347, %348 : vector<2x1xf32>
    %350 = vector.broadcast %342 : vector<2x1xf32> to vector<2x32xf32>
    %351 = arith.subf %336, %350 : vector<2x32xf32>
    %cst_138 = arith.constant 9.99999996E-13 : f32
    %352 = vector.broadcast %cst_138 : f32 to vector<2x1xf32>
    %353 = arith.addf %349, %352 : vector<2x1xf32>
    %354 = math.rsqrt %353 : vector<2x1xf32>
    %355 = vector.broadcast %354 : vector<2x1xf32> to vector<2x32xf32>
    %356 = arith.mulf %351, %355 : vector<2x32xf32>
    %357 = vector.broadcast %337 : vector<1x32xf32> to vector<2x32xf32>
    %358 = arith.mulf %356, %357 : vector<2x32xf32>
    %359 = vector.broadcast %338 : vector<1x32xf32> to vector<2x32xf32>
    %360 = arith.addf %358, %359 : vector<2x32xf32>
    %361 = arith.truncf %360 : vector<2x32xf32> to vector<2x32xbf16>
    %c0_139 = arith.constant 0 : index
    %c0_140 = arith.constant 0 : index
    %362 = vector.load %arg7[%c0_139, %c0_140] : memref<32x128xbf16, #tpu.memory_space<vmem>>, vector<32x128xbf16>
    %cst_141 = arith.constant dense<0.000000e+00> : vector<2x128xf32>
    %363 = tpu.matmul %361, %362, %cst_141 {dimension_numbers = #tpu.dot_dimension_numbers<[1], [0], [0], [1], [0, 0, 1, 1], [], []>} : vector<2x32xbf16>, vector<32x128xbf16>, vector<2x128xf32> -> vector<2x128xf32>
    %c28 = arith.constant 28 : index
    %c0_142 = arith.constant 0 : index
    %364 = vector.load %arg8[%c28, %c0_142] : memref<32x128xf32, #tpu.memory_space<vmem>>, vector<1x128xf32>
    %365 = vector.broadcast %364 : vector<1x128xf32> to vector<2x128xf32>
    %366 = arith.addf %363, %365 : vector<2x128xf32>
    %c0_143 = arith.constant 0 : index
    %c0_144 = arith.constant 0 : index
    %367 = vector.load %arg9[%c0_143, %c0_144] : memref<2x128xf32, #tpu.memory_space<vmem>>, vector<2x128xf32>
    tpu.vector_store %arg9[%c0_143, %c0_144], %366 {strides = array<i32>} : memref<2x128xf32, #tpu.memory_space<vmem>>, vector<2x128xf32>,
    return
  }
  func.func @transform_0(%arg0: i32) -> (i32, i32, i32) {
    %c0_i32 = arith.constant 0 : i32
    %c0_i32_0 = arith.constant 0 : i32
    %c0_i32_1 = arith.constant 0 : i32
    return %arg0, %c0_i32, %c0_i32_0 : i32, i32, i32
  }
  func.func @transform_1(%arg0: i32) -> (i32, i32, i32) {
    %c0_i32 = arith.constant 0 : i32
    %c0_i32_0 = arith.constant 0 : i32
    %c0_i32_1 = arith.constant 0 : i32
    return %arg0, %c0_i32, %c0_i32_0 : i32, i32, i32
  }
  func.func @transform_2(%arg0: i32) -> (i32, i32, i32) {
    %c0_i32 = arith.constant 0 : i32
    %c0_i32_0 = arith.constant 0 : i32
    %c0_i32_1 = arith.constant 0 : i32
    return %arg0, %c0_i32, %c0_i32_0 : i32, i32, i32
  }
  func.func @transform_3(%arg0: i32) -> (i32, i32) {
    %c0_i32 = arith.constant 0 : i32
    %c0_i32_0 = arith.constant 0 : i32
    %c0_i32_1 = arith.constant 0 : i32
    return %c0_i32, %c0_i32_0 : i32, i32
  }
  func.func @transform_4(%arg0: i32) -> (i32, i32) {
    %c0_i32 = arith.constant 0 : i32
    %c0_i32_0 = arith.constant 0 : i32
    %c0_i32_1 = arith.constant 0 : i32
    return %c0_i32, %c0_i32_0 : i32, i32
  }
  func.func @transform_5(%arg0: i32) -> (i32, i32) {
    %c0_i32 = arith.constant 0 : i32
    %c0_i32_0 = arith.constant 0 : i32
    %c0_i32_1 = arith.constant 0 : i32
    return %c0_i32, %c0_i32_0 : i32, i32
  }
  func.func @transform_6(%arg0: i32) -> (i32, i32) {
    %c0_i32 = arith.constant 0 : i32
    %c0_i32_0 = arith.constant 0 : i32
    %c0_i32_1 = arith.constant 0 : i32
    return %c0_i32, %c0_i32_0 : i32, i32
  }
  func.func @transform_7(%arg0: i32) -> (i32, i32) {
    %c0_i32 = arith.constant 0 : i32
    %c0_i32_0 = arith.constant 0 : i32
    %c0_i32_1 = arith.constant 0 : i32
    return %c0_i32, %c0_i32_0 : i32, i32
  }
  func.func @transform_8(%arg0: i32) -> (i32, i32) {
    %c0_i32 = arith.constant 0 : i32
    %c0_i32_0 = arith.constant 0 : i32
    return %arg0, %c0_i32 : i32, i32
  }
}

</mosaic_0001>

<llo_original>
// kernel: forward.1
$region0: #{forward.1}
  #allocation0 [shape = 'u32[]', space=smem, size = 0x4, offset = 0x4, fixed_abs, tag = 'smem constant byte address 0x4 - core index']
  #allocation1 [shape = 'u32[144,128]{1,0:T(1,128)}', space=vmem, size = 0x12000, scoped, tag = 'internal scratch']
  %s0 = inlined_call_operand.vmem [shape: f32[2,8,32], index: 0, kind: input, shape index: {}]
  %s1 = inlined_call_operand.vmem [shape: f32[2,1,8], index: 1, kind: input, shape index: {}]
  %s2 = inlined_call_operand.vmem [shape: f32[2,8,32], index: 2, kind: input, shape index: {}]
  %s3 = inlined_call_operand.vmem [shape: bf16[384,16], index: 3, kind: input, shape index: {}]
  %s4 = inlined_call_operand.vmem [shape: bf16[192,32], index: 4, kind: input, shape index: {}]
  %s5 = inlined_call_operand.vmem [shape: bf16[64,64], index: 5, kind: input, shape index: {}]
  %s6 = inlined_call_operand.vmem [shape: bf16[32,128], index: 6, kind: input, shape index: {}]
  %s7 = inlined_call_operand.vmem [shape: f32[32,128], index: 7, kind: input, shape index: {}]
  %s8 = inlined_call_operand.hbm [shape: f32[2,128], index: 8, kind: output, shape index: {}]
  %s9 = sld [smem:[#allocation0]]
  $region42: #{forward.1} parent=0
    _
  %s11 = ssub.s32 1, %s9
  %s12 = scalar_select 0, %s11, %s9
  $region1: #{forward.1} parent=0
    #allocation2 [shape = 'u8[1024]{0}', space=vmem, size = 0x400, scoped, tag = 'output window, operand 0, single buffered']
    #allocation3 [shape = 's32[1]{0}', space=sflag, size = 0x4, scoped, tag = 'scoped memory for forward.1']
    %13 = vsyncpa [#allocation3], 0
    // Predicated region
    $region2: #{forward.1} parent=1 // pred_check
      _
    $region3: #{forward.1} parent=1 // pred_check_branch
      %15 = sbr.rel (0) target = $region5
    $region4: #{forward.1} parent=1 // pred_region
      _
    $region5: #{forward.1} parent=1 // pred_fallthru
      _
    // Predicated region
    $region6: #{forward.1} parent=1 // pred_check
      _
    $region7: #{forward.1} parent=1 // pred_check_branch
      %17 = sbr.rel (0) target = $region9
    $region8: #{forward.1} parent=1 // pred_region
      _
    $region9: #{forward.1} parent=1 // pred_fallthru
      _
    // Predicated region
    $region10: #{forward.1} parent=1 // pred_check
      _
    $region11: #{forward.1} parent=1 // pred_check_branch
      %19 = sbr.rel (0) target = $region13
    $region12: #{forward.1} parent=1 // pred_region
      _
    $region13: #{forward.1} parent=1 // pred_fallthru
      _
    // Predicated region
    $region14: #{forward.1} parent=1 // pred_check
      _
    $region15: #{forward.1} parent=1 // pred_check_branch
      %21 = sbr.rel (0) target = $region17
    $region16: #{forward.1} parent=1 // pred_region
      _
    $region17: #{forward.1} parent=1 // pred_fallthru
      _
    // Predicated region
    $region18: #{forward.1} parent=1 // pred_check
      _
    $region19: #{forward.1} parent=1 // pred_check_branch
      %23 = sbr.rel (0) target = $region21
    $region20: #{forward.1} parent=1 // pred_region
      _
    $region21: #{forward.1} parent=1 // pred_fallthru
      _
    // Predicated region
    $region22: #{forward.1} parent=1 // pred_check
      _
    $region23: #{forward.1} parent=1 // pred_check_branch
      %25 = sbr.rel (0) target = $region25
    $region24: #{forward.1} parent=1 // pred_region
      _
    $region25: #{forward.1} parent=1 // pred_fallthru
      _
    // Predicated region
    $region26: #{forward.1} parent=1 // pred_check
      _
    $region27: #{forward.1} parent=1 // pred_check_branch
      %27 = sbr.rel (0) target = $region29
    $region28: #{forward.1} parent=1 // pred_region
      _
    $region29: #{forward.1} parent=1 // pred_fallthru
      _
    // Predicated region
    $region30: #{forward.1} parent=1 // pred_check
      _
    $region31: #{forward.1} parent=1 // pred_check_branch
      %29 = sbr.rel (0) target = $region33
    $region32: #{forward.1} parent=1 // pred_region
      _
    $region33: #{forward.1} parent=1 // pred_fallthru
      _
    %v31 = vld [vmem:[%s1] sm:$0x1]
    %v32 = vld [vmem:[%s1 + $0x1] sm:$0x1]
    %v33 = vld [vmem:[%s0] sm:$0xff]
    %v34 = vld [vmem:[%s0 + $0x8] sm:$0xff]
    %v35 = vld [vmem:[%s7] sm:$0x1]
    %v36 = vld [vmem:[%s7 + $0x5] sm:$0x1]
    %vm37 = vcmask 261120
    %v38 = vsel %vm37, %v33, 0.0
    %39 = vadd.xlane.f32.xlu0 %v38
    %v40 = vpop.xlane.xlu0 %39
    %v41 = vsel %vm37, %v34, 0.0
    %42 = vadd.xlane.f32.xlu0 %v41
    %v43 = vpop.xlane.xlu0 %42
    %v44 = vrcp.pop 32.0
    %v45 = vmul.f32 %v40, %v44
    %v46 = vmul.f32 %v43, %v44
    %v47 = vsub.f32 %v33, %v45
    %v48 = vsub.f32 %v34, %v46
    %v49 = vmul.f32 %v47, %v47
    %v50 = vmul.f32 %v48, %v48
    %v51 = vsel %vm37, %v49, 0.0
    %52 = vadd.xlane.f32.xlu0 %v51
    %v53 = vpop.xlane.xlu0 %52
    %v54 = vsel %vm37, %v50, 0.0
    %55 = vadd.xlane.f32.xlu0 %v54
    %v56 = vpop.xlane.xlu0 %55
    %v57 = vmul.f32 %v53, %v44
    %v58 = vmul.f32 %v56, %v44
    %v59 = vadd.f32 %v57, 1e-12
    %v60 = vadd.f32 %v58, 1e-12
    %v61 = vrsqrt.pop %v59
    %v62 = vrsqrt.pop %v60
    %v63 = vmul.f32 %v47, %v61
    %v64 = vmul.f32 %v48, %v62
    %v65 = vlaneseq
    %v66 = vshrl.u32 %v65, 7
    %v67 = vsub.s32 0, %v66
    %v68 = vrot.slane %v35, %v67
    %v69 = vmul.f32 %v63, %v68
    %v70 = vmul.f32 %v64, %v68
    %v71 = vlaneseq
    %v72 = vshrl.u32 %v71, 7
    %v73 = vsub.s32 0, %v72
    %v74 = vrot.slane %v36, %v73
    %v75 = vadd.f32 %v69, %v74
    %v76 = vadd.f32 %v70, %v74
    %v77 = vpack.c.bf16 %v76, %v75
    %v78 = vld [vmem:[%s3] sm:$0xf]
    %v79 = vld [vmem:[%s3 + $0x4] sm:$0xf]
    %v80 = vld [vmem:[%s3 + $0x8] sm:$0xf]
    %v81 = vld [vmem:[%s3 + $0xc] sm:$0xf]
    %v82 = vld [vmem:[%s7 + $0xa] sm:$0x1]
    %v83 = vlaneseq
    %v84 = vshrl.u32 %v83, 7
    %v85 = vsub.s32 0, %v84
    %v86 = vrot.slane %v82, %v85
    %v91 = vunpack.c.l.b16 %v78
    %v92 = vunpack.c.l.b16 %v79
    %v93 = vunpack.c.l.b16 %v80
    %v94 = vunpack.c.l.b16 %v81
    %v95 = vpack.c.b16 %v92, %v91
    %v96 = vpack.c.b16 %v94, %v93
    %v100 = vsel %vm37, %v77, 0
    %102 = vmatprep.subr.bf16.mxu0 0
    %103 = vmatpush1.bf16.msra.mxu0 0
    %104 = vmatprep.subr.bf16.mxu0 0
    %105 = vmatpush1.bf16.msra.mxu0 0
    %106 = vmatprep.subr.bf16.mxu0 0
    %107 = vmatpush1.bf16.msra.mxu0 0
    %108 = vmatprep.subr.bf16.mxu0 0
    %109 = vmatpush1.bf16.msra.mxu0 0
    %110 = vmatprep.subr.bf16.mxu0 0
    %111 = vmatpush1.bf16.msra.mxu0 0
    %112 = vmatprep.subr.bf16.mxu0 0
    %113 = vmatpush1.bf16.msra.mxu0 0
    %114 = vmatprep.subr.bf16.mxu0 0
    %115 = vmatpush1.bf16.msra.mxu0 %v96
    %116 = vmatprep.subr.bf16.mxu0 0
    %117 = vmatpush1.bf16.msra.mxu0 %v95
    %118 = vmatprep.subr.bf16.mxu0 0
    %119 = vmatpush2.bf16.msra.mxu0 0
    %120 = vmatprep.subr.bf16.mxu0 0
    %121 = vmatpush2.bf16.msra.mxu0 0
    %122 = vmatprep.subr.bf16.mxu0 0
    %123 = vmatpush2.bf16.msra.mxu0 0
    %124 = vmatprep.subr.bf16.mxu0 0
    %125 = vmatpush2.bf16.msra.mxu0 0
    %126 = vmatprep.subr.bf16.mxu0 0
    %127 = vmatpush2.bf16.msra.mxu0 0
    %128 = vmatprep.subr.bf16.mxu0 0
    %129 = vmatpush2.bf16.msra.mxu0 0
    %130 = vmatprep.subr.bf16.mxu0 0
    %131 = vmatpush2.bf16.msra.mxu0 0
    %132 = vmatprep.subr.bf16.mxu0 0
    %133 = vmatpush2.bf16.msra.mxu0 0
    %134 = vmatprep.mubr.bf16.mxu0 0
    %135 = vmatmul.mubr.bf16.gmra.mxu0 %v100
    %v136 = vpop.f32.mrf.mxu0
    %v137 = vadd.f32 %v86, %v136
    %v138 = vpop.f32.mrf.mxu0
    %v139 = vpop.f32.mrf.mxu0
    %v140 = vadd.f32 %v86, %v139
    %v141 = vpop.f32.mrf.mxu0
    %142 = vdwg.mxu0
    %v143 = vld [vmem:[%s3 + $0x20] sm:$0xf]
    %v144 = vld [vmem:[%s3 + $0x24] sm:$0xf]
    %v145 = vld [vmem:[%s3 + $0x28] sm:$0xf]
    %v146 = vld [vmem:[%s3 + $0x2c] sm:$0xf]
    %v147 = vld [vmem:[%s7 + $0xc] sm:$0x1]
    %v148 = vlaneseq
    %v149 = vshrl.u32 %v148, 7
    %v150 = vsub.s32 0, %v149
    %v151 = vrot.slane %v147, %v150
    %v156 = vunpack.c.l.b16 %v143
    %v157 = vunpack.c.l.b16 %v144
    %v158 = vunpack.c.l.b16 %v145
    %v159 = vunpack.c.l.b16 %v146
    %v160 = vpack.c.b16 %v157, %v156
    %v161 = vpack.c.b16 %v159, %v158
    %164 = vmatprep.subr.bf16.mxu0 0
    %165 = vmatpush1.bf16.msra.mxu0 0
    %166 = vmatprep.subr.bf16.mxu0 0
    %167 = vmatpush1.bf16.msra.mxu0 0
    %168 = vmatprep.subr.bf16.mxu0 0
    %169 = vmatpush1.bf16.msra.mxu0 0
    %170 = vmatprep.subr.bf16.mxu0 0
    %171 = vmatpush1.bf16.msra.mxu0 0
    %172 = vmatprep.subr.bf16.mxu0 0
    %173 = vmatpush1.bf16.msra.mxu0 0
    %174 = vmatprep.subr.bf16.mxu0 0
    %175 = vmatpush1.bf16.msra.mxu0 0
    %176 = vmatprep.subr.bf16.mxu0 0
    %177 = vmatpush1.bf16.msra.mxu0 %v161
    %178 = vmatprep.subr.bf16.mxu0 0
    %179 = vmatpush1.bf16.msra.mxu0 %v160
    %180 = vmatprep.subr.bf16.mxu0 0
    %181 = vmatpush2.bf16.msra.mxu0 0
    %182 = vmatprep.subr.bf16.mxu0 0
    %183 = vmatpush2.bf16.msra.mxu0 0
    %184 = vmatprep.subr.bf16.mxu0 0
    %185 = vmatpush2.bf16.msra.mxu0 0
    %186 = vmatprep.subr.bf16.mxu0 0
    %187 = vmatpush2.bf16.msra.mxu0 0
    %188 = vmatprep.subr.bf16.mxu0 0
    %189 = vmatpush2.bf16.msra.mxu0 0
    %190 = vmatprep.subr.bf16.mxu0 0
    %191 = vmatpush2.bf16.msra.mxu0 0
    %192 = vmatprep.subr.bf16.mxu0 0
    %193 = vmatpush2.bf16.msra.mxu0 0
    %194 = vmatprep.subr.bf16.mxu0 0
    %195 = vmatpush2.bf16.msra.mxu0 0
    %196 = vmatprep.mubr.bf16.mxu0 0
    %197 = vmatmul.mubr.bf16.gmra.mxu0 %v100
    %v198 = vpop.f32.mrf.mxu0
    %v199 = vadd.f32 %v151, %v198
    %v200 = vpop.f32.mrf.mxu0
    %v201 = vpop.f32.mrf.mxu0
    %v202 = vadd.f32 %v151, %v201
    %v203 = vpop.f32.mrf.mxu0
    %204 = vdwg.mxu0
    %v205 = vld [vmem:[%s3 + $0x40] sm:$0xf]
    %v206 = vld [vmem:[%s3 + $0x44] sm:$0xf]
    %v207 = vld [vmem:[%s3 + $0x48] sm:$0xf]
    %v208 = vld [vmem:[%s3 + $0x4c] sm:$0xf]
    %v209 = vld [vmem:[%s7 + $0xe] sm:$0x1]
    %v210 = vlaneseq
    %v211 = vshrl.u32 %v210, 7
    %v212 = vsub.s32 0, %v211
    %v213 = vrot.slane %v209, %v212
    %v218 = vunpack.c.l.b16 %v205
    %v219 = vunpack.c.l.b16 %v206
    %v220 = vunpack.c.l.b16 %v207
    %v221 = vunpack.c.l.b16 %v208
    %v222 = vpack.c.b16 %v219, %v218
    %v223 = vpack.c.b16 %v221, %v220
    %226 = vmatprep.subr.bf16.mxu0 0
    %227 = vmatpush1.bf16.msra.mxu0 0
    %228 = vmatprep.subr.bf16.mxu0 0
    %229 = vmatpush1.bf16.msra.mxu0 0
    %230 = vmatprep.subr.bf16.mxu0 0
    %231 = vmatpush1.bf16.msra.mxu0 0
    %232 = vmatprep.subr.bf16.mxu0 0
    %233 = vmatpush1.bf16.msra.mxu0 0
    %234 = vmatprep.subr.bf16.mxu0 0
    %235 = vmatpush1.bf16.msra.mxu0 0
    %236 = vmatprep.subr.bf16.mxu0 0
    %237 = vmatpush1.bf16.msra.mxu0 0
    %238 = vmatprep.subr.bf16.mxu0 0
    %239 = vmatpush1.bf16.msra.mxu0 %v223
    %240 = vmatprep.subr.bf16.mxu0 0
    %241 = vmatpush1.bf16.msra.mxu0 %v222
    %242 = vmatprep.subr.bf16.mxu0 0
    %243 = vmatpush2.bf16.msra.mxu0 0
    %244 = vmatprep.subr.bf16.mxu0 0
    %245 = vmatpush2.bf16.msra.mxu0 0
    %246 = vmatprep.subr.bf16.mxu0 0
    %247 = vmatpush2.bf16.msra.mxu0 0
    %248 = vmatprep.subr.bf16.mxu0 0
    %249 = vmatpush2.bf16.msra.mxu0 0
    %250 = vmatprep.subr.bf16.mxu0 0
    %251 = vmatpush2.bf16.msra.mxu0 0
    %252 = vmatprep.subr.bf16.mxu0 0
    %253 = vmatpush2.bf16.msra.mxu0 0
    %254 = vmatprep.subr.bf16.mxu0 0
    %255 = vmatpush2.bf16.msra.mxu0 0
    %256 = vmatprep.subr.bf16.mxu0 0
    %257 = vmatpush2.bf16.msra.mxu0 0
    %258 = vmatprep.mubr.bf16.mxu0 0
    %259 = vmatmul.mubr.bf16.gmra.mxu0 %v100
    %v260 = vpop.f32.mrf.mxu0
    %v261 = vadd.f32 %v213, %v260
    %v262 = vpop.f32.mrf.mxu0
    %v263 = vpop.f32.mrf.mxu0
    %v264 = vadd.f32 %v213, %v263
    %v265 = vpop.f32.mrf.mxu0
    %266 = vdwg.mxu0
    %v267 = vpack.c.bf16 %v137, %v137
    %v268 = vpack.c.bf16 %v140, %v140
    %v269 = vpack.c.bf16 %v199, %v199
    %v270 = vpack.c.bf16 %v202, %v202
    %v271 = vpack.c.bf16 %v261, %v261
    %v272 = vpack.c.bf16 %v264, %v264
    %vm273 = vcmask 130048
    %v275 = vsel %vm273, %v267, 0
    %v278 = vsel %vm273, %v269, 0
    %280 = vmatprep.subr.bf16.mxu0 0
    %281 = vmatpush1.bf16.xpose.msra.mxu0 0
    %282 = vmatprep.subr.bf16.mxu0 0
    %283 = vmatpush1.bf16.xpose.msra.mxu0 0
    %284 = vmatprep.subr.bf16.mxu0 0
    %285 = vmatpush1.bf16.xpose.msra.mxu0 0
    %286 = vmatprep.subr.bf16.mxu0 0
    %287 = vmatpush1.bf16.xpose.msra.mxu0 0
    %288 = vmatprep.subr.bf16.mxu0 0
    %289 = vmatpush1.bf16.xpose.msra.mxu0 0
    %290 = vmatprep.subr.bf16.mxu0 0
    %291 = vmatpush1.bf16.xpose.msra.mxu0 0
    %292 = vmatprep.subr.bf16.mxu0 0
    %293 = vmatpush1.bf16.xpose.msra.mxu0 0
    %294 = vmatprep.subr.bf16.mxu0 0
    %295 = vmatpush1.bf16.xpose.msra.mxu0 %v278
    %296 = vmatprep.subr.bf16.mxu0 0
    %297 = vmatpush2.bf16.xpose.msra.mxu0 0
    %298 = vmatprep.subr.bf16.mxu0 0
    %299 = vmatpush2.bf16.xpose.msra.mxu0 0
    %300 = vmatprep.subr.bf16.mxu0 0
    %301 = vmatpush2.bf16.xpose.msra.mxu0 0
    %302 = vmatprep.subr.bf16.mxu0 0
    %303 = vmatpush2.bf16.xpose.msra.mxu0 0
    %304 = vmatprep.subr.bf16.mxu0 0
    %305 = vmatpush2.bf16.xpose.msra.mxu0 0
    %306 = vmatprep.subr.bf16.mxu0 0
    %307 = vmatpush2.bf16.xpose.msra.mxu0 0
    %308 = vmatprep.subr.bf16.mxu0 0
    %309 = vmatpush2.bf16.xpose.msra.mxu0 0
    %310 = vmatprep.subr.bf16.mxu0 0
    %311 = vmatpush2.bf16.xpose.msra.mxu0 0
    %312 = vmatprep.mubr.bf16.mxu0 0
    %313 = vmatmul.mubr.bf16.gmra.mxu0 %v275
    %v314 = vpop.f32.mrf.mxu0
    %v315 = vadd.f32 0.0, %v314
    %v316 = vpop.f32.mrf.mxu0
    %v317 = vpop.f32.mrf.mxu0
    %v318 = vpop.f32.mrf.mxu0
    %319 = vdwg.mxu0
    %v321 = vsel %vm273, %v268, 0
    %v324 = vsel %vm273, %v270, 0
    %326 = vmatprep.subr.bf16.mxu0 0
    %327 = vmatpush1.bf16.xpose.msra.mxu0 0
    %328 = vmatprep.subr.bf16.mxu0 0
    %329 = vmatpush1.bf16.xpose.msra.mxu0 0
    %330 = vmatprep.subr.bf16.mxu0 0
    %331 = vmatpush1.bf16.xpose.msra.mxu0 0
    %332 = vmatprep.subr.bf16.mxu0 0
    %333 = vmatpush1.bf16.xpose.msra.mxu0 0
    %334 = vmatprep.subr.bf16.mxu0 0
    %335 = vmatpush1.bf16.xpose.msra.mxu0 0
    %336 = vmatprep.subr.bf16.mxu0 0
    %337 = vmatpush1.bf16.xpose.msra.mxu0 0
    %338 = vmatprep.subr.bf16.mxu0 0
    %339 = vmatpush1.bf16.xpose.msra.mxu0 0
    %340 = vmatprep.subr.bf16.mxu0 0
    %341 = vmatpush1.bf16.xpose.msra.mxu0 %v324
    %342 = vmatprep.subr.bf16.mxu0 0
    %343 = vmatpush2.bf16.xpose.msra.mxu0 0
    %344 = vmatprep.subr.bf16.mxu0 0
    %345 = vmatpush2.bf16.xpose.msra.mxu0 0
    %346 = vmatprep.subr.bf16.mxu0 0
    %347 = vmatpush2.bf16.xpose.msra.mxu0 0
    %348 = vmatprep.subr.bf16.mxu0 0
    %349 = vmatpush2.bf16.xpose.msra.mxu0 0
    %350 = vmatprep.subr.bf16.mxu0 0
    %351 = vmatpush2.bf16.xpose.msra.mxu0 0
    %352 = vmatprep.subr.bf16.mxu0 0
    %353 = vmatpush2.bf16.xpose.msra.mxu0 0
    %354 = vmatprep.subr.bf16.mxu0 0
    %355 = vmatpush2.bf16.xpose.msra.mxu0 0
    %356 = vmatprep.subr.bf16.mxu0 0
    %357 = vmatpush2.bf16.xpose.msra.mxu0 0
    %358 = vmatprep.mubr.bf16.mxu0 0
    %359 = vmatmul.mubr.bf16.gmra.mxu0 %v321
    %v360 = vpop.f32.mrf.mxu0
    %v361 = vadd.f32 0.0, %v360
    %v362 = vpop.f32.mrf.mxu0
    %v363 = vpop.f32.mrf.mxu0
    %v364 = vpop.f32.mrf.mxu0
    %365 = vdwg.mxu0
    %v366 = vmul.f32 %v315, 0.25
    %v367 = vmul.f32 %v361, 0.25
    %v370 = vlaneseq
    %v371 = vshrl.u32 %v370, 7
    %v372 = vsub.s32 0, %v371
    %v373 = vrot.slane %v31, %v372
    %v374 = vlaneseq
    %v375 = vshrl.u32 %v374, 7
    %v376 = vsub.s32 0, %v375
    %v377 = vrot.slane %v32, %v376
    %v380 = vadd.f32 %v366, %v373
    %v381 = vadd.f32 %v367, %v377
    %vm382 = vcmask 64512
    %v383 = vsel %vm382, %v380, -inf
    %384 = vmax.xlane.f32.xlu0 %v383
    %v385 = vpop.xlane.xlu0 %384
    %v386 = vsel %vm382, %v381, -inf
    %387 = vmax.xlane.f32.xlu0 %v386
    %v388 = vpop.xlane.xlu0 %387
    %v389 = vsub.f32 %v380, %v385
    %v390 = vsub.f32 %v381, %v388
    %v391 = vmul.f32 %v389, 1.442695
    %v392 = vpow.pop %v391
    %v393 = vmul.f32 %v390, 1.442695
    %v394 = vpow.pop %v393
    %v395 = vsel %vm382, %v392, 0.0
    %396 = vadd.xlane.f32.xlu0 %v395
    %v397 = vpop.xlane.xlu0 %396
    %v398 = vsel %vm382, %v394, 0.0
    %399 = vadd.xlane.f32.xlu0 %v398
    %v400 = vpop.xlane.xlu0 %399
    %v401 = vrcp.pop %v397
    %v402 = vmul.f32 %v392, %v401
    %v403 = vrcp.pop %v400
    %v404 = vmul.f32 %v394, %v403
    %v405 = vpack.c.bf16 %v402, %v402
    %v406 = vpack.c.bf16 %v404, %v404
    %v408 = vsel %vm382, %v405, 0
    %vm410 = vcmask 1043456
    %v412 = vsel %vm410, %v271, 0
    %414 = vmatprep.subr.bf16.mxu0 0
    %415 = vmatpush1.bf16.msra.mxu0 0
    %416 = vmatprep.subr.bf16.mxu0 0
    %417 = vmatpush1.bf16.msra.mxu0 0
    %418 = vmatprep.subr.bf16.mxu0 0
    %419 = vmatpush1.bf16.msra.mxu0 0
    %420 = vmatprep.subr.bf16.mxu0 0
    %421 = vmatpush1.bf16.msra.mxu0 0
    %422 = vmatprep.subr.bf16.mxu0 0
    %423 = vmatpush1.bf16.msra.mxu0 0
    %424 = vmatprep.subr.bf16.mxu0 0
    %425 = vmatpush1.bf16.msra.mxu0 0
    %426 = vmatprep.subr.bf16.mxu0 0
    %427 = vmatpush1.bf16.msra.mxu0 0
    %428 = vmatprep.subr.bf16.mxu0 0
    %429 = vmatpush1.bf16.msra.mxu0 %v412
    %430 = vmatprep.subr.bf16.mxu0 0
    %431 = vmatpush2.bf16.msra.mxu0 0
    %432 = vmatprep.subr.bf16.mxu0 0
    %433 = vmatpush2.bf16.msra.mxu0 0
    %434 = vmatprep.subr.bf16.mxu0 0
    %435 = vmatpush2.bf16.msra.mxu0 0
    %436 = vmatprep.subr.bf16.mxu0 0
    %437 = vmatpush2.bf16.msra.mxu0 0
    %438 = vmatprep.subr.bf16.mxu0 0
    %439 = vmatpush2.bf16.msra.mxu0 0
    %440 = vmatprep.subr.bf16.mxu0 0
    %441 = vmatpush2.bf16.msra.mxu0 0
    %442 = vmatprep.subr.bf16.mxu0 0
    %443 = vmatpush2.bf16.msra.mxu0 0
    %444 = vmatprep.subr.bf16.mxu0 0
    %445 = vmatpush2.bf16.msra.mxu0 0
    %446 = vmatprep.mubr.bf16.mxu0 0
    %447 = vmatmul.mubr.bf16.gmra.mxu0 %v408
    %v448 = vpop.f32.mrf.mxu0
    %v449 = vadd.f32 0.0, %v448
    %v450 = vpop.f32.mrf.mxu0
    %v451 = vpop.f32.mrf.mxu0
    %v452 = vpop.f32.mrf.mxu0
    %453 = vdwg.mxu0
    %v455 = vsel %vm382, %v406, 0
    %v458 = vsel %vm410, %v272, 0
    %460 = vmatprep.subr.bf16.mxu0 0
    %461 = vmatpush1.bf16.msra.mxu0 0
    %462 = vmatprep.subr.bf16.mxu0 0
    %463 = vmatpush1.bf16.msra.mxu0 0
    %464 = vmatprep.subr.bf16.mxu0 0
    %465 = vmatpush1.bf16.msra.mxu0 0
    %466 = vmatprep.subr.bf16.mxu0 0
    %467 = vmatpush1.bf16.msra.mxu0 0
    %468 = vmatprep.subr.bf16.mxu0 0
    %469 = vmatpush1.bf16.msra.mxu0 0
    %470 = vmatprep.subr.bf16.mxu0 0
    %471 = vmatpush1.bf16.msra.mxu0 0
    %472 = vmatprep.subr.bf16.mxu0 0
    %473 = vmatpush1.bf16.msra.mxu0 0
    %474 = vmatprep.subr.bf16.mxu0 0
    %475 = vmatpush1.bf16.msra.mxu0 %v458
    %476 = vmatprep.subr.bf16.mxu0 0
    %477 = vmatpush2.bf16.msra.mxu0 0
    %478 = vmatprep.subr.bf16.mxu0 0
    %479 = vmatpush2.bf16.msra.mxu0 0
    %480 = vmatprep.subr.bf16.mxu0 0
    %481 = vmatpush2.bf16.msra.mxu0 0
    %482 = vmatprep.subr.bf16.mxu0 0
    %483 = vmatpush2.bf16.msra.mxu0 0
    %484 = vmatprep.subr.bf16.mxu0 0
    %485 = vmatpush2.bf16.msra.mxu0 0
    %486 = vmatprep.subr.bf16.mxu0 0
    %487 = vmatpush2.bf16.msra.mxu0 0
    %488 = vmatprep.subr.bf16.mxu0 0
    %489 = vmatpush2.bf16.msra.mxu0 0
    %490 = vmatprep.subr.bf16.mxu0 0
    %491 = vmatpush2.bf16.msra.mxu0 0
    %492 = vmatprep.mubr.bf16.mxu0 0
    %493 = vmatmul.mubr.bf16.gmra.mxu0 %v455
    %v494 = vpop.f32.mrf.mxu0
    %v495 = vadd.f32 0.0, %v494
    %v496 = vpop.f32.mrf.mxu0
    %v497 = vpop.f32.mrf.mxu0
    %v498 = vpop.f32.mrf.mxu0
    %499 = vdwg.mxu0
    %v500 = vpack.c.bf16 %v495, %v449
    %v501 = vld [vmem:[%s4] sm:$0xf]
    %v502 = vld [vmem:[%s4 + $0x4] sm:$0xf]
    %v503 = vld [vmem:[%s3 + $0x10] sm:$0xf]
    %v504 = vld [vmem:[%s3 + $0x14] sm:$0xf]
    %v505 = vld [vmem:[%s3 + $0x18] sm:$0xf]
    %v506 = vld [vmem:[%s3 + $0x1c] sm:$0xf]
    %v507 = vld [vmem:[%s7 + $0xb] sm:$0x1]
    %v508 = vlaneseq
    %v509 = vshrl.u32 %v508, 7
    %v510 = vsub.s32 0, %v509
    %v511 = vrot.slane %v507, %v510
    %v516 = vunpack.c.l.b16 %v503
    %v517 = vunpack.c.l.b16 %v504
    %v518 = vunpack.c.l.b16 %v505
    %v519 = vunpack.c.l.b16 %v506
    %v520 = vpack.c.b16 %v517, %v516
    %v521 = vpack.c.b16 %v519, %v518
    %524 = vmatprep.subr.bf16.mxu0 0
    %525 = vmatpush1.bf16.msra.mxu0 0
    %526 = vmatprep.subr.bf16.mxu0 0
    %527 = vmatpush1.bf16.msra.mxu0 0
    %528 = vmatprep.subr.bf16.mxu0 0
    %529 = vmatpush1.bf16.msra.mxu0 0
    %530 = vmatprep.subr.bf16.mxu0 0
    %531 = vmatpush1.bf16.msra.mxu0 0
    %532 = vmatprep.subr.bf16.mxu0 0
    %533 = vmatpush1.bf16.msra.mxu0 0
    %534 = vmatprep.subr.bf16.mxu0 0
    %535 = vmatpush1.bf16.msra.mxu0 0
    %536 = vmatprep.subr.bf16.mxu0 0
    %537 = vmatpush1.bf16.msra.mxu0 %v521
    %538 = vmatprep.subr.bf16.mxu0 0
    %539 = vmatpush1.bf16.msra.mxu0 %v520
    %540 = vmatprep.subr.bf16.mxu0 0
    %541 = vmatpush2.bf16.msra.mxu0 0
    %542 = vmatprep.subr.bf16.mxu0 0
    %543 = vmatpush2.bf16.msra.mxu0 0
    %544 = vmatprep.subr.bf16.mxu0 0
    %545 = vmatpush2.bf16.msra.mxu0 0
    %546 = vmatprep.subr.bf16.mxu0 0
    %547 = vmatpush2.bf16.msra.mxu0 0
    %548 = vmatprep.subr.bf16.mxu0 0
    %549 = vmatpush2.bf16.msra.mxu0 0
    %550 = vmatprep.subr.bf16.mxu0 0
    %551 = vmatpush2.bf16.msra.mxu0 0
    %552 = vmatprep.subr.bf16.mxu0 0
    %553 = vmatpush2.bf16.msra.mxu0 0
    %554 = vmatprep.subr.bf16.mxu0 0
    %555 = vmatpush2.bf16.msra.mxu0 0
    %556 = vmatprep.mubr.bf16.mxu0 0
    %557 = vmatmul.mubr.bf16.gmra.mxu0 %v100
    %v558 = vpop.f32.mrf.mxu0
    %v559 = vadd.f32 %v511, %v558
    %v560 = vpop.f32.mrf.mxu0
    %v561 = vpop.f32.mrf.mxu0
    %v562 = vadd.f32 %v511, %v561
    %v563 = vpop.f32.mrf.mxu0
    %564 = vdwg.mxu0
    %v565 = vld [vmem:[%s3 + $0x30] sm:$0xf]
    %v566 = vld [vmem:[%s3 + $0x34] sm:$0xf]
    %v567 = vld [vmem:[%s3 + $0x38] sm:$0xf]
    %v568 = vld [vmem:[%s3 + $0x3c] sm:$0xf]
    %v569 = vld [vmem:[%s7 + $0xd] sm:$0x1]
    %v570 = vlaneseq
    %v571 = vshrl.u32 %v570, 7
    %v572 = vsub.s32 0, %v571
    %v573 = vrot.slane %v569, %v572
    %v578 = vunpack.c.l.b16 %v565
    %v579 = vunpack.c.l.b16 %v566
    %v580 = vunpack.c.l.b16 %v567
    %v581 = vunpack.c.l.b16 %v568
    %v582 = vpack.c.b16 %v579, %v578
    %v583 = vpack.c.b16 %v581, %v580
    %586 = vmatprep.subr.bf16.mxu0 0
    %587 = vmatpush1.bf16.msra.mxu0 0
    %588 = vmatprep.subr.bf16.mxu0 0
    %589 = vmatpush1.bf16.msra.mxu0 0
    %590 = vmatprep.subr.bf16.mxu0 0
    %591 = vmatpush1.bf16.msra.mxu0 0
    %592 = vmatprep.subr.bf16.mxu0 0
    %593 = vmatpush1.bf16.msra.mxu0 0
    %594 = vmatprep.subr.bf16.mxu0 0
    %595 = vmatpush1.bf16.msra.mxu0 0
    %596 = vmatprep.subr.bf16.mxu0 0
    %597 = vmatpush1.bf16.msra.mxu0 0
    %598 = vmatprep.subr.bf16.mxu0 0
    %599 = vmatpush1.bf16.msra.mxu0 %v583
    %600 = vmatprep.subr.bf16.mxu0 0
    %601 = vmatpush1.bf16.msra.mxu0 %v582
    %602 = vmatprep.subr.bf16.mxu0 0
    %603 = vmatpush2.bf16.msra.mxu0 0
    %604 = vmatprep.subr.bf16.mxu0 0
    %605 = vmatpush2.bf16.msra.mxu0 0
    %606 = vmatprep.subr.bf16.mxu0 0
    %607 = vmatpush2.bf16.msra.mxu0 0
    %608 = vmatprep.subr.bf16.mxu0 0
    %609 = vmatpush2.bf16.msra.mxu0 0
    %610 = vmatprep.subr.bf16.mxu0 0
    %611 = vmatpush2.bf16.msra.mxu0 0
    %612 = vmatprep.subr.bf16.mxu0 0
    %613 = vmatpush2.bf16.msra.mxu0 0
    %614 = vmatprep.subr.bf16.mxu0 0
    %615 = vmatpush2.bf16.msra.mxu0 0
    %616 = vmatprep.subr.bf16.mxu0 0
    %617 = vmatpush2.bf16.msra.mxu0 0
    %618 = vmatprep.mubr.bf16.mxu0 0
    %619 = vmatmul.mubr.bf16.gmra.mxu0 %v100
    %v620 = vpop.f32.mrf.mxu0
    %v621 = vadd.f32 %v573, %v620
    %v622 = vpop.f32.mrf.mxu0
    %v623 = vpop.f32.mrf.mxu0
    %v624 = vadd.f32 %v573, %v623
    %v625 = vpop.f32.mrf.mxu0
    %626 = vdwg.mxu0
    %v627 = vld [vmem:[%s3 + $0x50] sm:$0xf]
    %v628 = vld [vmem:[%s3 + $0x54] sm:$0xf]
    %v629 = vld [vmem:[%s3 + $0x58] sm:$0xf]
    %v630 = vld [vmem:[%s3 + $0x5c] sm:$0xf]
    %v631 = vld [vmem:[%s7 + $0xf] sm:$0x1]
    %v632 = vlaneseq
    %v633 = vshrl.u32 %v632, 7
    %v634 = vsub.s32 0, %v633
    %v635 = vrot.slane %v631, %v634
    %v640 = vunpack.c.l.b16 %v627
    %v641 = vunpack.c.l.b16 %v628
    %v642 = vunpack.c.l.b16 %v629
    %v643 = vunpack.c.l.b16 %v630
    %v644 = vpack.c.b16 %v641, %v640
    %v645 = vpack.c.b16 %v643, %v642
    %648 = vmatprep.subr.bf16.mxu0 0
    %649 = vmatpush1.bf16.msra.mxu0 0
    %650 = vmatprep.subr.bf16.mxu0 0
    %651 = vmatpush1.bf16.msra.mxu0 0
    %652 = vmatprep.subr.bf16.mxu0 0
    %653 = vmatpush1.bf16.msra.mxu0 0
    %654 = vmatprep.subr.bf16.mxu0 0
    %655 = vmatpush1.bf16.msra.mxu0 0
    %656 = vmatprep.subr.bf16.mxu0 0
    %657 = vmatpush1.bf16.msra.mxu0 0
    %658 = vmatprep.subr.bf16.mxu0 0
    %659 = vmatpush1.bf16.msra.mxu0 0
    %660 = vmatprep.subr.bf16.mxu0 0
    %661 = vmatpush1.bf16.msra.mxu0 %v645
    %662 = vmatprep.subr.bf16.mxu0 0
    %663 = vmatpush1.bf16.msra.mxu0 %v644
    %664 = vmatprep.subr.bf16.mxu0 0
    %665 = vmatpush2.bf16.msra.mxu0 0
    %666 = vmatprep.subr.bf16.mxu0 0
    %667 = vmatpush2.bf16.msra.mxu0 0
    %668 = vmatprep.subr.bf16.mxu0 0
    %669 = vmatpush2.bf16.msra.mxu0 0
    %670 = vmatprep.subr.bf16.mxu0 0
    %671 = vmatpush2.bf16.msra.mxu0 0
    %672 = vmatprep.subr.bf16.mxu0 0
    %673 = vmatpush2.bf16.msra.mxu0 0
    %674 = vmatprep.subr.bf16.mxu0 0
    %675 = vmatpush2.bf16.msra.mxu0 0
    %676 = vmatprep.subr.bf16.mxu0 0
    %677 = vmatpush2.bf16.msra.mxu0 0
    %678 = vmatprep.subr.bf16.mxu0 0
    %679 = vmatpush2.bf16.msra.mxu0 0
    %680 = vmatprep.mubr.bf16.mxu0 0
    %681 = vmatmul.mubr.bf16.gmra.mxu0 %v100
    %v682 = vpop.f32.mrf.mxu0
    %v683 = vadd.f32 %v635, %v682
    %v684 = vpop.f32.mrf.mxu0
    %v685 = vpop.f32.mrf.mxu0
    %v686 = vadd.f32 %v635, %v685
    %v687 = vpop.f32.mrf.mxu0
    %688 = vdwg.mxu0
    %v689 = vpack.c.bf16 %v559, %v559
    %v690 = vpack.c.bf16 %v562, %v562
    %v691 = vpack.c.bf16 %v621, %v621
    %v692 = vpack.c.bf16 %v624, %v624
    %v693 = vpack.c.bf16 %v683, %v683
    %v694 = vpack.c.bf16 %v686, %v686
    %v696 = vsel %vm273, %v689, 0
    %v699 = vsel %vm273, %v691, 0
    %701 = vmatprep.subr.bf16.mxu0 0
    %702 = vmatpush1.bf16.xpose.msra.mxu0 0
    %703 = vmatprep.subr.bf16.mxu0 0
    %704 = vmatpush1.bf16.xpose.msra.mxu0 0
    %705 = vmatprep.subr.bf16.mxu0 0
    %706 = vmatpush1.bf16.xpose.msra.mxu0 0
    %707 = vmatprep.subr.bf16.mxu0 0
    %708 = vmatpush1.bf16.xpose.msra.mxu0 0
    %709 = vmatprep.subr.bf16.mxu0 0
    %710 = vmatpush1.bf16.xpose.msra.mxu0 0
    %711 = vmatprep.subr.bf16.mxu0 0
    %712 = vmatpush1.bf16.xpose.msra.mxu0 0
    %713 = vmatprep.subr.bf16.mxu0 0
    %714 = vmatpush1.bf16.xpose.msra.mxu0 0
    %715 = vmatprep.subr.bf16.mxu0 0
    %716 = vmatpush1.bf16.xpose.msra.mxu0 %v699
    %717 = vmatprep.subr.bf16.mxu0 0
    %718 = vmatpush2.bf16.xpose.msra.mxu0 0
    %719 = vmatprep.subr.bf16.mxu0 0
    %720 = vmatpush2.bf16.xpose.msra.mxu0 0
    %721 = vmatprep.subr.bf16.mxu0 0
    %722 = vmatpush2.bf16.xpose.msra.mxu0 0
    %723 = vmatprep.subr.bf16.mxu0 0
    %724 = vmatpush2.bf16.xpose.msra.mxu0 0
    %725 = vmatprep.subr.bf16.mxu0 0
    %726 = vmatpush2.bf16.xpose.msra.mxu0 0
    %727 = vmatprep.subr.bf16.mxu0 0
    %728 = vmatpush2.bf16.xpose.msra.mxu0 0
    %729 = vmatprep.subr.bf16.mxu0 0
    %730 = vmatpush2.bf16.xpose.msra.mxu0 0
    %731 = vmatprep.subr.bf16.mxu0 0
    %732 = vmatpush2.bf16.xpose.msra.mxu0 0
    %733 = vmatprep.mubr.bf16.mxu0 0
    %734 = vmatmul.mubr.bf16.gmra.mxu0 %v696
    %v735 = vpop.f32.mrf.mxu0
    %v736 = vadd.f32 0.0, %v735
    %v737 = vpop.f32.mrf.mxu0
    %v738 = vpop.f32.mrf.mxu0
    %v739 = vpop.f32.mrf.mxu0
    %740 = vdwg.mxu0
    %v742 = vsel %vm273, %v690, 0
    %v745 = vsel %vm273, %v692, 0
    %747 = vmatprep.subr.bf16.mxu0 0
    %748 = vmatpush1.bf16.xpose.msra.mxu0 0
    %749 = vmatprep.subr.bf16.mxu0 0
    %750 = vmatpush1.bf16.xpose.msra.mxu0 0
    %751 = vmatprep.subr.bf16.mxu0 0
    %752 = vmatpush1.bf16.xpose.msra.mxu0 0
    %753 = vmatprep.subr.bf16.mxu0 0
    %754 = vmatpush1.bf16.xpose.msra.mxu0 0
    %755 = vmatprep.subr.bf16.mxu0 0
    %756 = vmatpush1.bf16.xpose.msra.mxu0 0
    %757 = vmatprep.subr.bf16.mxu0 0
    %758 = vmatpush1.bf16.xpose.msra.mxu0 0
    %759 = vmatprep.subr.bf16.mxu0 0
    %760 = vmatpush1.bf16.xpose.msra.mxu0 0
    %761 = vmatprep.subr.bf16.mxu0 0
    %762 = vmatpush1.bf16.xpose.msra.mxu0 %v745
    %763 = vmatprep.subr.bf16.mxu0 0
    %764 = vmatpush2.bf16.xpose.msra.mxu0 0
    %765 = vmatprep.subr.bf16.mxu0 0
    %766 = vmatpush2.bf16.xpose.msra.mxu0 0
    %767 = vmatprep.subr.bf16.mxu0 0
    %768 = vmatpush2.bf16.xpose.msra.mxu0 0
    %769 = vmatprep.subr.bf16.mxu0 0
    %770 = vmatpush2.bf16.xpose.msra.mxu0 0
    %771 = vmatprep.subr.bf16.mxu0 0
    %772 = vmatpush2.bf16.xpose.msra.mxu0 0
    %773 = vmatprep.subr.bf16.mxu0 0
    %774 = vmatpush2.bf16.xpose.msra.mxu0 0
    %775 = vmatprep.subr.bf16.mxu0 0
    %776 = vmatpush2.bf16.xpose.msra.mxu0 0
    %777 = vmatprep.subr.bf16.mxu0 0
    %778 = vmatpush2.bf16.xpose.msra.mxu0 0
    %779 = vmatprep.mubr.bf16.mxu0 0
    %780 = vmatmul.mubr.bf16.gmra.mxu0 %v742
    %v781 = vpop.f32.mrf.mxu0
    %v782 = vadd.f32 0.0, %v781
    %v783 = vpop.f32.mrf.mxu0
    %v784 = vpop.f32.mrf.mxu0
    %v785 = vpop.f32.mrf.mxu0
    %786 = vdwg.mxu0
    %v787 = vmul.f32 %v736, 0.25
    %v788 = vmul.f32 %v782, 0.25
    %v789 = vadd.f32 %v787, %v373
    %v790 = vadd.f32 %v788, %v377
    %v791 = vsel %vm382, %v789, -inf
    %792 = vmax.xlane.f32.xlu0 %v791
    %v793 = vpop.xlane.xlu0 %792
    %v794 = vsel %vm382, %v790, -inf
    %795 = vmax.xlane.f32.xlu0 %v794
    %v796 = vpop.xlane.xlu0 %795
    %v797 = vsub.f32 %v789, %v793
    %v798 = vsub.f32 %v790, %v796
    %v799 = vmul.f32 %v797, 1.442695
    %v800 = vpow.pop %v799
    %v801 = vmul.f32 %v798, 1.442695
    %v802 = vpow.pop %v801
    %v803 = vsel %vm382, %v800, 0.0
    %804 = vadd.xlane.f32.xlu0 %v803
    %v805 = vpop.xlane.xlu0 %804
    %v806 = vsel %vm382, %v802, 0.0
    %807 = vadd.xlane.f32.xlu0 %v806
    %v808 = vpop.xlane.xlu0 %807
    %v809 = vrcp.pop %v805
    %v810 = vmul.f32 %v800, %v809
    %v811 = vrcp.pop %v808
    %v812 = vmul.f32 %v802, %v811
    %v813 = vpack.c.bf16 %v810, %v810
    %v814 = vpack.c.bf16 %v812, %v812
    %v816 = vsel %vm382, %v813, 0
    %v819 = vsel %vm410, %v693, 0
    %821 = vmatprep.subr.bf16.mxu0 0
    %822 = vmatpush1.bf16.msra.mxu0 0
    %823 = vmatprep.subr.bf16.mxu0 0
    %824 = vmatpush1.bf16.msra.mxu0 0
    %825 = vmatprep.subr.bf16.mxu0 0
    %826 = vmatpush1.bf16.msra.mxu0 0
    %827 = vmatprep.subr.bf16.mxu0 0
    %828 = vmatpush1.bf16.msra.mxu0 0
    %829 = vmatprep.subr.bf16.mxu0 0
    %830 = vmatpush1.bf16.msra.mxu0 0
    %831 = vmatprep.subr.bf16.mxu0 0
    %832 = vmatpush1.bf16.msra.mxu0 0
    %833 = vmatprep.subr.bf16.mxu0 0
    %834 = vmatpush1.bf16.msra.mxu0 0
    %835 = vmatprep.subr.bf16.mxu0 0
    %836 = vmatpush1.bf16.msra.mxu0 %v819
    %837 = vmatprep.subr.bf16.mxu0 0
    %838 = vmatpush2.bf16.msra.mxu0 0
    %839 = vmatprep.subr.bf16.mxu0 0
    %840 = vmatpush2.bf16.msra.mxu0 0
    %841 = vmatprep.subr.bf16.mxu0 0
    %842 = vmatpush2.bf16.msra.mxu0 0
    %843 = vmatprep.subr.bf16.mxu0 0
    %844 = vmatpush2.bf16.msra.mxu0 0
    %845 = vmatprep.subr.bf16.mxu0 0
    %846 = vmatpush2.bf16.msra.mxu0 0
    %847 = vmatprep.subr.bf16.mxu0 0
    %848 = vmatpush2.bf16.msra.mxu0 0
    %849 = vmatprep.subr.bf16.mxu0 0
    %850 = vmatpush2.bf16.msra.mxu0 0
    %851 = vmatprep.subr.bf16.mxu0 0
    %852 = vmatpush2.bf16.msra.mxu0 0
    %853 = vmatprep.mubr.bf16.mxu0 0
    %854 = vmatmul.mubr.bf16.gmra.mxu0 %v816
    %v855 = vpop.f32.mrf.mxu0
    %v856 = vadd.f32 0.0, %v855
    %v857 = vpop.f32.mrf.mxu0
    %v858 = vpop.f32.mrf.mxu0
    %v859 = vpop.f32.mrf.mxu0
    %860 = vdwg.mxu0
    %v862 = vsel %vm382, %v814, 0
    %v865 = vsel %vm410, %v694, 0
    %867 = vmatprep.subr.bf16.mxu0 0
    %868 = vmatpush1.bf16.msra.mxu0 0
    %869 = vmatprep.subr.bf16.mxu0 0
    %870 = vmatpush1.bf16.msra.mxu0 0
    %871 = vmatprep.subr.bf16.mxu0 0
    %872 = vmatpush1.bf16.msra.mxu0 0
    %873 = vmatprep.subr.bf16.mxu0 0
    %874 = vmatpush1.bf16.msra.mxu0 0
    %875 = vmatprep.subr.bf16.mxu0 0
    %876 = vmatpush1.bf16.msra.mxu0 0
    %877 = vmatprep.subr.bf16.mxu0 0
    %878 = vmatpush1.bf16.msra.mxu0 0
    %879 = vmatprep.subr.bf16.mxu0 0
    %880 = vmatpush1.bf16.msra.mxu0 0
    %881 = vmatprep.subr.bf16.mxu0 0
    %882 = vmatpush1.bf16.msra.mxu0 %v865
    %883 = vmatprep.subr.bf16.mxu0 0
    %884 = vmatpush2.bf16.msra.mxu0 0
    %885 = vmatprep.subr.bf16.mxu0 0
    %886 = vmatpush2.bf16.msra.mxu0 0
    %887 = vmatprep.subr.bf16.mxu0 0
    %888 = vmatpush2.bf16.msra.mxu0 0
    %889 = vmatprep.subr.bf16.mxu0 0
    %890 = vmatpush2.bf16.msra.mxu0 0
    %891 = vmatprep.subr.bf16.mxu0 0
    %892 = vmatpush2.bf16.msra.mxu0 0
    %893 = vmatprep.subr.bf16.mxu0 0
    %894 = vmatpush2.bf16.msra.mxu0 0
    %895 = vmatprep.subr.bf16.mxu0 0
    %896 = vmatpush2.bf16.msra.mxu0 0
    %897 = vmatprep.subr.bf16.mxu0 0
    %898 = vmatpush2.bf16.msra.mxu0 0
    %899 = vmatprep.mubr.bf16.mxu0 0
    %900 = vmatmul.mubr.bf16.gmra.mxu0 %v862
    %v901 = vpop.f32.mrf.mxu0
    %v902 = vadd.f32 0.0, %v901
    %v903 = vpop.f32.mrf.mxu0
    %v904 = vpop.f32.mrf.mxu0
    %v905 = vpop.f32.mrf.mxu0
    %906 = vdwg.mxu0
    %v907 = vpack.c.bf16 %v902, %v856
    %v908 = vld [vmem:[%s4 + $0x8] sm:$0xf]
    %v909 = vld [vmem:[%s4 + $0xc] sm:$0xf]
    %v912 = vunpack.c.l.b16 %v908
    %v913 = vunpack.c.l.b16 %v909
    %v914 = vpack.c.b16 %v913, %v912
    %v917 = vsel %vm273, %v907, 0
    %919 = vmatprep.subr.bf16.mxu0 0
    %920 = vmatpush1.bf16.msra.mxu0 0
    %921 = vmatprep.subr.bf16.mxu0 0
    %922 = vmatpush1.bf16.msra.mxu0 0
    %923 = vmatprep.subr.bf16.mxu0 0
    %924 = vmatpush1.bf16.msra.mxu0 0
    %925 = vmatprep.subr.bf16.mxu0 0
    %926 = vmatpush1.bf16.msra.mxu0 0
    %927 = vmatprep.subr.bf16.mxu0 0
    %928 = vmatpush1.bf16.msra.mxu0 0
    %929 = vmatprep.subr.bf16.mxu0 0
    %930 = vmatpush1.bf16.msra.mxu0 0
    %931 = vmatprep.subr.bf16.mxu0 0
    %932 = vmatpush1.bf16.msra.mxu0 0
    %933 = vmatprep.subr.bf16.mxu0 0
    %934 = vmatpush1.bf16.msra.mxu0 %v914
    %935 = vmatprep.subr.bf16.mxu0 0
    %936 = vmatpush2.bf16.msra.mxu0 0
    %937 = vmatprep.subr.bf16.mxu0 0
    %938 = vmatpush2.bf16.msra.mxu0 0
    %939 = vmatprep.subr.bf16.mxu0 0
    %940 = vmatpush2.bf16.msra.mxu0 0
    %941 = vmatprep.subr.bf16.mxu0 0
    %942 = vmatpush2.bf16.msra.mxu0 0
    %943 = vmatprep.subr.bf16.mxu0 0
    %944 = vmatpush2.bf16.msra.mxu0 0
    %945 = vmatprep.subr.bf16.mxu0 0
    %946 = vmatpush2.bf16.msra.mxu0 0
    %947 = vmatprep.subr.bf16.mxu0 0
    %948 = vmatpush2.bf16.msra.mxu0 0
    %949 = vmatprep.subr.bf16.mxu0 0
    %950 = vmatpush2.bf16.msra.mxu0 0
    %951 = vmatprep.mubr.bf16.mxu0 0
    %952 = vmatmul.mubr.bf16.gmra.mxu0 %v917
    %v953 = vpop.f32.mrf.mxu0
    %v954 = vadd.f32 0.0, %v953
    %v955 = vpop.f32.mrf.mxu0
    %v956 = vpop.f32.mrf.mxu0
    %v957 = vadd.f32 0.0, %v956
    %v958 = vpop.f32.mrf.mxu0
    %959 = vdwg.mxu0
    %v962 = vunpack.c.l.b16 %v501
    %v963 = vunpack.c.l.b16 %v502
    %v964 = vpack.c.b16 %v963, %v962
    %v967 = vsel %vm273, %v500, 0
    %969 = vmatprep.subr.bf16.mxu0 0
    %970 = vmatpush1.bf16.msra.mxu0 0
    %971 = vmatprep.subr.bf16.mxu0 0
    %972 = vmatpush1.bf16.msra.mxu0 0
    %973 = vmatprep.subr.bf16.mxu0 0
    %974 = vmatpush1.bf16.msra.mxu0 0
    %975 = vmatprep.subr.bf16.mxu0 0
    %976 = vmatpush1.bf16.msra.mxu0 0
    %977 = vmatprep.subr.bf16.mxu0 0
    %978 = vmatpush1.bf16.msra.mxu0 0
    %979 = vmatprep.subr.bf16.mxu0 0
    %980 = vmatpush1.bf16.msra.mxu0 0
    %981 = vmatprep.subr.bf16.mxu0 0
    %982 = vmatpush1.bf16.msra.mxu0 0
    %983 = vmatprep.subr.bf16.mxu0 0
    %984 = vmatpush1.bf16.msra.mxu0 %v964
    %985 = vmatprep.subr.bf16.mxu0 0
    %986 = vmatpush2.bf16.msra.mxu0 0
    %987 = vmatprep.subr.bf16.mxu0 0
    %988 = vmatpush2.bf16.msra.mxu0 0
    %989 = vmatprep.subr.bf16.mxu0 0
    %990 = vmatpush2.bf16.msra.mxu0 0
    %991 = vmatprep.subr.bf16.mxu0 0
    %992 = vmatpush2.bf16.msra.mxu0 0
    %993 = vmatprep.subr.bf16.mxu0 0
    %994 = vmatpush2.bf16.msra.mxu0 0
    %995 = vmatprep.subr.bf16.mxu0 0
    %996 = vmatpush2.bf16.msra.mxu0 0
    %997 = vmatprep.subr.bf16.mxu0 0
    %998 = vmatpush2.bf16.msra.mxu0 0
    %999 = vmatprep.subr.bf16.mxu0 0
    %1000 = vmatpush2.bf16.msra.mxu0 0
    %1001 = vmatprep.mubr.bf16.mxu0 0
    %1002 = vmatmul.mubr.bf16.gmra.mxu0 %v967
    %v1003 = vpop.f32.mrf.mxu0
    %v1004 = vadd.f32 %v954, %v1003
    %v1005 = vpop.f32.mrf.mxu0
    %v1006 = vpop.f32.mrf.mxu0
    %v1007 = vadd.f32 %v957, %v1006
    %v1008 = vpop.f32.mrf.mxu0
    %1009 = vdwg.mxu0
    %v1010 = vld [vmem:[%s7 + $0x16] sm:$0x1]
    %v1011 = vlaneseq
    %v1012 = vshrl.u32 %v1011, 7
    %v1013 = vsub.s32 0, %v1012
    %v1014 = vrot.slane %v1010, %v1013
    %v1015 = vadd.f32 %v1004, %v1014
    %v1016 = vadd.f32 %v1007, %v1014
    %v1017 = vadd.f32 %v75, %v1015
    %v1018 = vadd.f32 %v76, %v1016
    %v1019 = vld [vmem:[%s7 + $0x1] sm:$0x1]
    %v1020 = vld [vmem:[%s7 + $0x6] sm:$0x1]
    %v1021 = vsel %vm37, %v1017, 0.0
    %1022 = vadd.xlane.f32.xlu0 %v1021
    %v1023 = vpop.xlane.xlu0 %1022
    %v1024 = vsel %vm37, %v1018, 0.0
    %1025 = vadd.xlane.f32.xlu0 %v1024
    %v1026 = vpop.xlane.xlu0 %1025
    %v1027 = vmul.f32 %v1023, %v44
    %v1028 = vmul.f32 %v1026, %v44
    %v1029 = vsub.f32 %v1017, %v1027
    %v1030 = vsub.f32 %v1018, %v1028
    %v1031 = vmul.f32 %v1029, %v1029
    %v1032 = vmul.f32 %v1030, %v1030
    %v1033 = vsel %vm37, %v1031, 0.0
    %1034 = vadd.xlane.f32.xlu0 %v1033
    %v1035 = vpop.xlane.xlu0 %1034
    %v1036 = vsel %vm37, %v1032, 0.0
    %1037 = vadd.xlane.f32.xlu0 %v1036
    %v1038 = vpop.xlane.xlu0 %1037
    %v1039 = vmul.f32 %v1035, %v44
    %v1040 = vmul.f32 %v1038, %v44
    %v1041 = vadd.f32 %v1039, 1e-12
    %v1042 = vadd.f32 %v1040, 1e-12
    %v1043 = vrsqrt.pop %v1041
    %v1044 = vrsqrt.pop %v1042
    %v1045 = vmul.f32 %v1029, %v1043
    %v1046 = vmul.f32 %v1030, %v1044
    %v1047 = vlaneseq
    %v1048 = vshrl.u32 %v1047, 7
    %v1049 = vsub.s32 0, %v1048
    %v1050 = vrot.slane %v1019, %v1049
    %v1051 = vmul.f32 %v1045, %v1050
    %v1052 = vmul.f32 %v1046, %v1050
    %v1053 = vlaneseq
    %v1054 = vshrl.u32 %v1053, 7
    %v1055 = vsub.s32 0, %v1054
    %v1056 = vrot.slane %v1020, %v1055
    %v1057 = vadd.f32 %v1051, %v1056
    %v1058 = vadd.f32 %v1052, %v1056
    %v1059 = vld [vmem:[%s5] sm:$0xf]
    %v1060 = vld [vmem:[%s5 + $0x4] sm:$0xf]
    %v1061 = vld [vmem:[%s5 + $0x8] sm:$0xf]
    %v1062 = vld [vmem:[%s5 + $0xc] sm:$0xf]
    %v1063 = vld [vmem:[%s4 + $0x20] sm:$0xf]
    %v1064 = vld [vmem:[%s4 + $0x24] sm:$0xf]
    %v1065 = vld [vmem:[%s4 + $0x28] sm:$0xf]
    %v1066 = vld [vmem:[%s4 + $0x2c] sm:$0xf]
    %v1067 = vld [vmem:[%s4 + $0x30] sm:$0xf]
    %v1068 = vld [vmem:[%s4 + $0x34] sm:$0xf]
    %v1069 = vld [vmem:[%s4 + $0x38] sm:$0xf]
    %v1070 = vld [vmem:[%s4 + $0x3c] sm:$0xf]
    %v1071 = vpack.c.bf16 %v1058, %v1057
    %v1072 = vld [vmem:[%s7 + $0x18] sm:$0x1]
    %v1073 = vlaneseq
    %v1074 = vshrl.u32 %v1073, 7
    %v1075 = vsub.s32 0, %v1074
    %v1076 = vrot.slane %v1072, %v1075
    %v1081 = vunpack.c.l.b16 %v1059
    %v1082 = vunpack.c.l.b16 %v1060
    %v1083 = vunpack.c.l.b16 %v1061
    %v1084 = vunpack.c.l.b16 %v1062
    %v1085 = vpack.c.b16 %v1082, %v1081
    %v1086 = vpack.c.b16 %v1084, %v1083
    %v1090 = vsel %vm37, %v1071, 0
    %1092 = vmatprep.subr.bf16.mxu0 0
    %1093 = vmatpush1.bf16.msra.mxu0 0
    %1094 = vmatprep.subr.bf16.mxu0 0
    %1095 = vmatpush1.bf16.msra.mxu0 0
    %1096 = vmatprep.subr.bf16.mxu0 0
    %1097 = vmatpush1.bf16.msra.mxu0 0
    %1098 = vmatprep.subr.bf16.mxu0 0
    %1099 = vmatpush1.bf16.msra.mxu0 0
    %1100 = vmatprep.subr.bf16.mxu0 0
    %1101 = vmatpush1.bf16.msra.mxu0 0
    %1102 = vmatprep.subr.bf16.mxu0 0
    %1103 = vmatpush1.bf16.msra.mxu0 0
    %1104 = vmatprep.subr.bf16.mxu0 0
    %1105 = vmatpush1.bf16.msra.mxu0 %v1086
    %1106 = vmatprep.subr.bf16.mxu0 0
    %1107 = vmatpush1.bf16.msra.mxu0 %v1085
    %1108 = vmatprep.subr.bf16.mxu0 0
    %1109 = vmatpush2.bf16.msra.mxu0 0
    %1110 = vmatprep.subr.bf16.mxu0 0
    %1111 = vmatpush2.bf16.msra.mxu0 0
    %1112 = vmatprep.subr.bf16.mxu0 0
    %1113 = vmatpush2.bf16.msra.mxu0 0
    %1114 = vmatprep.subr.bf16.mxu0 0
    %1115 = vmatpush2.bf16.msra.mxu0 0
    %1116 = vmatprep.subr.bf16.mxu0 0
    %1117 = vmatpush2.bf16.msra.mxu0 0
    %1118 = vmatprep.subr.bf16.mxu0 0
    %1119 = vmatpush2.bf16.msra.mxu0 0
    %1120 = vmatprep.subr.bf16.mxu0 0
    %1121 = vmatpush2.bf16.msra.mxu0 0
    %1122 = vmatprep.subr.bf16.mxu0 0
    %1123 = vmatpush2.bf16.msra.mxu0 0
    %1124 = vmatprep.mubr.bf16.mxu0 0
    %1125 = vmatmul.mubr.bf16.gmra.mxu0 %v1090
    %v1126 = vpop.f32.mrf.mxu0
    %v1127 = vadd.f32 %v1076, %v1126
    %v1128 = vpop.f32.mrf.mxu0
    %v1129 = vpop.f32.mrf.mxu0
    %v1130 = vadd.f32 %v1076, %v1129
    %v1131 = vpop.f32.mrf.mxu0
    %1132 = vdwg.mxu0
    %v1133 = vmul.f32 %v1127, 0.5
    %v1134 = vmul.f32 %v1130, 0.5
    %v1135 = vmul.f32 %v1127, 0.044715
    %v1136 = vmul.f32 %v1130, 0.044715
    %v1137 = vmul.f32 %v1135, %v1127
    %v1138 = vmul.f32 %v1136, %v1130
    %v1139 = vmul.f32 %v1137, %v1127
    %v1140 = vmul.f32 %v1138, %v1130
    %v1141 = vadd.f32 %v1127, %v1139
    %v1142 = vadd.f32 %v1130, %v1140
    %v1143 = vmul.f32 %v1141, 0.7978846
    %v1144 = vmul.f32 %v1142, 0.7978846
    %v1145 = vtanh.pop %v1143
    %v1146 = vtanh.pop %v1144
    %v1147 = vadd.f32 %v1145, 1.0
    %v1148 = vadd.f32 %v1146, 1.0
    %v1149 = vmul.f32 %v1133, %v1147
    %v1150 = vmul.f32 %v1134, %v1148
    %v1151 = vpack.c.bf16 %v1150, %v1149
    %v1152 = vld [vmem:[%s7 + $0x1a] sm:$0x1]
    %v1153 = vlaneseq
    %v1154 = vshrl.u32 %v1153, 7
    %v1155 = vsub.s32 0, %v1154
    %v1156 = vrot.slane %v1152, %v1155
    %v1165 = vunpack.c.l.b16 %v1063
    %v1166 = vunpack.c.l.b16 %v1064
    %v1167 = vunpack.c.l.b16 %v1065
    %v1168 = vunpack.c.l.b16 %v1066
    %v1169 = vunpack.c.l.b16 %v1067
    %v1170 = vunpack.c.l.b16 %v1068
    %v1171 = vunpack.c.l.b16 %v1069
    %v1172 = vunpack.c.l.b16 %v1070
    %v1173 = vpack.c.b16 %v1166, %v1165
    %v1174 = vpack.c.b16 %v1168, %v1167
    %v1175 = vpack.c.b16 %v1170, %v1169
    %v1176 = vpack.c.b16 %v1172, %v1171
    %vm1181 = vcmask 523264
    %v1183 = vsel %vm1181, %v1151, 0
    %1185 = vmatprep.subr.bf16.mxu0 0
    %1186 = vmatpush1.bf16.msra.mxu0 0
    %1187 = vmatprep.subr.bf16.mxu0 0
    %1188 = vmatpush1.bf16.msra.mxu0 0
    %1189 = vmatprep.subr.bf16.mxu0 0
    %1190 = vmatpush1.bf16.msra.mxu0 0
    %1191 = vmatprep.subr.bf16.mxu0 0
    %1192 = vmatpush1.bf16.msra.mxu0 0
    %1193 = vmatprep.subr.bf16.mxu0 0
    %1194 = vmatpush1.bf16.msra.mxu0 %v1176
    %1195 = vmatprep.subr.bf16.mxu0 0
    %1196 = vmatpush1.bf16.msra.mxu0 %v1175
    %1197 = vmatprep.subr.bf16.mxu0 0
    %1198 = vmatpush1.bf16.msra.mxu0 %v1174
    %1199 = vmatprep.subr.bf16.mxu0 0
    %1200 = vmatpush1.bf16.msra.mxu0 %v1173
    %1201 = vmatprep.subr.bf16.mxu0 0
    %1202 = vmatpush2.bf16.msra.mxu0 0
    %1203 = vmatprep.subr.bf16.mxu0 0
    %1204 = vmatpush2.bf16.msra.mxu0 0
    %1205 = vmatprep.subr.bf16.mxu0 0
    %1206 = vmatpush2.bf16.msra.mxu0 0
    %1207 = vmatprep.subr.bf16.mxu0 0
    %1208 = vmatpush2.bf16.msra.mxu0 0
    %1209 = vmatprep.subr.bf16.mxu0 0
    %1210 = vmatpush2.bf16.msra.mxu0 0
    %1211 = vmatprep.subr.bf16.mxu0 0
    %1212 = vmatpush2.bf16.msra.mxu0 0
    %1213 = vmatprep.subr.bf16.mxu0 0
    %1214 = vmatpush2.bf16.msra.mxu0 0
    %1215 = vmatprep.subr.bf16.mxu0 0
    %1216 = vmatpush2.bf16.msra.mxu0 0
    %1217 = vmatprep.mubr.bf16.mxu0 0
    %1218 = vmatmul.mubr.bf16.gmra.mxu0 %v1183
    %v1219 = vpop.f32.mrf.mxu0
    %v1220 = vadd.f32 %v1156, %v1219
    %v1221 = vpop.f32.mrf.mxu0
    %v1222 = vpop.f32.mrf.mxu0
    %v1223 = vadd.f32 %v1156, %v1222
    %v1224 = vpop.f32.mrf.mxu0
    %1225 = vdwg.mxu0
    %v1226 = vadd.f32 %v1057, %v1220
    %v1227 = vadd.f32 %v1058, %v1223
    %v1228 = vld [vmem:[%s7 + $0x2] sm:$0x1]
    %v1229 = vld [vmem:[%s7 + $0x7] sm:$0x1]
    %v1230 = vsel %vm37, %v1226, 0.0
    %1231 = vadd.xlane.f32.xlu0 %v1230
    %v1232 = vpop.xlane.xlu0 %1231
    %v1233 = vsel %vm37, %v1227, 0.0
    %1234 = vadd.xlane.f32.xlu0 %v1233
    %v1235 = vpop.xlane.xlu0 %1234
    %v1236 = vmul.f32 %v1232, %v44
    %v1237 = vmul.f32 %v1235, %v44
    %v1238 = vsub.f32 %v1226, %v1236
    %v1239 = vsub.f32 %v1227, %v1237
    %v1240 = vmul.f32 %v1238, %v1238
    %v1241 = vmul.f32 %v1239, %v1239
    %v1242 = vsel %vm37, %v1240, 0.0
    %1243 = vadd.xlane.f32.xlu0 %v1242
    %v1244 = vpop.xlane.xlu0 %1243
    %v1245 = vsel %vm37, %v1241, 0.0
    %1246 = vadd.xlane.f32.xlu0 %v1245
    %v1247 = vpop.xlane.xlu0 %1246
    %v1248 = vmul.f32 %v1244, %v44
    %v1249 = vmul.f32 %v1247, %v44
    %v1250 = vadd.f32 %v1248, 1e-12
    %v1251 = vadd.f32 %v1249, 1e-12
    %v1252 = vrsqrt.pop %v1250
    %v1253 = vrsqrt.pop %v1251
    %v1254 = vmul.f32 %v1238, %v1252
    %v1255 = vmul.f32 %v1239, %v1253
    %v1256 = vlaneseq
    %v1257 = vshrl.u32 %v1256, 7
    %v1258 = vsub.s32 0, %v1257
    %v1259 = vrot.slane %v1228, %v1258
    %v1260 = vmul.f32 %v1254, %v1259
    %v1261 = vmul.f32 %v1255, %v1259
    %v1262 = vlaneseq
    %v1263 = vshrl.u32 %v1262, 7
    %v1264 = vsub.s32 0, %v1263
    %v1265 = vrot.slane %v1229, %v1264
    %v1266 = vadd.f32 %v1260, %v1265
    %v1267 = vadd.f32 %v1261, %v1265
    %v1268 = vld [vmem:[%s2] sm:$0xff]
    %v1269 = vld [vmem:[%s2 + $0x8] sm:$0xff]
    %v1270 = vadd.f32 %v1266, %v1268
    %v1271 = vadd.f32 %v1267, %v1269
    %v1272 = vpack.c.bf16 %v1270, %v1270
    %v1273 = vpack.c.bf16 %v1271, %v1271
    %v1274 = vpack.c.bf16 %v1271, %v1270
    %v1275 = vld [vmem:[%s3 + $0x60] sm:$0xf]
    %v1276 = vld [vmem:[%s3 + $0x64] sm:$0xf]
    %v1277 = vld [vmem:[%s3 + $0x68] sm:$0xf]
    %v1278 = vld [vmem:[%s3 + $0x6c] sm:$0xf]
    %v1279 = vld [vmem:[%s7 + $0x10] sm:$0x1]
    %v1280 = vlaneseq
    %v1281 = vshrl.u32 %v1280, 7
    %v1282 = vsub.s32 0, %v1281
    %v1283 = vrot.slane %v1279, %v1282
    %v1286 = vunpack.c.l.b16 %v1272
    %v1287 = vunpack.c.l.b16 %v1273
    %v1288 = vrot.slane %v1287, 7
    %vm1289 = vcmask 1041409
    %v1290 = vsel %vm1289, %v1288, %v1286
    %v1291 = vpack.c.b16 %v1290, %v1290
    %v1296 = vunpack.c.l.b16 %v1275
    %v1297 = vunpack.c.l.b16 %v1276
    %v1298 = vunpack.c.l.b16 %v1277
    %v1299 = vunpack.c.l.b16 %v1278
    %v1300 = vpack.c.b16 %v1297, %v1296
    %v1301 = vpack.c.b16 %v1299, %v1298
    %v1305 = vsel %vm37, %v1291, 0
    %1307 = vmatprep.subr.bf16.mxu0 0
    %1308 = vmatpush1.bf16.msra.mxu0 0
    %1309 = vmatprep.subr.bf16.mxu0 0
    %1310 = vmatpush1.bf16.msra.mxu0 0
    %1311 = vmatprep.subr.bf16.mxu0 0
    %1312 = vmatpush1.bf16.msra.mxu0 0
    %1313 = vmatprep.subr.bf16.mxu0 0
    %1314 = vmatpush1.bf16.msra.mxu0 0
    %1315 = vmatprep.subr.bf16.mxu0 0
    %1316 = vmatpush1.bf16.msra.mxu0 0
    %1317 = vmatprep.subr.bf16.mxu0 0
    %1318 = vmatpush1.bf16.msra.mxu0 0
    %1319 = vmatprep.subr.bf16.mxu0 0
    %1320 = vmatpush1.bf16.msra.mxu0 %v1301
    %1321 = vmatprep.subr.bf16.mxu0 0
    %1322 = vmatpush1.bf16.msra.mxu0 %v1300
    %1323 = vmatprep.subr.bf16.mxu0 0
    %1324 = vmatpush2.bf16.msra.mxu0 0
    %1325 = vmatprep.subr.bf16.mxu0 0
    %1326 = vmatpush2.bf16.msra.mxu0 0
    %1327 = vmatprep.subr.bf16.mxu0 0
    %1328 = vmatpush2.bf16.msra.mxu0 0
    %1329 = vmatprep.subr.bf16.mxu0 0
    %1330 = vmatpush2.bf16.msra.mxu0 0
    %1331 = vmatprep.subr.bf16.mxu0 0
    %1332 = vmatpush2.bf16.msra.mxu0 0
    %1333 = vmatprep.subr.bf16.mxu0 0
    %1334 = vmatpush2.bf16.msra.mxu0 0
    %1335 = vmatprep.subr.bf16.mxu0 0
    %1336 = vmatpush2.bf16.msra.mxu0 0
    %1337 = vmatprep.subr.bf16.mxu0 0
    %1338 = vmatpush2.bf16.msra.mxu0 0
    %1339 = vmatprep.mubr.bf16.mxu0 0
    %1340 = vmatmul.mubr.bf16.gmra.mxu0 %v1305
    %v1341 = vpop.f32.mrf.mxu0
    %v1342 = vadd.f32 %v1283, %v1341
    %v1343 = vpop.f32.mrf.mxu0
    %v1344 = vpop.f32.mrf.mxu0
    %v1345 = vpop.f32.mrf.mxu0
    %1346 = vdwg.mxu0
    %v1347 = vld [vmem:[%s3 + $0x80] sm:$0xf]
    %v1348 = vld [vmem:[%s3 + $0x84] sm:$0xf]
    %v1349 = vld [vmem:[%s3 + $0x88] sm:$0xf]
    %v1350 = vld [vmem:[%s3 + $0x8c] sm:$0xf]
    %v1351 = vld [vmem:[%s7 + $0x12] sm:$0x1]
    %v1352 = vlaneseq
    %v1353 = vshrl.u32 %v1352, 7
    %v1354 = vsub.s32 0, %v1353
    %v1355 = vrot.slane %v1351, %v1354
    %v1360 = vunpack.c.l.b16 %v1347
    %v1361 = vunpack.c.l.b16 %v1348
    %v1362 = vunpack.c.l.b16 %v1349
    %v1363 = vunpack.c.l.b16 %v1350
    %v1364 = vpack.c.b16 %v1361, %v1360
    %v1365 = vpack.c.b16 %v1363, %v1362
    %v1369 = vsel %vm37, %v1274, 0
    %1371 = vmatprep.subr.bf16.mxu0 0
    %1372 = vmatpush1.bf16.msra.mxu0 0
    %1373 = vmatprep.subr.bf16.mxu0 0
    %1374 = vmatpush1.bf16.msra.mxu0 0
    %1375 = vmatprep.subr.bf16.mxu0 0
    %1376 = vmatpush1.bf16.msra.mxu0 0
    %1377 = vmatprep.subr.bf16.mxu0 0
    %1378 = vmatpush1.bf16.msra.mxu0 0
    %1379 = vmatprep.subr.bf16.mxu0 0
    %1380 = vmatpush1.bf16.msra.mxu0 0
    %1381 = vmatprep.subr.bf16.mxu0 0
    %1382 = vmatpush1.bf16.msra.mxu0 0
    %1383 = vmatprep.subr.bf16.mxu0 0
    %1384 = vmatpush1.bf16.msra.mxu0 %v1365
    %1385 = vmatprep.subr.bf16.mxu0 0
    %1386 = vmatpush1.bf16.msra.mxu0 %v1364
    %1387 = vmatprep.subr.bf16.mxu0 0
    %1388 = vmatpush2.bf16.msra.mxu0 0
    %1389 = vmatprep.subr.bf16.mxu0 0
    %1390 = vmatpush2.bf16.msra.mxu0 0
    %1391 = vmatprep.subr.bf16.mxu0 0
    %1392 = vmatpush2.bf16.msra.mxu0 0
    %1393 = vmatprep.subr.bf16.mxu0 0
    %1394 = vmatpush2.bf16.msra.mxu0 0
    %1395 = vmatprep.subr.bf16.mxu0 0
    %1396 = vmatpush2.bf16.msra.mxu0 0
    %1397 = vmatprep.subr.bf16.mxu0 0
    %1398 = vmatpush2.bf16.msra.mxu0 0
    %1399 = vmatprep.subr.bf16.mxu0 0
    %1400 = vmatpush2.bf16.msra.mxu0 0
    %1401 = vmatprep.subr.bf16.mxu0 0
    %1402 = vmatpush2.bf16.msra.mxu0 0
    %1403 = vmatprep.mubr.bf16.mxu0 0
    %1404 = vmatmul.mubr.bf16.gmra.mxu0 %v1369
    %v1405 = vpop.f32.mrf.mxu0
    %v1406 = vadd.f32 %v1355, %v1405
    %v1407 = vpop.f32.mrf.mxu0
    %v1408 = vpop.f32.mrf.mxu0
    %v1409 = vadd.f32 %v1355, %v1408
    %v1410 = vpop.f32.mrf.mxu0
    %1411 = vdwg.mxu0
    %v1412 = vld [vmem:[%s3 + $0xa0] sm:$0xf]
    %v1413 = vld [vmem:[%s3 + $0xa4] sm:$0xf]
    %v1414 = vld [vmem:[%s3 + $0xa8] sm:$0xf]
    %v1415 = vld [vmem:[%s3 + $0xac] sm:$0xf]
    %v1416 = vld [vmem:[%s7 + $0x14] sm:$0x1]
    %v1417 = vlaneseq
    %v1418 = vshrl.u32 %v1417, 7
    %v1419 = vsub.s32 0, %v1418
    %v1420 = vrot.slane %v1416, %v1419
    %v1425 = vunpack.c.l.b16 %v1412
    %v1426 = vunpack.c.l.b16 %v1413
    %v1427 = vunpack.c.l.b16 %v1414
    %v1428 = vunpack.c.l.b16 %v1415
    %v1429 = vpack.c.b16 %v1426, %v1425
    %v1430 = vpack.c.b16 %v1428, %v1427
    %1433 = vmatprep.subr.bf16.mxu0 0
    %1434 = vmatpush1.bf16.msra.mxu0 0
    %1435 = vmatprep.subr.bf16.mxu0 0
    %1436 = vmatpush1.bf16.msra.mxu0 0
    %1437 = vmatprep.subr.bf16.mxu0 0
    %1438 = vmatpush1.bf16.msra.mxu0 0
    %1439 = vmatprep.subr.bf16.mxu0 0
    %1440 = vmatpush1.bf16.msra.mxu0 0
    %1441 = vmatprep.subr.bf16.mxu0 0
    %1442 = vmatpush1.bf16.msra.mxu0 0
    %1443 = vmatprep.subr.bf16.mxu0 0
    %1444 = vmatpush1.bf16.msra.mxu0 0
    %1445 = vmatprep.subr.bf16.mxu0 0
    %1446 = vmatpush1.bf16.msra.mxu0 %v1430
    %1447 = vmatprep.subr.bf16.mxu0 0
    %1448 = vmatpush1.bf16.msra.mxu0 %v1429
    %1449 = vmatprep.subr.bf16.mxu0 0
    %1450 = vmatpush2.bf16.msra.mxu0 0
    %1451 = vmatprep.subr.bf16.mxu0 0
    %1452 = vmatpush2.bf16.msra.mxu0 0
    %1453 = vmatprep.subr.bf16.mxu0 0
    %1454 = vmatpush2.bf16.msra.mxu0 0
    %1455 = vmatprep.subr.bf16.mxu0 0
    %1456 = vmatpush2.bf16.msra.mxu0 0
    %1457 = vmatprep.subr.bf16.mxu0 0
    %1458 = vmatpush2.bf16.msra.mxu0 0
    %1459 = vmatprep.subr.bf16.mxu0 0
    %1460 = vmatpush2.bf16.msra.mxu0 0
    %1461 = vmatprep.subr.bf16.mxu0 0
    %1462 = vmatpush2.bf16.msra.mxu0 0
    %1463 = vmatprep.subr.bf16.mxu0 0
    %1464 = vmatpush2.bf16.msra.mxu0 0
    %1465 = vmatprep.mubr.bf16.mxu0 0
    %1466 = vmatmul.mubr.bf16.gmra.mxu0 %v1369
    %v1467 = vpop.f32.mrf.mxu0
    %v1468 = vadd.f32 %v1420, %v1467
    %v1469 = vpop.f32.mrf.mxu0
    %v1470 = vpop.f32.mrf.mxu0
    %v1471 = vadd.f32 %v1420, %v1470
    %v1472 = vpop.f32.mrf.mxu0
    %1473 = vdwg.mxu0
    %v1476 = vunpack.c.l.s4 1966171168
    %v1477 = vunpack.c.0.s8 %v1476
    %v1478 = vlaneseq
    %v1479 = vshrl.u32 %v1478, 7
    %v1480 = vsub.s32 %v1477, %v1479
    %v1481 = vrot.slane %v1342, %v1480
    %v1482 = vcombine.high %v1481, %v1481
    %v1484 = vunpack.c.l.s4 1966171168
    %v1485 = vunpack.c.0.s8 %v1484
    %v1486 = vlaneseq
    %v1487 = vshrl.u32 %v1486, 7
    %v1488 = vsub.s32 %v1485, %v1487
    %v1489 = vrot.slane %v1481, %v1488
    %v1491 = vunpack.c.l.s4 1966171168
    %v1492 = vunpack.c.0.s8 %v1491
    %v1493 = vlaneseq
    %v1494 = vshrl.u32 %v1493, 7
    %v1495 = vsub.s32 %v1492, %v1494
    %v1496 = vrot.slane %v1482, %v1495
    %v1499 = vpack.c.bf16 %v1489, %v1489
    %v1500 = vpack.c.bf16 %v1496, %v1496
    %v1501 = vpack.c.bf16 %v1406, %v1406
    %v1502 = vpack.c.bf16 %v1409, %v1409
    %v1503 = vpack.c.bf16 %v1468, %v1468
    %v1504 = vpack.c.bf16 %v1471, %v1471
    %v1506 = vsel %vm273, %v1499, 0
    %v1509 = vsel %vm273, %v1501, 0
    %1511 = vmatprep.subr.bf16.mxu0 0
    %1512 = vmatpush1.bf16.xpose.msra.mxu0 0
    %1513 = vmatprep.subr.bf16.mxu0 0
    %1514 = vmatpush1.bf16.xpose.msra.mxu0 0
    %1515 = vmatprep.subr.bf16.mxu0 0
    %1516 = vmatpush1.bf16.xpose.msra.mxu0 0
    %1517 = vmatprep.subr.bf16.mxu0 0
    %1518 = vmatpush1.bf16.xpose.msra.mxu0 0
    %1519 = vmatprep.subr.bf16.mxu0 0
    %1520 = vmatpush1.bf16.xpose.msra.mxu0 0
    %1521 = vmatprep.subr.bf16.mxu0 0
    %1522 = vmatpush1.bf16.xpose.msra.mxu0 0
    %1523 = vmatprep.subr.bf16.mxu0 0
    %1524 = vmatpush1.bf16.xpose.msra.mxu0 0
    %1525 = vmatprep.subr.bf16.mxu0 0
    %1526 = vmatpush1.bf16.xpose.msra.mxu0 %v1509
    %1527 = vmatprep.subr.bf16.mxu0 0
    %1528 = vmatpush2.bf16.xpose.msra.mxu0 0
    %1529 = vmatprep.subr.bf16.mxu0 0
    %1530 = vmatpush2.bf16.xpose.msra.mxu0 0
    %1531 = vmatprep.subr.bf16.mxu0 0
    %1532 = vmatpush2.bf16.xpose.msra.mxu0 0
    %1533 = vmatprep.subr.bf16.mxu0 0
    %1534 = vmatpush2.bf16.xpose.msra.mxu0 0
    %1535 = vmatprep.subr.bf16.mxu0 0
    %1536 = vmatpush2.bf16.xpose.msra.mxu0 0
    %1537 = vmatprep.subr.bf16.mxu0 0
    %1538 = vmatpush2.bf16.xpose.msra.mxu0 0
    %1539 = vmatprep.subr.bf16.mxu0 0
    %1540 = vmatpush2.bf16.xpose.msra.mxu0 0
    %1541 = vmatprep.subr.bf16.mxu0 0
    %1542 = vmatpush2.bf16.xpose.msra.mxu0 0
    %1543 = vmatprep.mubr.bf16.mxu0 0
    %1544 = vmatmul.mubr.bf16.gmra.mxu0 %v1506
    %v1545 = vpop.f32.mrf.mxu0
    %v1546 = vadd.f32 0.0, %v1545
    %v1547 = vpop.f32.mrf.mxu0
    %v1548 = vpop.f32.mrf.mxu0
    %v1549 = vpop.f32.mrf.mxu0
    %1550 = vdwg.mxu0
    %v1552 = vsel %vm273, %v1500, 0
    %v1555 = vsel %vm273, %v1502, 0
    %1557 = vmatprep.subr.bf16.mxu0 0
    %1558 = vmatpush1.bf16.xpose.msra.mxu0 0
    %1559 = vmatprep.subr.bf16.mxu0 0
    %1560 = vmatpush1.bf16.xpose.msra.mxu0 0
    %1561 = vmatprep.subr.bf16.mxu0 0
    %1562 = vmatpush1.bf16.xpose.msra.mxu0 0
    %1563 = vmatprep.subr.bf16.mxu0 0
    %1564 = vmatpush1.bf16.xpose.msra.mxu0 0
    %1565 = vmatprep.subr.bf16.mxu0 0
    %1566 = vmatpush1.bf16.xpose.msra.mxu0 0
    %1567 = vmatprep.subr.bf16.mxu0 0
    %1568 = vmatpush1.bf16.xpose.msra.mxu0 0
    %1569 = vmatprep.subr.bf16.mxu0 0
    %1570 = vmatpush1.bf16.xpose.msra.mxu0 0
    %1571 = vmatprep.subr.bf16.mxu0 0
    %1572 = vmatpush1.bf16.xpose.msra.mxu0 %v1555
    %1573 = vmatprep.subr.bf16.mxu0 0
    %1574 = vmatpush2.bf16.xpose.msra.mxu0 0
    %1575 = vmatprep.subr.bf16.mxu0 0
    %1576 = vmatpush2.bf16.xpose.msra.mxu0 0
    %1577 = vmatprep.subr.bf16.mxu0 0
    %1578 = vmatpush2.bf16.xpose.msra.mxu0 0
    %1579 = vmatprep.subr.bf16.mxu0 0
    %1580 = vmatpush2.bf16.xpose.msra.mxu0 0
    %1581 = vmatprep.subr.bf16.mxu0 0
    %1582 = vmatpush2.bf16.xpose.msra.mxu0 0
    %1583 = vmatprep.subr.bf16.mxu0 0
    %1584 = vmatpush2.bf16.xpose.msra.mxu0 0
    %1585 = vmatprep.subr.bf16.mxu0 0
    %1586 = vmatpush2.bf16.xpose.msra.mxu0 0
    %1587 = vmatprep.subr.bf16.mxu0 0
    %1588 = vmatpush2.bf16.xpose.msra.mxu0 0
    %1589 = vmatprep.mubr.bf16.mxu0 0
    %1590 = vmatmul.mubr.bf16.gmra.mxu0 %v1552
    %v1591 = vpop.f32.mrf.mxu0
    %v1592 = vadd.f32 0.0, %v1591
    %v1593 = vpop.f32.mrf.mxu0
    %v1594 = vpop.f32.mrf.mxu0
    %v1595 = vpop.f32.mrf.mxu0
    %1596 = vdwg.mxu0
    %v1597 = vmul.f32 %v1546, 0.25
    %v1598 = vmul.f32 %v1592, 0.25
    %v1599 = vadd.f32 %v1597, %v31
    %v1600 = vadd.f32 %v1598, %v32
    %vm1601 = vcmask 57344
    %v1602 = vsel %vm1601, %v1599, -inf
    %1603 = vmax.xlane.f32.xlu0 %v1602
    %v1604 = vpop.xlane.xlu0 %1603
    %v1605 = vsel %vm1601, %v1600, -inf
    %1606 = vmax.xlane.f32.xlu0 %v1605
    %v1607 = vpop.xlane.xlu0 %1606
    %v1608 = vsub.f32 %v1599, %v1604
    %v1609 = vsub.f32 %v1600, %v1607
    %v1610 = vmul.f32 %v1608, 1.442695
    %v1611 = vpow.pop %v1610
    %v1612 = vmul.f32 %v1609, 1.442695
    %v1613 = vpow.pop %v1612
    %v1614 = vsel %vm1601, %v1611, 0.0
    %1615 = vadd.xlane.f32.xlu0 %v1614
    %v1616 = vpop.xlane.xlu0 %1615
    %v1617 = vsel %vm1601, %v1613, 0.0
    %1618 = vadd.xlane.f32.xlu0 %v1617
    %v1619 = vpop.xlane.xlu0 %1618
    %v1620 = vrcp.pop %v1616
    %v1621 = vmul.f32 %v1611, %v1620
    %v1622 = vrcp.pop %v1619
    %v1623 = vmul.f32 %v1613, %v1622
    %v1624 = vpack.c.bf16 %v1621, %v1621
    %v1625 = vpack.c.bf16 %v1623, %v1623
    %v1627 = vsel %vm382, %v1624, 0
    %v1630 = vsel %vm410, %v1503, 0
    %1632 = vmatprep.subr.bf16.mxu0 0
    %1633 = vmatpush1.bf16.msra.mxu0 0
    %1634 = vmatprep.subr.bf16.mxu0 0
    %1635 = vmatpush1.bf16.msra.mxu0 0
    %1636 = vmatprep.subr.bf16.mxu0 0
    %1637 = vmatpush1.bf16.msra.mxu0 0
    %1638 = vmatprep.subr.bf16.mxu0 0
    %1639 = vmatpush1.bf16.msra.mxu0 0
    %1640 = vmatprep.subr.bf16.mxu0 0
    %1641 = vmatpush1.bf16.msra.mxu0 0
    %1642 = vmatprep.subr.bf16.mxu0 0
    %1643 = vmatpush1.bf16.msra.mxu0 0
    %1644 = vmatprep.subr.bf16.mxu0 0
    %1645 = vmatpush1.bf16.msra.mxu0 0
    %1646 = vmatprep.subr.bf16.mxu0 0
    %1647 = vmatpush1.bf16.msra.mxu0 %v1630
    %1648 = vmatprep.subr.bf16.mxu0 0
    %1649 = vmatpush2.bf16.msra.mxu0 0
    %1650 = vmatprep.subr.bf16.mxu0 0
    %1651 = vmatpush2.bf16.msra.mxu0 0
    %1652 = vmatprep.subr.bf16.mxu0 0
    %1653 = vmatpush2.bf16.msra.mxu0 0
    %1654 = vmatprep.subr.bf16.mxu0 0
    %1655 = vmatpush2.bf16.msra.mxu0 0
    %1656 = vmatprep.subr.bf16.mxu0 0
    %1657 = vmatpush2.bf16.msra.mxu0 0
    %1658 = vmatprep.subr.bf16.mxu0 0
    %1659 = vmatpush2.bf16.msra.mxu0 0
    %1660 = vmatprep.subr.bf16.mxu0 0
    %1661 = vmatpush2.bf16.msra.mxu0 0
    %1662 = vmatprep.subr.bf16.mxu0 0
    %1663 = vmatpush2.bf16.msra.mxu0 0
    %1664 = vmatprep.mubr.bf16.mxu0 0
    %1665 = vmatmul.mubr.bf16.gmra.mxu0 %v1627
    %v1666 = vpop.f32.mrf.mxu0
    %v1667 = vadd.f32 0.0, %v1666
    %v1668 = vpop.f32.mrf.mxu0
    %v1669 = vpop.f32.mrf.mxu0
    %v1670 = vpop.f32.mrf.mxu0
    %1671 = vdwg.mxu0
    %v1673 = vsel %vm382, %v1625, 0
    %v1676 = vsel %vm410, %v1504, 0
    %1678 = vmatprep.subr.bf16.mxu0 0
    %1679 = vmatpush1.bf16.msra.mxu0 0
    %1680 = vmatprep.subr.bf16.mxu0 0
    %1681 = vmatpush1.bf16.msra.mxu0 0
    %1682 = vmatprep.subr.bf16.mxu0 0
    %1683 = vmatpush1.bf16.msra.mxu0 0
    %1684 = vmatprep.subr.bf16.mxu0 0
    %1685 = vmatpush1.bf16.msra.mxu0 0
    %1686 = vmatprep.subr.bf16.mxu0 0
    %1687 = vmatpush1.bf16.msra.mxu0 0
    %1688 = vmatprep.subr.bf16.mxu0 0
    %1689 = vmatpush1.bf16.msra.mxu0 0
    %1690 = vmatprep.subr.bf16.mxu0 0
    %1691 = vmatpush1.bf16.msra.mxu0 0
    %1692 = vmatprep.subr.bf16.mxu0 0
    %1693 = vmatpush1.bf16.msra.mxu0 %v1676
    %1694 = vmatprep.subr.bf16.mxu0 0
    %1695 = vmatpush2.bf16.msra.mxu0 0
    %1696 = vmatprep.subr.bf16.mxu0 0
    %1697 = vmatpush2.bf16.msra.mxu0 0
    %1698 = vmatprep.subr.bf16.mxu0 0
    %1699 = vmatpush2.bf16.msra.mxu0 0
    %1700 = vmatprep.subr.bf16.mxu0 0
    %1701 = vmatpush2.bf16.msra.mxu0 0
    %1702 = vmatprep.subr.bf16.mxu0 0
    %1703 = vmatpush2.bf16.msra.mxu0 0
    %1704 = vmatprep.subr.bf16.mxu0 0
    %1705 = vmatpush2.bf16.msra.mxu0 0
    %1706 = vmatprep.subr.bf16.mxu0 0
    %1707 = vmatpush2.bf16.msra.mxu0 0
    %1708 = vmatprep.subr.bf16.mxu0 0
    %1709 = vmatpush2.bf16.msra.mxu0 0
    %1710 = vmatprep.mubr.bf16.mxu0 0
    %1711 = vmatmul.mubr.bf16.gmra.mxu0 %v1673
    %v1712 = vpop.f32.mrf.mxu0
    %v1713 = vadd.f32 0.0, %v1712
    %v1714 = vpop.f32.mrf.mxu0
    %v1715 = vpop.f32.mrf.mxu0
    %v1716 = vpop.f32.mrf.mxu0
    %1717 = vdwg.mxu0
    %v1718 = vpack.c.bf16 %v1667, %v1667
    %v1719 = vpack.c.bf16 %v1713, %v1713
    %v1720 = vld [vmem:[%s4 + $0x10] sm:$0xf]
    %v1721 = vld [vmem:[%s4 + $0x14] sm:$0xf]
    %v1722 = vld [vmem:[%s3 + $0x70] sm:$0xf]
    %v1723 = vld [vmem:[%s3 + $0x74] sm:$0xf]
    %v1724 = vld [vmem:[%s3 + $0x78] sm:$0xf]
    %v1725 = vld [vmem:[%s3 + $0x7c] sm:$0xf]
    %v1726 = vld [vmem:[%s7 + $0x11] sm:$0x1]
    %v1727 = vlaneseq
    %v1728 = vshrl.u32 %v1727, 7
    %v1729 = vsub.s32 0, %v1728
    %v1730 = vrot.slane %v1726, %v1729
    %v1735 = vunpack.c.l.b16 %v1722
    %v1736 = vunpack.c.l.b16 %v1723
    %v1737 = vunpack.c.l.b16 %v1724
    %v1738 = vunpack.c.l.b16 %v1725
    %v1739 = vpack.c.b16 %v1736, %v1735
    %v1740 = vpack.c.b16 %v1738, %v1737
    %1743 = vmatprep.subr.bf16.mxu0 0
    %1744 = vmatpush1.bf16.msra.mxu0 0
    %1745 = vmatprep.subr.bf16.mxu0 0
    %1746 = vmatpush1.bf16.msra.mxu0 0
    %1747 = vmatprep.subr.bf16.mxu0 0
    %1748 = vmatpush1.bf16.msra.mxu0 0
    %1749 = vmatprep.subr.bf16.mxu0 0
    %1750 = vmatpush1.bf16.msra.mxu0 0
    %1751 = vmatprep.subr.bf16.mxu0 0
    %1752 = vmatpush1.bf16.msra.mxu0 0
    %1753 = vmatprep.subr.bf16.mxu0 0
    %1754 = vmatpush1.bf16.msra.mxu0 0
    %1755 = vmatprep.subr.bf16.mxu0 0
    %1756 = vmatpush1.bf16.msra.mxu0 %v1740
    %1757 = vmatprep.subr.bf16.mxu0 0
    %1758 = vmatpush1.bf16.msra.mxu0 %v1739
    %1759 = vmatprep.subr.bf16.mxu0 0
    %1760 = vmatpush2.bf16.msra.mxu0 0
    %1761 = vmatprep.subr.bf16.mxu0 0
    %1762 = vmatpush2.bf16.msra.mxu0 0
    %1763 = vmatprep.subr.bf16.mxu0 0
    %1764 = vmatpush2.bf16.msra.mxu0 0
    %1765 = vmatprep.subr.bf16.mxu0 0
    %1766 = vmatpush2.bf16.msra.mxu0 0
    %1767 = vmatprep.subr.bf16.mxu0 0
    %1768 = vmatpush2.bf16.msra.mxu0 0
    %1769 = vmatprep.subr.bf16.mxu0 0
    %1770 = vmatpush2.bf16.msra.mxu0 0
    %1771 = vmatprep.subr.bf16.mxu0 0
    %1772 = vmatpush2.bf16.msra.mxu0 0
    %1773 = vmatprep.subr.bf16.mxu0 0
    %1774 = vmatpush2.bf16.msra.mxu0 0
    %1775 = vmatprep.mubr.bf16.mxu0 0
    %1776 = vmatmul.mubr.bf16.gmra.mxu0 %v1305
    %v1777 = vpop.f32.mrf.mxu0
    %v1778 = vadd.f32 %v1730, %v1777
    %v1779 = vpop.f32.mrf.mxu0
    %v1780 = vpop.f32.mrf.mxu0
    %v1781 = vpop.f32.mrf.mxu0
    %1782 = vdwg.mxu0
    %v1783 = vld [vmem:[%s3 + $0x90] sm:$0xf]
    %v1784 = vld [vmem:[%s3 + $0x94] sm:$0xf]
    %v1785 = vld [vmem:[%s3 + $0x98] sm:$0xf]
    %v1786 = vld [vmem:[%s3 + $0x9c] sm:$0xf]
    %v1787 = vld [vmem:[%s7 + $0x13] sm:$0x1]
    %v1788 = vlaneseq
    %v1789 = vshrl.u32 %v1788, 7
    %v1790 = vsub.s32 0, %v1789
    %v1791 = vrot.slane %v1787, %v1790
    %v1796 = vunpack.c.l.b16 %v1783
    %v1797 = vunpack.c.l.b16 %v1784
    %v1798 = vunpack.c.l.b16 %v1785
    %v1799 = vunpack.c.l.b16 %v1786
    %v1800 = vpack.c.b16 %v1797, %v1796
    %v1801 = vpack.c.b16 %v1799, %v1798
    %1804 = vmatprep.subr.bf16.mxu0 0
    %1805 = vmatpush1.bf16.msra.mxu0 0
    %1806 = vmatprep.subr.bf16.mxu0 0
    %1807 = vmatpush1.bf16.msra.mxu0 0
    %1808 = vmatprep.subr.bf16.mxu0 0
    %1809 = vmatpush1.bf16.msra.mxu0 0
    %1810 = vmatprep.subr.bf16.mxu0 0
    %1811 = vmatpush1.bf16.msra.mxu0 0
    %1812 = vmatprep.subr.bf16.mxu0 0
    %1813 = vmatpush1.bf16.msra.mxu0 0
    %1814 = vmatprep.subr.bf16.mxu0 0
    %1815 = vmatpush1.bf16.msra.mxu0 0
    %1816 = vmatprep.subr.bf16.mxu0 0
    %1817 = vmatpush1.bf16.msra.mxu0 %v1801
    %1818 = vmatprep.subr.bf16.mxu0 0
    %1819 = vmatpush1.bf16.msra.mxu0 %v1800
    %1820 = vmatprep.subr.bf16.mxu0 0
    %1821 = vmatpush2.bf16.msra.mxu0 0
    %1822 = vmatprep.subr.bf16.mxu0 0
    %1823 = vmatpush2.bf16.msra.mxu0 0
    %1824 = vmatprep.subr.bf16.mxu0 0
    %1825 = vmatpush2.bf16.msra.mxu0 0
    %1826 = vmatprep.subr.bf16.mxu0 0
    %1827 = vmatpush2.bf16.msra.mxu0 0
    %1828 = vmatprep.subr.bf16.mxu0 0
    %1829 = vmatpush2.bf16.msra.mxu0 0
    %1830 = vmatprep.subr.bf16.mxu0 0
    %1831 = vmatpush2.bf16.msra.mxu0 0
    %1832 = vmatprep.subr.bf16.mxu0 0
    %1833 = vmatpush2.bf16.msra.mxu0 0
    %1834 = vmatprep.subr.bf16.mxu0 0
    %1835 = vmatpush2.bf16.msra.mxu0 0
    %1836 = vmatprep.mubr.bf16.mxu0 0
    %1837 = vmatmul.mubr.bf16.gmra.mxu0 %v1369
    %v1838 = vpop.f32.mrf.mxu0
    %v1839 = vadd.f32 %v1791, %v1838
    %v1840 = vpop.f32.mrf.mxu0
    %v1841 = vpop.f32.mrf.mxu0
    %v1842 = vadd.f32 %v1791, %v1841
    %v1843 = vpop.f32.mrf.mxu0
    %1844 = vdwg.mxu0
    %v1845 = vld [vmem:[%s3 + $0xb0] sm:$0xf]
    %v1846 = vld [vmem:[%s3 + $0xb4] sm:$0xf]
    %v1847 = vld [vmem:[%s3 + $0xb8] sm:$0xf]
    %v1848 = vld [vmem:[%s3 + $0xbc] sm:$0xf]
    %v1849 = vld [vmem:[%s7 + $0x15] sm:$0x1]
    %v1850 = vlaneseq
    %v1851 = vshrl.u32 %v1850, 7
    %v1852 = vsub.s32 0, %v1851
    %v1853 = vrot.slane %v1849, %v1852
    %v1858 = vunpack.c.l.b16 %v1845
    %v1859 = vunpack.c.l.b16 %v1846
    %v1860 = vunpack.c.l.b16 %v1847
    %v1861 = vunpack.c.l.b16 %v1848
    %v1862 = vpack.c.b16 %v1859, %v1858
    %v1863 = vpack.c.b16 %v1861, %v1860
    %1866 = vmatprep.subr.bf16.mxu0 0
    %1867 = vmatpush1.bf16.msra.mxu0 0
    %1868 = vmatprep.subr.bf16.mxu0 0
    %1869 = vmatpush1.bf16.msra.mxu0 0
    %1870 = vmatprep.subr.bf16.mxu0 0
    %1871 = vmatpush1.bf16.msra.mxu0 0
    %1872 = vmatprep.subr.bf16.mxu0 0
    %1873 = vmatpush1.bf16.msra.mxu0 0
    %1874 = vmatprep.subr.bf16.mxu0 0
    %1875 = vmatpush1.bf16.msra.mxu0 0
    %1876 = vmatprep.subr.bf16.mxu0 0
    %1877 = vmatpush1.bf16.msra.mxu0 0
    %1878 = vmatprep.subr.bf16.mxu0 0
    %1879 = vmatpush1.bf16.msra.mxu0 %v1863
    %1880 = vmatprep.subr.bf16.mxu0 0
    %1881 = vmatpush1.bf16.msra.mxu0 %v1862
    %1882 = vmatprep.subr.bf16.mxu0 0
    %1883 = vmatpush2.bf16.msra.mxu0 0
    %1884 = vmatprep.subr.bf16.mxu0 0
    %1885 = vmatpush2.bf16.msra.mxu0 0
    %1886 = vmatprep.subr.bf16.mxu0 0
    %1887 = vmatpush2.bf16.msra.mxu0 0
    %1888 = vmatprep.subr.bf16.mxu0 0
    %1889 = vmatpush2.bf16.msra.mxu0 0
    %1890 = vmatprep.subr.bf16.mxu0 0
    %1891 = vmatpush2.bf16.msra.mxu0 0
    %1892 = vmatprep.subr.bf16.mxu0 0
    %1893 = vmatpush2.bf16.msra.mxu0 0
    %1894 = vmatprep.subr.bf16.mxu0 0
    %1895 = vmatpush2.bf16.msra.mxu0 0
    %1896 = vmatprep.subr.bf16.mxu0 0
    %1897 = vmatpush2.bf16.msra.mxu0 0
    %1898 = vmatprep.mubr.bf16.mxu0 0
    %1899 = vmatmul.mubr.bf16.gmra.mxu0 %v1369
    %v1900 = vpop.f32.mrf.mxu0
    %v1901 = vadd.f32 %v1853, %v1900
    %v1902 = vpop.f32.mrf.mxu0
    %v1903 = vpop.f32.mrf.mxu0
    %v1904 = vadd.f32 %v1853, %v1903
    %v1905 = vpop.f32.mrf.mxu0
    %1906 = vdwg.mxu0
    %v1909 = vunpack.c.l.s4 1966171168
    %v1910 = vunpack.c.0.s8 %v1909
    %v1911 = vlaneseq
    %v1912 = vshrl.u32 %v1911, 7
    %v1913 = vsub.s32 %v1910, %v1912
    %v1914 = vrot.slane %v1778, %v1913
    %v1915 = vcombine.high %v1914, %v1914
    %v1917 = vunpack.c.l.s4 1966171168
    %v1918 = vunpack.c.0.s8 %v1917
    %v1919 = vlaneseq
    %v1920 = vshrl.u32 %v1919, 7
    %v1921 = vsub.s32 %v1918, %v1920
    %v1922 = vrot.slane %v1914, %v1921
    %v1924 = vunpack.c.l.s4 1966171168
    %v1925 = vunpack.c.0.s8 %v1924
    %v1926 = vlaneseq
    %v1927 = vshrl.u32 %v1926, 7
    %v1928 = vsub.s32 %v1925, %v1927
    %v1929 = vrot.slane %v1915, %v1928
    %v1932 = vpack.c.bf16 %v1922, %v1922
    %v1933 = vpack.c.bf16 %v1929, %v1929
    %v1934 = vpack.c.bf16 %v1839, %v1839
    %v1935 = vpack.c.bf16 %v1842, %v1842
    %v1936 = vpack.c.bf16 %v1901, %v1901
    %v1937 = vpack.c.bf16 %v1904, %v1904
    %v1939 = vsel %vm273, %v1932, 0
    %v1942 = vsel %vm273, %v1934, 0
    %1944 = vmatprep.subr.bf16.mxu0 0
    %1945 = vmatpush1.bf16.xpose.msra.mxu0 0
    %1946 = vmatprep.subr.bf16.mxu0 0
    %1947 = vmatpush1.bf16.xpose.msra.mxu0 0
    %1948 = vmatprep.subr.bf16.mxu0 0
    %1949 = vmatpush1.bf16.xpose.msra.mxu0 0
    %1950 = vmatprep.subr.bf16.mxu0 0
    %1951 = vmatpush1.bf16.xpose.msra.mxu0 0
    %1952 = vmatprep.subr.bf16.mxu0 0
    %1953 = vmatpush1.bf16.xpose.msra.mxu0 0
    %1954 = vmatprep.subr.bf16.mxu0 0
    %1955 = vmatpush1.bf16.xpose.msra.mxu0 0
    %1956 = vmatprep.subr.bf16.mxu0 0
    %1957 = vmatpush1.bf16.xpose.msra.mxu0 0
    %1958 = vmatprep.subr.bf16.mxu0 0
    %1959 = vmatpush1.bf16.xpose.msra.mxu0 %v1942
    %1960 = vmatprep.subr.bf16.mxu0 0
    %1961 = vmatpush2.bf16.xpose.msra.mxu0 0
    %1962 = vmatprep.subr.bf16.mxu0 0
    %1963 = vmatpush2.bf16.xpose.msra.mxu0 0
    %1964 = vmatprep.subr.bf16.mxu0 0
    %1965 = vmatpush2.bf16.xpose.msra.mxu0 0
    %1966 = vmatprep.subr.bf16.mxu0 0
    %1967 = vmatpush2.bf16.xpose.msra.mxu0 0
    %1968 = vmatprep.subr.bf16.mxu0 0
    %1969 = vmatpush2.bf16.xpose.msra.mxu0 0
    %1970 = vmatprep.subr.bf16.mxu0 0
    %1971 = vmatpush2.bf16.xpose.msra.mxu0 0
    %1972 = vmatprep.subr.bf16.mxu0 0
    %1973 = vmatpush2.bf16.xpose.msra.mxu0 0
    %1974 = vmatprep.subr.bf16.mxu0 0
    %1975 = vmatpush2.bf16.xpose.msra.mxu0 0
    %1976 = vmatprep.mubr.bf16.mxu0 0
    %1977 = vmatmul.mubr.bf16.gmra.mxu0 %v1939
    %v1978 = vpop.f32.mrf.mxu0
    %v1979 = vadd.f32 0.0, %v1978
    %v1980 = vpop.f32.mrf.mxu0
    %v1981 = vpop.f32.mrf.mxu0
    %v1982 = vpop.f32.mrf.mxu0
    %1983 = vdwg.mxu0
    %v1985 = vsel %vm273, %v1933, 0
    %v1988 = vsel %vm273, %v1935, 0
    %1990 = vmatprep.subr.bf16.mxu0 0
    %1991 = vmatpush1.bf16.xpose.msra.mxu0 0
    %1992 = vmatprep.subr.bf16.mxu0 0
    %1993 = vmatpush1.bf16.xpose.msra.mxu0 0
    %1994 = vmatprep.subr.bf16.mxu0 0
    %1995 = vmatpush1.bf16.xpose.msra.mxu0 0
    %1996 = vmatprep.subr.bf16.mxu0 0
    %1997 = vmatpush1.bf16.xpose.msra.mxu0 0
    %1998 = vmatprep.subr.bf16.mxu0 0
    %1999 = vmatpush1.bf16.xpose.msra.mxu0 0
    %2000 = vmatprep.subr.bf16.mxu0 0
    %2001 = vmatpush1.bf16.xpose.msra.mxu0 0
    %2002 = vmatprep.subr.bf16.mxu0 0
    %2003 = vmatpush1.bf16.xpose.msra.mxu0 0
    %2004 = vmatprep.subr.bf16.mxu0 0
    %2005 = vmatpush1.bf16.xpose.msra.mxu0 %v1988
    %2006 = vmatprep.subr.bf16.mxu0 0
    %2007 = vmatpush2.bf16.xpose.msra.mxu0 0
    %2008 = vmatprep.subr.bf16.mxu0 0
    %2009 = vmatpush2.bf16.xpose.msra.mxu0 0
    %2010 = vmatprep.subr.bf16.mxu0 0
    %2011 = vmatpush2.bf16.xpose.msra.mxu0 0
    %2012 = vmatprep.subr.bf16.mxu0 0
    %2013 = vmatpush2.bf16.xpose.msra.mxu0 0
    %2014 = vmatprep.subr.bf16.mxu0 0
    %2015 = vmatpush2.bf16.xpose.msra.mxu0 0
    %2016 = vmatprep.subr.bf16.mxu0 0
    %2017 = vmatpush2.bf16.xpose.msra.mxu0 0
    %2018 = vmatprep.subr.bf16.mxu0 0
    %2019 = vmatpush2.bf16.xpose.msra.mxu0 0
    %2020 = vmatprep.subr.bf16.mxu0 0
    %2021 = vmatpush2.bf16.xpose.msra.mxu0 0
    %2022 = vmatprep.mubr.bf16.mxu0 0
    %2023 = vmatmul.mubr.bf16.gmra.mxu0 %v1985
    %v2024 = vpop.f32.mrf.mxu0
    %v2025 = vadd.f32 0.0, %v2024
    %v2026 = vpop.f32.mrf.mxu0
    %v2027 = vpop.f32.mrf.mxu0
    %v2028 = vpop.f32.mrf.mxu0
    %2029 = vdwg.mxu0
    %v2030 = vmul.f32 %v1979, 0.25
    %v2031 = vmul.f32 %v2025, 0.25
    %v2032 = vadd.f32 %v2030, %v31
    %v2033 = vadd.f32 %v2031, %v32
    %v2034 = vsel %vm1601, %v2032, -inf
    %2035 = vmax.xlane.f32.xlu0 %v2034
    %v2036 = vpop.xlane.xlu0 %2035
    %v2037 = vsel %vm1601, %v2033, -inf
    %2038 = vmax.xlane.f32.xlu0 %v2037
    %v2039 = vpop.xlane.xlu0 %2038
    %v2040 = vsub.f32 %v2032, %v2036
    %v2041 = vsub.f32 %v2033, %v2039
    %v2042 = vmul.f32 %v2040, 1.442695
    %v2043 = vpow.pop %v2042
    %v2044 = vmul.f32 %v2041, 1.442695
    %v2045 = vpow.pop %v2044
    %v2046 = vsel %vm1601, %v2043, 0.0
    %2047 = vadd.xlane.f32.xlu0 %v2046
    %v2048 = vpop.xlane.xlu0 %2047
    %v2049 = vsel %vm1601, %v2045, 0.0
    %2050 = vadd.xlane.f32.xlu0 %v2049
    %v2051 = vpop.xlane.xlu0 %2050
    %v2052 = vrcp.pop %v2048
    %v2053 = vmul.f32 %v2043, %v2052
    %v2054 = vrcp.pop %v2051
    %v2055 = vmul.f32 %v2045, %v2054
    %v2056 = vpack.c.bf16 %v2053, %v2053
    %v2057 = vpack.c.bf16 %v2055, %v2055
    %v2059 = vsel %vm382, %v2056, 0
    %v2062 = vsel %vm410, %v1936, 0
    %2064 = vmatprep.subr.bf16.mxu0 0
    %2065 = vmatpush1.bf16.msra.mxu0 0
    %2066 = vmatprep.subr.bf16.mxu0 0
    %2067 = vmatpush1.bf16.msra.mxu0 0
    %2068 = vmatprep.subr.bf16.mxu0 0
    %2069 = vmatpush1.bf16.msra.mxu0 0
    %2070 = vmatprep.subr.bf16.mxu0 0
    %2071 = vmatpush1.bf16.msra.mxu0 0
    %2072 = vmatprep.subr.bf16.mxu0 0
    %2073 = vmatpush1.bf16.msra.mxu0 0
    %2074 = vmatprep.subr.bf16.mxu0 0
    %2075 = vmatpush1.bf16.msra.mxu0 0
    %2076 = vmatprep.subr.bf16.mxu0 0
    %2077 = vmatpush1.bf16.msra.mxu0 0
    %2078 = vmatprep.subr.bf16.mxu0 0
    %2079 = vmatpush1.bf16.msra.mxu0 %v2062
    %2080 = vmatprep.subr.bf16.mxu0 0
    %2081 = vmatpush2.bf16.msra.mxu0 0
    %2082 = vmatprep.subr.bf16.mxu0 0
    %2083 = vmatpush2.bf16.msra.mxu0 0
    %2084 = vmatprep.subr.bf16.mxu0 0
    %2085 = vmatpush2.bf16.msra.mxu0 0
    %2086 = vmatprep.subr.bf16.mxu0 0
    %2087 = vmatpush2.bf16.msra.mxu0 0
    %2088 = vmatprep.subr.bf16.mxu0 0
    %2089 = vmatpush2.bf16.msra.mxu0 0
    %2090 = vmatprep.subr.bf16.mxu0 0
    %2091 = vmatpush2.bf16.msra.mxu0 0
    %2092 = vmatprep.subr.bf16.mxu0 0
    %2093 = vmatpush2.bf16.msra.mxu0 0
    %2094 = vmatprep.subr.bf16.mxu0 0
    %2095 = vmatpush2.bf16.msra.mxu0 0
    %2096 = vmatprep.mubr.bf16.mxu0 0
    %2097 = vmatmul.mubr.bf16.gmra.mxu0 %v2059
    %v2098 = vpop.f32.mrf.mxu0
    %v2099 = vadd.f32 0.0, %v2098
    %v2100 = vpop.f32.mrf.mxu0
    %v2101 = vpop.f32.mrf.mxu0
    %v2102 = vpop.f32.mrf.mxu0
    %2103 = vdwg.mxu0
    %v2105 = vsel %vm382, %v2057, 0
    %v2108 = vsel %vm410, %v1937, 0
    %2110 = vmatprep.subr.bf16.mxu0 0
    %2111 = vmatpush1.bf16.msra.mxu0 0
    %2112 = vmatprep.subr.bf16.mxu0 0
    %2113 = vmatpush1.bf16.msra.mxu0 0
    %2114 = vmatprep.subr.bf16.mxu0 0
    %2115 = vmatpush1.bf16.msra.mxu0 0
    %2116 = vmatprep.subr.bf16.mxu0 0
    %2117 = vmatpush1.bf16.msra.mxu0 0
    %2118 = vmatprep.subr.bf16.mxu0 0
    %2119 = vmatpush1.bf16.msra.mxu0 0
    %2120 = vmatprep.subr.bf16.mxu0 0
    %2121 = vmatpush1.bf16.msra.mxu0 0
    %2122 = vmatprep.subr.bf16.mxu0 0
    %2123 = vmatpush1.bf16.msra.mxu0 0
    %2124 = vmatprep.subr.bf16.mxu0 0
    %2125 = vmatpush1.bf16.msra.mxu0 %v2108
    %2126 = vmatprep.subr.bf16.mxu0 0
    %2127 = vmatpush2.bf16.msra.mxu0 0
    %2128 = vmatprep.subr.bf16.mxu0 0
    %2129 = vmatpush2.bf16.msra.mxu0 0
    %2130 = vmatprep.subr.bf16.mxu0 0
    %2131 = vmatpush2.bf16.msra.mxu0 0
    %2132 = vmatprep.subr.bf16.mxu0 0
    %2133 = vmatpush2.bf16.msra.mxu0 0
    %2134 = vmatprep.subr.bf16.mxu0 0
    %2135 = vmatpush2.bf16.msra.mxu0 0
    %2136 = vmatprep.subr.bf16.mxu0 0
    %2137 = vmatpush2.bf16.msra.mxu0 0
    %2138 = vmatprep.subr.bf16.mxu0 0
    %2139 = vmatpush2.bf16.msra.mxu0 0
    %2140 = vmatprep.subr.bf16.mxu0 0
    %2141 = vmatpush2.bf16.msra.mxu0 0
    %2142 = vmatprep.mubr.bf16.mxu0 0
    %2143 = vmatmul.mubr.bf16.gmra.mxu0 %v2105
    %v2144 = vpop.f32.mrf.mxu0
    %v2145 = vadd.f32 0.0, %v2144
    %v2146 = vpop.f32.mrf.mxu0
    %v2147 = vpop.f32.mrf.mxu0
    %v2148 = vpop.f32.mrf.mxu0
    %2149 = vdwg.mxu0
    %v2150 = vpack.c.bf16 %v2099, %v2099
    %v2151 = vpack.c.bf16 %v2145, %v2145
    %v2152 = vld [vmem:[%s4 + $0x18] sm:$0xf]
    %v2153 = vld [vmem:[%s4 + $0x1c] sm:$0xf]
    %v2156 = vunpack.c.l.b16 %v2150
    %v2157 = vunpack.c.l.b16 %v2151
    %v2158 = vrot.slane %v2157, 7
    %v2159 = vsel %vm1289, %v2158, %v2156
    %v2160 = vpack.c.b16 %v2159, %v2159
    %v2163 = vunpack.c.l.b16 %v2152
    %v2164 = vunpack.c.l.b16 %v2153
    %v2165 = vpack.c.b16 %v2164, %v2163
    %v2168 = vsel %vm273, %v2160, 0
    %2170 = vmatprep.subr.bf16.mxu0 0
    %2171 = vmatpush1.bf16.msra.mxu0 0
    %2172 = vmatprep.subr.bf16.mxu0 0
    %2173 = vmatpush1.bf16.msra.mxu0 0
    %2174 = vmatprep.subr.bf16.mxu0 0
    %2175 = vmatpush1.bf16.msra.mxu0 0
    %2176 = vmatprep.subr.bf16.mxu0 0
    %2177 = vmatpush1.bf16.msra.mxu0 0
    %2178 = vmatprep.subr.bf16.mxu0 0
    %2179 = vmatpush1.bf16.msra.mxu0 0
    %2180 = vmatprep.subr.bf16.mxu0 0
    %2181 = vmatpush1.bf16.msra.mxu0 0
    %2182 = vmatprep.subr.bf16.mxu0 0
    %2183 = vmatpush1.bf16.msra.mxu0 0
    %2184 = vmatprep.subr.bf16.mxu0 0
    %2185 = vmatpush1.bf16.msra.mxu0 %v2165
    %2186 = vmatprep.subr.bf16.mxu0 0
    %2187 = vmatpush2.bf16.msra.mxu0 0
    %2188 = vmatprep.subr.bf16.mxu0 0
    %2189 = vmatpush2.bf16.msra.mxu0 0
    %2190 = vmatprep.subr.bf16.mxu0 0
    %2191 = vmatpush2.bf16.msra.mxu0 0
    %2192 = vmatprep.subr.bf16.mxu0 0
    %2193 = vmatpush2.bf16.msra.mxu0 0
    %2194 = vmatprep.subr.bf16.mxu0 0
    %2195 = vmatpush2.bf16.msra.mxu0 0
    %2196 = vmatprep.subr.bf16.mxu0 0
    %2197 = vmatpush2.bf16.msra.mxu0 0
    %2198 = vmatprep.subr.bf16.mxu0 0
    %2199 = vmatpush2.bf16.msra.mxu0 0
    %2200 = vmatprep.subr.bf16.mxu0 0
    %2201 = vmatpush2.bf16.msra.mxu0 0
    %2202 = vmatprep.mubr.bf16.mxu0 0
    %2203 = vmatmul.mubr.bf16.gmra.mxu0 %v2168
    %v2204 = vpop.f32.mrf.mxu0
    %v2205 = vadd.f32 0.0, %v2204
    %v2206 = vpop.f32.mrf.mxu0
    %v2207 = vpop.f32.mrf.mxu0
    %v2208 = vpop.f32.mrf.mxu0
    %2209 = vdwg.mxu0
    %v2212 = vunpack.c.l.b16 %v1718
    %v2213 = vunpack.c.l.b16 %v1719
    %v2214 = vrot.slane %v2213, 7
    %v2215 = vsel %vm1289, %v2214, %v2212
    %v2216 = vpack.c.b16 %v2215, %v2215
    %v2219 = vunpack.c.l.b16 %v1720
    %v2220 = vunpack.c.l.b16 %v1721
    %v2221 = vpack.c.b16 %v2220, %v2219
    %v2224 = vsel %vm273, %v2216, 0
    %2226 = vmatprep.subr.bf16.mxu0 0
    %2227 = vmatpush1.bf16.msra.mxu0 0
    %2228 = vmatprep.subr.bf16.mxu0 0
    %2229 = vmatpush1.bf16.msra.mxu0 0
    %2230 = vmatprep.subr.bf16.mxu0 0
    %2231 = vmatpush1.bf16.msra.mxu0 0
    %2232 = vmatprep.subr.bf16.mxu0 0
    %2233 = vmatpush1.bf16.msra.mxu0 0
    %2234 = vmatprep.subr.bf16.mxu0 0
    %2235 = vmatpush1.bf16.msra.mxu0 0
    %2236 = vmatprep.subr.bf16.mxu0 0
    %2237 = vmatpush1.bf16.msra.mxu0 0
    %2238 = vmatprep.subr.bf16.mxu0 0
    %2239 = vmatpush1.bf16.msra.mxu0 0
    %2240 = vmatprep.subr.bf16.mxu0 0
    %2241 = vmatpush1.bf16.msra.mxu0 %v2221
    %2242 = vmatprep.subr.bf16.mxu0 0
    %2243 = vmatpush2.bf16.msra.mxu0 0
    %2244 = vmatprep.subr.bf16.mxu0 0
    %2245 = vmatpush2.bf16.msra.mxu0 0
    %2246 = vmatprep.subr.bf16.mxu0 0
    %2247 = vmatpush2.bf16.msra.mxu0 0
    %2248 = vmatprep.subr.bf16.mxu0 0
    %2249 = vmatpush2.bf16.msra.mxu0 0
    %2250 = vmatprep.subr.bf16.mxu0 0
    %2251 = vmatpush2.bf16.msra.mxu0 0
    %2252 = vmatprep.subr.bf16.mxu0 0
    %2253 = vmatpush2.bf16.msra.mxu0 0
    %2254 = vmatprep.subr.bf16.mxu0 0
    %2255 = vmatpush2.bf16.msra.mxu0 0
    %2256 = vmatprep.subr.bf16.mxu0 0
    %2257 = vmatpush2.bf16.msra.mxu0 0
    %2258 = vmatprep.mubr.bf16.mxu0 0
    %2259 = vmatmul.mubr.bf16.gmra.mxu0 %v2224
    %v2260 = vpop.f32.mrf.mxu0
    %v2261 = vadd.f32 %v2205, %v2260
    %v2262 = vpop.f32.mrf.mxu0
    %v2263 = vpop.f32.mrf.mxu0
    %v2264 = vpop.f32.mrf.mxu0
    %2265 = vdwg.mxu0
    %v2266 = vld [vmem:[%s7 + $0x17] sm:$0x1]
    %v2267 = vlaneseq
    %v2268 = vshrl.u32 %v2267, 7
    %v2269 = vsub.s32 0, %v2268
    %v2270 = vrot.slane %v2266, %v2269
    %v2271 = vadd.f32 %v2261, %v2270
    %v2273 = vrot.slane %v2271, 1
    %v2276 = vadd.f32 %v1270, %v2271
    %v2277 = vadd.f32 %v1271, %v2273
    %v2278 = vld [vmem:[%s7 + $0x3] sm:$0x1]
    %v2279 = vld [vmem:[%s7 + $0x8] sm:$0x1]
    %v2282 = vrot.slane %v2277, 7
    %v2283 = vsel %vm1289, %v2282, %v2276
    %vm2285 = vcmask 254976
    %v2286 = vsel %vm2285, %v2283, 0.0
    %2287 = vadd.xlane.f32.xlu0 %v2286
    %v2288 = vpop.xlane.xlu0 %2287
    %v2289 = vmul.f32 %v2288, %v44
    %v2291 = vrot.slane %v2289, 1
    %v2294 = vsub.f32 %v2276, %v2289
    %v2295 = vsub.f32 %v2277, %v2291
    %v2296 = vmul.f32 %v2294, %v2294
    %v2297 = vmul.f32 %v2295, %v2295
    %v2300 = vrot.slane %v2297, 7
    %v2301 = vsel %vm1289, %v2300, %v2296
    %v2303 = vsel %vm2285, %v2301, 0.0
    %2304 = vadd.xlane.f32.xlu0 %v2303
    %v2305 = vpop.xlane.xlu0 %2304
    %v2306 = vmul.f32 %v2305, %v44
    %v2307 = vadd.f32 %v2306, 1e-12
    %v2308 = vrsqrt.pop %v2307
    %v2310 = vrot.slane %v2308, 1
    %v2313 = vmul.f32 %v2294, %v2308
    %v2314 = vmul.f32 %v2295, %v2310
    %v2315 = vlaneseq
    %v2316 = vshrl.u32 %v2315, 7
    %v2317 = vsub.s32 0, %v2316
    %v2318 = vrot.slane %v2278, %v2317
    %v2319 = vmul.f32 %v2313, %v2318
    %v2320 = vmul.f32 %v2314, %v2318
    %v2321 = vlaneseq
    %v2322 = vshrl.u32 %v2321, 7
    %v2323 = vsub.s32 0, %v2322
    %v2324 = vrot.slane %v2279, %v2323
    %v2325 = vadd.f32 %v2319, %v2324
    %v2326 = vadd.f32 %v2320, %v2324
    %v2327 = vld [vmem:[%s5 + $0x10] sm:$0xf]
    %v2328 = vld [vmem:[%s5 + $0x14] sm:$0xf]
    %v2329 = vld [vmem:[%s5 + $0x18] sm:$0xf]
    %v2330 = vld [vmem:[%s5 + $0x1c] sm:$0xf]
    %v2331 = vld [vmem:[%s4 + $0x40] sm:$0xf]
    %v2332 = vld [vmem:[%s4 + $0x44] sm:$0xf]
    %v2333 = vld [vmem:[%s4 + $0x48] sm:$0xf]
    %v2334 = vld [vmem:[%s4 + $0x4c] sm:$0xf]
    %v2335 = vld [vmem:[%s4 + $0x50] sm:$0xf]
    %v2336 = vld [vmem:[%s4 + $0x54] sm:$0xf]
    %v2337 = vld [vmem:[%s4 + $0x58] sm:$0xf]
    %v2338 = vld [vmem:[%s4 + $0x5c] sm:$0xf]
    %v2339 = vpack.c.bf16 %v2325, %v2325
    %v2340 = vpack.c.bf16 %v2326, %v2326
    %v2341 = vld [vmem:[%s7 + $0x19] sm:$0x1]
    %v2342 = vlaneseq
    %v2343 = vshrl.u32 %v2342, 7
    %v2344 = vsub.s32 0, %v2343
    %v2345 = vrot.slane %v2341, %v2344
    %v2348 = vunpack.c.l.b16 %v2339
    %v2349 = vunpack.c.l.b16 %v2340
    %v2350 = vrot.slane %v2349, 7
    %v2351 = vsel %vm1289, %v2350, %v2348
    %v2352 = vpack.c.b16 %v2351, %v2351
    %v2357 = vunpack.c.l.b16 %v2327
    %v2358 = vunpack.c.l.b16 %v2328
    %v2359 = vunpack.c.l.b16 %v2329
    %v2360 = vunpack.c.l.b16 %v2330
    %v2361 = vpack.c.b16 %v2358, %v2357
    %v2362 = vpack.c.b16 %v2360, %v2359
    %v2366 = vsel %vm37, %v2352, 0
    %2368 = vmatprep.subr.bf16.mxu0 0
    %2369 = vmatpush1.bf16.msra.mxu0 0
    %2370 = vmatprep.subr.bf16.mxu0 0
    %2371 = vmatpush1.bf16.msra.mxu0 0
    %2372 = vmatprep.subr.bf16.mxu0 0
    %2373 = vmatpush1.bf16.msra.mxu0 0
    %2374 = vmatprep.subr.bf16.mxu0 0
    %2375 = vmatpush1.bf16.msra.mxu0 0
    %2376 = vmatprep.subr.bf16.mxu0 0
    %2377 = vmatpush1.bf16.msra.mxu0 0
    %2378 = vmatprep.subr.bf16.mxu0 0
    %2379 = vmatpush1.bf16.msra.mxu0 0
    %2380 = vmatprep.subr.bf16.mxu0 0
    %2381 = vmatpush1.bf16.msra.mxu0 %v2362
    %2382 = vmatprep.subr.bf16.mxu0 0
    %2383 = vmatpush1.bf16.msra.mxu0 %v2361
    %2384 = vmatprep.subr.bf16.mxu0 0
    %2385 = vmatpush2.bf16.msra.mxu0 0
    %2386 = vmatprep.subr.bf16.mxu0 0
    %2387 = vmatpush2.bf16.msra.mxu0 0
    %2388 = vmatprep.subr.bf16.mxu0 0
    %2389 = vmatpush2.bf16.msra.mxu0 0
    %2390 = vmatprep.subr.bf16.mxu0 0
    %2391 = vmatpush2.bf16.msra.mxu0 0
    %2392 = vmatprep.subr.bf16.mxu0 0
    %2393 = vmatpush2.bf16.msra.mxu0 0
    %2394 = vmatprep.subr.bf16.mxu0 0
    %2395 = vmatpush2.bf16.msra.mxu0 0
    %2396 = vmatprep.subr.bf16.mxu0 0
    %2397 = vmatpush2.bf16.msra.mxu0 0
    %2398 = vmatprep.subr.bf16.mxu0 0
    %2399 = vmatpush2.bf16.msra.mxu0 0
    %2400 = vmatprep.mubr.bf16.mxu0 0
    %2401 = vmatmul.mubr.bf16.gmra.mxu0 %v2366
    %v2402 = vpop.f32.mrf.mxu0
    %v2403 = vadd.f32 %v2345, %v2402
    %v2404 = vpop.f32.mrf.mxu0
    %v2405 = vpop.f32.mrf.mxu0
    %v2406 = vpop.f32.mrf.mxu0
    %2407 = vdwg.mxu0
    %v2408 = vmul.f32 %v2403, 0.5
    %v2409 = vmul.f32 %v2403, 0.044715
    %v2410 = vmul.f32 %v2409, %v2403
    %v2411 = vmul.f32 %v2410, %v2403
    %v2412 = vadd.f32 %v2403, %v2411
    %v2413 = vmul.f32 %v2412, 0.7978846
    %v2414 = vtanh.pop %v2413
    %v2415 = vadd.f32 %v2414, 1.0
    %v2416 = vmul.f32 %v2408, %v2415
    %v2417 = vpack.c.bf16 %v2416, %v2416
    %v2418 = vld [vmem:[%s7 + $0x1b] sm:$0x1]
    %v2419 = vlaneseq
    %v2420 = vshrl.u32 %v2419, 7
    %v2421 = vsub.s32 0, %v2420
    %v2422 = vrot.slane %v2418, %v2421
    %v2431 = vunpack.c.l.b16 %v2331
    %v2432 = vunpack.c.l.b16 %v2332
    %v2433 = vunpack.c.l.b16 %v2333
    %v2434 = vunpack.c.l.b16 %v2334
    %v2435 = vunpack.c.l.b16 %v2335
    %v2436 = vunpack.c.l.b16 %v2336
    %v2437 = vunpack.c.l.b16 %v2337
    %v2438 = vunpack.c.l.b16 %v2338
    %v2439 = vpack.c.b16 %v2432, %v2431
    %v2440 = vpack.c.b16 %v2434, %v2433
    %v2441 = vpack.c.b16 %v2436, %v2435
    %v2442 = vpack.c.b16 %v2438, %v2437
    %v2448 = vsel %vm1181, %v2417, 0
    %2450 = vmatprep.subr.bf16.mxu0 0
    %2451 = vmatpush1.bf16.msra.mxu0 0
    %2452 = vmatprep.subr.bf16.mxu0 0
    %2453 = vmatpush1.bf16.msra.mxu0 0
    %2454 = vmatprep.subr.bf16.mxu0 0
    %2455 = vmatpush1.bf16.msra.mxu0 0
    %2456 = vmatprep.subr.bf16.mxu0 0
    %2457 = vmatpush1.bf16.msra.mxu0 0
    %2458 = vmatprep.subr.bf16.mxu0 0
    %2459 = vmatpush1.bf16.msra.mxu0 %v2442
    %2460 = vmatprep.subr.bf16.mxu0 0
    %2461 = vmatpush1.bf16.msra.mxu0 %v2441
    %2462 = vmatprep.subr.bf16.mxu0 0
    %2463 = vmatpush1.bf16.msra.mxu0 %v2440
    %2464 = vmatprep.subr.bf16.mxu0 0
    %2465 = vmatpush1.bf16.msra.mxu0 %v2439
    %2466 = vmatprep.subr.bf16.mxu0 0
    %2467 = vmatpush2.bf16.msra.mxu0 0
    %2468 = vmatprep.subr.bf16.mxu0 0
    %2469 = vmatpush2.bf16.msra.mxu0 0
    %2470 = vmatprep.subr.bf16.mxu0 0
    %2471 = vmatpush2.bf16.msra.mxu0 0
    %2472 = vmatprep.subr.bf16.mxu0 0
    %2473 = vmatpush2.bf16.msra.mxu0 0
    %2474 = vmatprep.subr.bf16.mxu0 0
    %2475 = vmatpush2.bf16.msra.mxu0 0
    %2476 = vmatprep.subr.bf16.mxu0 0
    %2477 = vmatpush2.bf16.msra.mxu0 0
    %2478 = vmatprep.subr.bf16.mxu0 0
    %2479 = vmatpush2.bf16.msra.mxu0 0
    %2480 = vmatprep.subr.bf16.mxu0 0
    %2481 = vmatpush2.bf16.msra.mxu0 0
    %2482 = vmatprep.mubr.bf16.mxu0 0
    %2483 = vmatmul.mubr.bf16.gmra.mxu0 %v2448
    %v2484 = vpop.f32.mrf.mxu0
    %v2485 = vadd.f32 %v2422, %v2484
    %v2486 = vpop.f32.mrf.mxu0
    %v2487 = vpop.f32.mrf.mxu0
    %v2488 = vpop.f32.mrf.mxu0
    %2489 = vdwg.mxu0
    %v2491 = vrot.slane %v2485, 1
    %v2494 = vadd.f32 %v2325, %v2485
    %v2495 = vadd.f32 %v2326, %v2491
    %v2496 = vld [vmem:[%s7 + $0x4] sm:$0x1]
    %v2497 = vld [vmem:[%s7 + $0x9] sm:$0x1]
    %v2500 = vrot.slane %v2495, 7
    %v2501 = vsel %vm1289, %v2500, %v2494
    %v2503 = vsel %vm2285, %v2501, 0.0
    %2504 = vadd.xlane.f32.xlu0 %v2503
    %v2505 = vpop.xlane.xlu0 %2504
    %v2506 = vmul.f32 %v2505, %v44
    %v2508 = vrot.slane %v2506, 1
    %v2511 = vsub.f32 %v2494, %v2506
    %v2512 = vsub.f32 %v2495, %v2508
    %v2513 = vmul.f32 %v2511, %v2511
    %v2514 = vmul.f32 %v2512, %v2512
    %v2517 = vrot.slane %v2514, 7
    %v2518 = vsel %vm1289, %v2517, %v2513
    %v2520 = vsel %vm2285, %v2518, 0.0
    %2521 = vadd.xlane.f32.xlu0 %v2520
    %v2522 = vpop.xlane.xlu0 %2521
    %v2523 = vmul.f32 %v2522, %v44
    %v2524 = vadd.f32 %v2523, 1e-12
    %v2525 = vrsqrt.pop %v2524
    %v2527 = vrot.slane %v2525, 1
    %v2530 = vmul.f32 %v2511, %v2525
    %v2531 = vmul.f32 %v2512, %v2527
    %v2532 = vlaneseq
    %v2533 = vshrl.u32 %v2532, 7
    %v2534 = vsub.s32 0, %v2533
    %v2535 = vrot.slane %v2496, %v2534
    %v2536 = vmul.f32 %v2530, %v2535
    %v2537 = vmul.f32 %v2531, %v2535
    %v2538 = vlaneseq
    %v2539 = vshrl.u32 %v2538, 7
    %v2540 = vsub.s32 0, %v2539
    %v2541 = vrot.slane %v2497, %v2540
    %v2542 = vadd.f32 %v2536, %v2541
    %v2543 = vadd.f32 %v2537, %v2541
    %v2544 = vpack.c.bf16 %v2542, %v2542
    %v2545 = vpack.c.bf16 %v2543, %v2543
    %v2546 = vld [vmem:[%s6] sm:$0xf]
    %v2547 = vld [vmem:[%s6 + $0x4] sm:$0xf]
    %v2548 = vld [vmem:[%s6 + $0x8] sm:$0xf]
    %v2549 = vld [vmem:[%s6 + $0xc] sm:$0xf]
    %v2550 = vld [vmem:[%s7 + $0x1c] sm:$0x1]
    %v2551 = vlaneseq
    %v2552 = vshrl.u32 %v2551, 7
    %v2553 = vsub.s32 0, %v2552
    %v2554 = vrot.slane %v2550, %v2553
    %v2557 = vunpack.c.l.b16 %v2544
    %v2558 = vunpack.c.l.b16 %v2545
    %v2559 = vrot.slane %v2558, 7
    %v2560 = vsel %vm1289, %v2559, %v2557
    %v2561 = vpack.c.b16 %v2560, %v2560
    %v2566 = vunpack.c.l.b16 %v2546
    %v2567 = vunpack.c.l.b16 %v2547
    %v2568 = vunpack.c.l.b16 %v2548
    %v2569 = vunpack.c.l.b16 %v2549
    %v2570 = vpack.c.b16 %v2567, %v2566
    %v2571 = vpack.c.b16 %v2569, %v2568
    %v2575 = vsel %vm37, %v2561, 0
    %2577 = vmatprep.subr.bf16.mxu0 0
    %2578 = vmatpush1.bf16.msra.mxu0 0
    %2579 = vmatprep.subr.bf16.mxu0 0
    %2580 = vmatpush1.bf16.msra.mxu0 0
    %2581 = vmatprep.subr.bf16.mxu0 0
    %2582 = vmatpush1.bf16.msra.mxu0 0
    %2583 = vmatprep.subr.bf16.mxu0 0
    %2584 = vmatpush1.bf16.msra.mxu0 0
    %2585 = vmatprep.subr.bf16.mxu0 0
    %2586 = vmatpush1.bf16.msra.mxu0 0
    %2587 = vmatprep.subr.bf16.mxu0 0
    %2588 = vmatpush1.bf16.msra.mxu0 0
    %2589 = vmatprep.subr.bf16.mxu0 0
    %2590 = vmatpush1.bf16.msra.mxu0 %v2571
    %2591 = vmatprep.subr.bf16.mxu0 0
    %2592 = vmatpush1.bf16.msra.mxu0 %v2570
    %2593 = vmatprep.subr.bf16.mxu0 0
    %2594 = vmatpush2.bf16.msra.mxu0 0
    %2595 = vmatprep.subr.bf16.mxu0 0
    %2596 = vmatpush2.bf16.msra.mxu0 0
    %2597 = vmatprep.subr.bf16.mxu0 0
    %2598 = vmatpush2.bf16.msra.mxu0 0
    %2599 = vmatprep.subr.bf16.mxu0 0
    %2600 = vmatpush2.bf16.msra.mxu0 0
    %2601 = vmatprep.subr.bf16.mxu0 0
    %2602 = vmatpush2.bf16.msra.mxu0 0
    %2603 = vmatprep.subr.bf16.mxu0 0
    %2604 = vmatpush2.bf16.msra.mxu0 0
    %2605 = vmatprep.subr.bf16.mxu0 0
    %2606 = vmatpush2.bf16.msra.mxu0 0
    %2607 = vmatprep.subr.bf16.mxu0 0
    %2608 = vmatpush2.bf16.msra.mxu0 0
    %2609 = vmatprep.mubr.bf16.mxu0 0
    %2610 = vmatmul.mubr.bf16.gmra.mxu0 %v2575
    %v2611 = vpop.f32.mrf.mxu0
    %v2612 = vadd.f32 %v2554, %v2611
    %v2613 = vpop.f32.mrf.mxu0
    %v2614 = vpop.f32.mrf.mxu0
    %v2615 = vpop.f32.mrf.mxu0
    %2616 = vdwg.mxu0
    %2617 = vst [vmem:[#allocation2] sm:$0x3] %v2612
    // Predicated region
    $region34: #{forward.1} parent=1 // pred_check
      _
    $region35: #{forward.1} parent=1 // pred_check_branch
      %2619 = sbr.rel (0) target = $region37
    $region36: #{forward.1} parent=1 // pred_region
      %s2621 = ssub.s32 32, 32
      %2622 = vsyncadd [#allocation3], %s2621
      %s2624 = sshll.u32 [#allocation2], 4
      %s2625 = int_to_ptr.vmem [resolvable:$true] %s2624
      %2627 = dma.vmem_to_hbm [thread:$0]  %s2625, 32, %s8, [#allocation3]
    $region37: #{forward.1} parent=1 // pred_fallthru
      _
    // Predicated region
    $region38: #{forward.1} parent=1 // pred_check
      _
    $region39: #{forward.1} parent=1 // pred_check_branch
      %2629 = sbr.rel (0) target = $region41
    $region40: #{forward.1} parent=1 // pred_region
      %2630 = dma.done [#allocation3], 32
    $region41: #{forward.1} parent=1 // pred_fallthru
      _
    %2631 = vsyncpa [#allocation3], 1

</llo_original>
